<compile_context>
chip_gen: v7x
topology: tpu7x:2x2x1
jax: 0.10.0
libtpu: 0.0.40
codegen_flags: <defaults>
</compile_context>

<pallas_src>
import functools

import jax
import jax.numpy as jnp
from jax.experimental import pallas as pl
from jax.experimental.pallas import tpu as pltpu

# ----------------------------- model config ---------------------------------
ITEM_EMBEDDING_DIM = 128
UV_DIM = 32
OUT_DIM = 3
MLP_OUT_DIM_LIST = [256, 256, 128, 128, 64, 32]
TANH_K = 3.0

# Packed uv-projection layout: each layer's uv-weight block starts at a
# 128-aligned lane offset (widths 256,256,128,128,64,32 padded to 128 each).
SEG_OFFSETS = (0, 256, 512, 640, 768, 896)
UV_PROJ_WIDTH = 1024
OUT_PAD = 128  # lane-dense padded width of the final output slab


# ------------------------------- kernel -------------------------------------
def _deepsdf_kernel(bf16_tanh,
                    emb_ref, uv_ref,
                    w0, w1, w2, w3, w4, w5,      # Wa per layer, bf16, tanh_k folded
                    wuv_ref,                     # [32, 1024] packed uv weights, bf16
                    ball_ref,                    # [1, 1024] packed biases, f32
                    w6_ref, b6_ref,              # final layer, padded to 128 lanes
                    out_ref):
    # f32 -> bf16 casts done in-kernel (cheap VPU work, hidden under input DMA).
    emb = emb_ref[...].astype(jnp.bfloat16)      # (tile_n, 128)
    uv = uv_ref[...].astype(jnp.bfloat16)        # (tile_n, 32)

    # One wide K=32 matmul covers all six uv contributions; per-layer biases
    # (tanh_k pre-folded) are packed into ball.  Kept in bf16 to halve the
    # largest tile_n-scaled VMEM temp; the per-layer add upcasts to f32.
    uvb = (jnp.dot(uv, wuv_ref[...], preferred_element_type=jnp.float32)
           + ball_ref[...]).astype(jnp.bfloat16)  # (tile_n, 1024)

    def hidden(h, wa_ref, li, dout):
        off = SEG_OFFSETS[li]
        z = (jnp.dot(h, wa_ref[...], preferred_element_type=jnp.float32)
             + uvb[:, off:off + dout])
        # tanh_k already folded into weights/biases.  bf16 tanh where the EUP
        # supports it (v6e/v7x); f32 tanh on v5e and older.
        if bf16_tanh:
            return jnp.tanh(z.astype(jnp.bfloat16))
        return jnp.tanh(z).astype(jnp.bfloat16)

    h = hidden(emb, w0, 0, 256)   # Linear(128+32 -> 256) + tanh(3x)
    h = hidden(h,   w1, 1, 256)   # Linear(256+32 -> 256) + tanh(3x)
    h = hidden(h,   w2, 2, 128)   # Linear(256+32 -> 128) + tanh(3x)
    h = hidden(h,   w3, 3, 128)   # Linear(128+32 -> 128) + tanh(3x)
    h = hidden(h,   w4, 4, 64)    # Linear(128+32 ->  64) + tanh(3x)
    h = hidden(h,   w5, 5, 32)    # Linear( 64+32 ->  32) + tanh(3x)

    # Final Linear(32 -> 3), zero-padded to 128 lanes -> lane-dense store.
    out = jnp.dot(h, w6_ref[...], preferred_element_type=jnp.float32) + b6_ref[...]
    out_ref[...] = out.astype(out_ref.dtype)


# ------------------------------ wrapper --------------------------------------
def _round_up(x, m):
    return ((x + m - 1) // m) * m


def _pick_tile_n(n_rows, tile_n):
    """256-multiple, <= tile_n, and small enough that the 1-D 'parallel' grid
    keeps >= 2 steps when there are enough rows (v7x megacore sharding)."""
    tile_n = max(256, (tile_n // 256) * 256)
    target = _round_up(pl.cdiv(n_rows, 2), 256)   # ~half the rows, 256-aligned
    return max(256, min(tile_n, target))


def _bf16_tanh_supported():
    """bf16 EUP exists on v6e / v7x; keep f32 tanh on v5e and older (and on
    unknown backends, where f32 is always correct)."""
    try:
        kind = jax.devices()[0].device_kind.lower()
    except Exception:
        return False
    return ("v6" in kind) or ("v7" in kind)


@functools.partial(jax.jit, static_argnames=("tile_n",))
def deepsdf_like_forward(item_embedding, uv, kernel_params, *, tile_n=1024):
    """kernel_params = (W0a..W5a (bf16), Wuv_packed (bf16), b_all (f32),
                        W6_padded (bf16), b6_padded (f32))."""
    lead_shape = item_embedding.shape[:-1]

    emb2 = item_embedding.reshape(-1, item_embedding.shape[-1])   # f32, no copy
    uv2 = uv.reshape(-1, uv.shape[-1])                            # f32, no copy
    n_rows, d_emb = emb2.shape
    d_uv = uv2.shape[-1]

    tn = _pick_tile_n(n_rows, tile_n)
    grid = (pl.cdiv(n_rows, tn),)        # ragged last tile -> Pallas partial block

    bf16_tanh = _bf16_tanh_supported()

    # Parameters use a constant index_map -> grid-invariant, resident blocks.
    param_specs = [pl.BlockSpec(p.shape, lambda i: (0, 0)) for p in kernel_params]
    in_specs = [
        pl.BlockSpec((tn, d_emb), lambda i: (i, 0)),
        pl.BlockSpec((tn, d_uv), lambda i: (i, 0)),
    ] + param_specs
    out_specs = pl.BlockSpec((tn, OUT_PAD), lambda i: (i, 0))

    # Advisory cost estimate (helps XLA schedule the surrounding slice/cast).
    in_dims_h = [ITEM_EMBEDDING_DIM] + MLP_OUT_DIM_LIST[:-1]
    flops_per_row = sum(2 * dh * do for dh, do in zip(in_dims_h, MLP_OUT_DIM_LIST))
    flops_per_row += 2 * UV_DIM * UV_PROJ_WIDTH + 2 * MLP_OUT_DIM_LIST[-1] * OUT_PAD
    param_bytes = sum(int(p.size) * p.dtype.itemsize for p in kernel_params)
    cost = pl.CostEstimate(
        flops=int(flops_per_row * n_rows),
        transcendentals=int(sum(MLP_OUT_DIM_LIST) * n_rows),
        bytes_accessed=int(n_rows * ((d_emb + d_uv) * 4 + OUT_PAD * 2) + param_bytes),
    )

    out = pl.pallas_call(
        functools.partial(_deepsdf_kernel, bf16_tanh),
        out_shape=jax.ShapeDtypeStruct((n_rows, OUT_PAD), jnp.bfloat16),
        grid_spec=pltpu.PrefetchScalarGridSpec(
            num_scalar_prefetch=0,
            grid=grid,
            in_specs=in_specs,
            out_specs=out_specs,
        ),
        compiler_params=pltpu.CompilerParams(
            dimension_semantics=("parallel",)),
        cost_estimate=cost,
    )(emb2, uv2, *kernel_params)

    # Slice the 3 real output lanes and restore f32 / leading shape.
    return out[:, :OUT_DIM].astype(jnp.float32).reshape(*lead_shape, OUT_DIM)


# --------------------------- parameter setup ---------------------------------
def _weight_norm_effective(v, g):
    # torch weight_norm, name='weight', dim=0: W[o,:] = g[o] * v[o,:]/||v[o,:]||
    norm = jnp.sqrt(jnp.sum(v * v, axis=1, keepdims=True))
    return (g[:, None] / norm) * v


def make_module_params(key):
    """Synthetic params matching the PyTorch module: list of (W [out,in], b [out])
    for the 6 weight-normed concat layers plus the final plain Linear(32->3)."""
    in_dims = [ITEM_EMBEDDING_DIM] + MLP_OUT_DIM_LIST[:-1]   # hidden input dims
    params = []
    for din_h, dout in zip(in_dims, MLP_OUT_DIM_LIST):
        din = din_h + UV_DIM
        key, k1, k2, k3 = jax.random.split(key, 4)
        v = jax.random.normal(k1, (dout, din), jnp.float32) * 0.1
        g = jax.random.uniform(k2, (dout,), jnp.float32, minval=0.5, maxval=1.5)
        b = jax.random.normal(k3, (dout,), jnp.float32) * 0.01
        params.append((_weight_norm_effective(v, g), b))
    key, k1, k2 = jax.random.split(key, 3)
    w6 = jax.random.normal(k1, (OUT_DIM, MLP_OUT_DIM_LIST[-1]), jnp.float32) * 0.1
    b6 = jax.random.normal(k2, (OUT_DIM,), jnp.float32) * 0.01
    params.append((w6, b6))
    return params


def pack_kernel_params(module_params):
    """One-time offline transform: split/transpose weights, fold tanh_k, pack all
    uv-path weights into a single [32, 1024] matrix (+ packed biases), pad the
    final layer to 128 output lanes, and cast weights to bf16."""
    wa_list = []
    wuv = jnp.zeros((UV_DIM, UV_PROJ_WIDTH), jnp.float32)
    ball = jnp.zeros((1, UV_PROJ_WIDTH), jnp.float32)
    for li, dout in enumerate(MLP_OUT_DIM_LIST):
        W, b = module_params[li]                 # W: [out, in], b: [out]
        din_h = W.shape[1] - UV_DIM
        Wt = (TANH_K * W).T                      # fold tanh_k; [in, out]
        wa_list.append(Wt[:din_h, :].astype(jnp.bfloat16))
        off = SEG_OFFSETS[li]
        wuv = wuv.at[:, off:off + dout].set(Wt[din_h:, :])
        ball = ball.at[0, off:off + dout].set(TANH_K * b)

    W6, b6 = module_params[-1]                   # [3, 32], [3]
    w6p = jnp.zeros((MLP_OUT_DIM_LIST[-1], OUT_PAD), jnp.float32)
    w6p = w6p.at[:, :OUT_DIM].set(W6.T)
    b6p = jnp.zeros((1, OUT_PAD), jnp.float32).at[0, :OUT_DIM].set(b6)

    return tuple(wa_list) + (wuv.astype(jnp.bfloat16), ball,
                             w6p.astype(jnp.bfloat16), b6p)


# ----------------------------- reference -------------------------------------
def reference_forward(item_embedding, uv, module_params):
    """Pure-f32 reference with the original module semantics (concat + tanh(3x))."""
    lead_shape = item_embedding.shape[:-1]
    h = item_embedding.reshape(-1, item_embedding.shape[-1])
    uv2 = uv.reshape(-1, uv.shape[-1])
    for li in range(len(MLP_OUT_DIM_LIST)):
        W, b = module_params[li]
        x = jnp.concatenate([h, uv2], axis=-1)
        h = jnp.tanh(TANH_K * (x @ W.T + b))
    W6, b6 = module_params[-1]
    out = h @ W6.T + b6
    return out.reshape(*lead_shape, OUT_DIM)


# -------------------------------- main ----------------------------------------
if __name__ == "__main__":
    key = jax.random.PRNGKey(0)
    kp, ke, ku = jax.random.split(key, 3)

    module_params = make_module_params(kp)
    kernel_params = pack_kernel_params(module_params)

    # 400 rows -> tile_n auto-capped to 256, grid of 2 (one full + one ragged
    # partial block): exercises the multi-step parallel grid and the
    # partial-last-tile path without any wrapper-side padding.
    bs, N = 2, 200
    item_embedding = jax.random.normal(ke, (bs, N, ITEM_EMBEDDING_DIM), jnp.float32)
    uv = jax.random.normal(ku, (bs, N, UV_DIM), jnp.float32)

    out = deepsdf_like_forward(item_embedding, uv, kernel_params)
    out = jax.block_until_ready(out)

    ref = reference_forward(item_embedding, uv, module_params)
    assert out.shape == (bs, N, OUT_DIM)
    max_err = float(jnp.max(jnp.abs(out - ref)))
    # bf16 weights/activations (+ bf16 tanh on v6e/v7x, bf16 output slab) with
    # f32 accumulation -> loosened tolerance vs the pure-f32 reference.
    assert jnp.allclose(out, ref, atol=6e-2, rtol=6e-2), \
        f"mismatch vs reference (max abs err {max_err})"

    print("KERNEL_OK")
</pallas_src>

<mosaic_0001>
module attributes {stable_mosaic.version = 11 : i64} {
  func.func @_deepsdf_kernel(%arg0: i32, %arg1: memref<256x128xf32, #tpu.memory_space<vmem>>, %arg2: memref<256x32xf32, #tpu.memory_space<vmem>>, %arg3: memref<128x256xbf16, #tpu.memory_space<vmem>>, %arg4: memref<256x256xbf16, #tpu.memory_space<vmem>>, %arg5: memref<256x128xbf16, #tpu.memory_space<vmem>>, %arg6: memref<128x128xbf16, #tpu.memory_space<vmem>>, %arg7: memref<128x64xbf16, #tpu.memory_space<vmem>>, %arg8: memref<64x32xbf16, #tpu.memory_space<vmem>>, %arg9: memref<32x1024xbf16, #tpu.memory_space<vmem>>, %arg10: memref<1x1024xf32, #tpu.memory_space<vmem>>, %arg11: memref<32x128xbf16, #tpu.memory_space<vmem>>, %arg12: memref<1x128xf32, #tpu.memory_space<vmem>>, %arg13: memref<256x128xbf16, #tpu.memory_space<vmem>>) attributes {dimension_semantics = [#tpu.dimension_semantics<parallel>], iteration_bounds = array<i64: 2>, scalar_prefetch = 0 : i64, scratch_operands = 0 : i64, tpu.core_type = #tpu.core_type<tc>, window_params = [{transform_indices = @transform_0, window_bounds = array<i64: 256, 128>}, {transform_indices = @transform_1, window_bounds = array<i64: 256, 32>}, {pipeline_mode = #tpu.pipeline_mode<synchronous>, transform_indices = @transform_2, window_bounds = array<i64: 128, 256>}, {pipeline_mode = #tpu.pipeline_mode<synchronous>, transform_indices = @transform_3, window_bounds = array<i64: 256, 256>}, {pipeline_mode = #tpu.pipeline_mode<synchronous>, transform_indices = @transform_4, window_bounds = array<i64: 256, 128>}, {pipeline_mode = #tpu.pipeline_mode<synchronous>, transform_indices = @transform_5, window_bounds = array<i64: 128, 128>}, {pipeline_mode = #tpu.pipeline_mode<synchronous>, transform_indices = @transform_6, window_bounds = array<i64: 128, 64>}, {pipeline_mode = #tpu.pipeline_mode<synchronous>, transform_indices = @transform_7, window_bounds = array<i64: 64, 32>}, {pipeline_mode = #tpu.pipeline_mode<synchronous>, transform_indices = @transform_8, window_bounds = array<i64: 32, 1024>}, {pipeline_mode = #tpu.pipeline_mode<synchronous>, transform_indices = @transform_9, window_bounds = array<i64: 1, 1024>}, {pipeline_mode = #tpu.pipeline_mode<synchronous>, transform_indices = @transform_10, window_bounds = array<i64: 32, 128>}, {pipeline_mode = #tpu.pipeline_mode<synchronous>, transform_indices = @transform_11, window_bounds = array<i64: 1, 128>}, {transform_indices = @transform_12, window_bounds = array<i64: 256, 128>}]} {
    %c0 = arith.constant 0 : index
    %c0_0 = arith.constant 0 : index
    %0 = vector.load %arg1[%c0, %c0_0] : memref<256x128xf32, #tpu.memory_space<vmem>>, vector<256x128xf32>
    %1 = arith.truncf %0 : vector<256x128xf32> to vector<256x128xbf16>
    %c0_1 = arith.constant 0 : index
    %c0_2 = arith.constant 0 : index
    %2 = vector.load %arg2[%c0_1, %c0_2] : memref<256x32xf32, #tpu.memory_space<vmem>>, vector<256x32xf32>
    %3 = arith.truncf %2 : vector<256x32xf32> to vector<256x32xbf16>
    %c0_3 = arith.constant 0 : index
    %c0_4 = arith.constant 0 : index
    %4 = vector.load %arg9[%c0_3, %c0_4] : memref<32x1024xbf16, #tpu.memory_space<vmem>>, vector<32x1024xbf16>
    %cst = arith.constant dense<0.000000e+00> : vector<256x1024xf32>
    %5 = tpu.matmul %3, %4, %cst {dimension_numbers = #tpu.dot_dimension_numbers<[1], [0], [0], [1], [0, 0, 1, 1], [], []>} : vector<256x32xbf16>, vector<32x1024xbf16>, vector<256x1024xf32> -> vector<256x1024xf32>
    %c0_5 = arith.constant 0 : index
    %c0_6 = arith.constant 0 : index
    %6 = vector.load %arg10[%c0_5, %c0_6] : memref<1x1024xf32, #tpu.memory_space<vmem>>, vector<1x1024xf32>
    %7 = vector.broadcast %6 : vector<1x1024xf32> to vector<256x1024xf32>
    %8 = arith.addf %5, %7 : vector<256x1024xf32>
    %9 = arith.truncf %8 : vector<256x1024xf32> to vector<256x1024xbf16>
    %c0_7 = arith.constant 0 : index
    %c0_8 = arith.constant 0 : index
    %10 = vector.load %arg3[%c0_7, %c0_8] : memref<128x256xbf16, #tpu.memory_space<vmem>>, vector<128x256xbf16>
    %cst_9 = arith.constant dense<0.000000e+00> : vector<256x256xf32>
    %11 = tpu.matmul %1, %10, %cst_9 {dimension_numbers = #tpu.dot_dimension_numbers<[1], [0], [0], [1], [0, 0, 1, 1], [], []>} : vector<256x128xbf16>, vector<128x256xbf16>, vector<256x256xf32> -> vector<256x256xf32>
    %12 = vector.extract_strided_slice %9 {offsets = [0, 0], sizes = [256, 256], strides = [1, 1]} : vector<256x1024xbf16> to vector<256x256xbf16>
    %13 = arith.extf %12 : vector<256x256xbf16> to vector<256x256xf32>
    %14 = arith.addf %11, %13 : vector<256x256xf32>
    %15 = math.tanh %14 : vector<256x256xf32>
    %16 = arith.truncf %15 : vector<256x256xf32> to vector<256x256xbf16>
    %c0_10 = arith.constant 0 : index
    %c0_11 = arith.constant 0 : index
    %17 = vector.load %arg4[%c0_10, %c0_11] : memref<256x256xbf16, #tpu.memory_space<vmem>>, vector<256x256xbf16>
    %cst_12 = arith.constant dense<0.000000e+00> : vector<256x256xf32>
    %18 = tpu.matmul %16, %17, %cst_12 {dimension_numbers = #tpu.dot_dimension_numbers<[1], [0], [0], [1], [0, 0, 1, 1], [], []>} : vector<256x256xbf16>, vector<256x256xbf16>, vector<256x256xf32> -> vector<256x256xf32>
    %19 = vector.extract_strided_slice %9 {offsets = [0, 256], sizes = [256, 256], strides = [1, 1]} : vector<256x1024xbf16> to vector<256x256xbf16>
    %20 = arith.extf %19 : vector<256x256xbf16> to vector<256x256xf32>
    %21 = arith.addf %18, %20 : vector<256x256xf32>
    %22 = math.tanh %21 : vector<256x256xf32>
    %23 = arith.truncf %22 : vector<256x256xf32> to vector<256x256xbf16>
    %c0_13 = arith.constant 0 : index
    %c0_14 = arith.constant 0 : index
    %24 = vector.load %arg5[%c0_13, %c0_14] : memref<256x128xbf16, #tpu.memory_space<vmem>>, vector<256x128xbf16>
    %cst_15 = arith.constant dense<0.000000e+00> : vector<256x128xf32>
    %25 = tpu.matmul %23, %24, %cst_15 {dimension_numbers = #tpu.dot_dimension_numbers<[1], [0], [0], [1], [0, 0, 1, 1], [], []>} : vector<256x256xbf16>, vector<256x128xbf16>, vector<256x128xf32> -> vector<256x128xf32>
    %26 = vector.extract_strided_slice %9 {offsets = [0, 512], sizes = [256, 128], strides = [1, 1]} : vector<256x1024xbf16> to vector<256x128xbf16>
    %27 = arith.extf %26 : vector<256x128xbf16> to vector<256x128xf32>
    %28 = arith.addf %25, %27 : vector<256x128xf32>
    %29 = math.tanh %28 : vector<256x128xf32>
    %30 = arith.truncf %29 : vector<256x128xf32> to vector<256x128xbf16>
    %c0_16 = arith.constant 0 : index
    %c0_17 = arith.constant 0 : index
    %31 = vector.load %arg6[%c0_16, %c0_17] : memref<128x128xbf16, #tpu.memory_space<vmem>>, vector<128x128xbf16>
    %cst_18 = arith.constant dense<0.000000e+00> : vector<256x128xf32>
    %32 = tpu.matmul %30, %31, %cst_18 {dimension_numbers = #tpu.dot_dimension_numbers<[1], [0], [0], [1], [0, 0, 1, 1], [], []>} : vector<256x128xbf16>, vector<128x128xbf16>, vector<256x128xf32> -> vector<256x128xf32>
    %33 = vector.extract_strided_slice %9 {offsets = [0, 640], sizes = [256, 128], strides = [1, 1]} : vector<256x1024xbf16> to vector<256x128xbf16>
    %34 = arith.extf %33 : vector<256x128xbf16> to vector<256x128xf32>
    %35 = arith.addf %32, %34 : vector<256x128xf32>
    %36 = math.tanh %35 : vector<256x128xf32>
    %37 = arith.truncf %36 : vector<256x128xf32> to vector<256x128xbf16>
    %c0_19 = arith.constant 0 : index
    %c0_20 = arith.constant 0 : index
    %38 = vector.load %arg7[%c0_19, %c0_20] : memref<128x64xbf16, #tpu.memory_space<vmem>>, vector<128x64xbf16>
    %cst_21 = arith.constant dense<0.000000e+00> : vector<256x64xf32>
    %39 = tpu.matmul %37, %38, %cst_21 {dimension_numbers = #tpu.dot_dimension_numbers<[1], [0], [0], [1], [0, 0, 1, 1], [], []>} : vector<256x128xbf16>, vector<128x64xbf16>, vector<256x64xf32> -> vector<256x64xf32>
    %40 = vector.extract_strided_slice %9 {offsets = [0, 768], sizes = [256, 64], strides = [1, 1]} : vector<256x1024xbf16> to vector<256x64xbf16>
    %41 = arith.extf %40 : vector<256x64xbf16> to vector<256x64xf32>
    %42 = arith.addf %39, %41 : vector<256x64xf32>
    %43 = math.tanh %42 : vector<256x64xf32>
    %44 = arith.truncf %43 : vector<256x64xf32> to vector<256x64xbf16>
    %c0_22 = arith.constant 0 : index
    %c0_23 = arith.constant 0 : index
    %45 = vector.load %arg8[%c0_22, %c0_23] : memref<64x32xbf16, #tpu.memory_space<vmem>>, vector<64x32xbf16>
    %cst_24 = arith.constant dense<0.000000e+00> : vector<256x32xf32>
    %46 = tpu.matmul %44, %45, %cst_24 {dimension_numbers = #tpu.dot_dimension_numbers<[1], [0], [0], [1], [0, 0, 1, 1], [], []>} : vector<256x64xbf16>, vector<64x32xbf16>, vector<256x32xf32> -> vector<256x32xf32>
    %47 = vector.extract_strided_slice %9 {offsets = [0, 896], sizes = [256, 32], strides = [1, 1]} : vector<256x1024xbf16> to vector<256x32xbf16>
    %48 = arith.extf %47 : vector<256x32xbf16> to vector<256x32xf32>
    %49 = arith.addf %46, %48 : vector<256x32xf32>
    %50 = math.tanh %49 : vector<256x32xf32>
    %51 = arith.truncf %50 : vector<256x32xf32> to vector<256x32xbf16>
    %c0_25 = arith.constant 0 : index
    %c0_26 = arith.constant 0 : index
    %52 = vector.load %arg11[%c0_25, %c0_26] : memref<32x128xbf16, #tpu.memory_space<vmem>>, vector<32x128xbf16>
    %cst_27 = arith.constant dense<0.000000e+00> : vector<256x128xf32>
    %53 = tpu.matmul %51, %52, %cst_27 {dimension_numbers = #tpu.dot_dimension_numbers<[1], [0], [0], [1], [0, 0, 1, 1], [], []>} : vector<256x32xbf16>, vector<32x128xbf16>, vector<256x128xf32> -> vector<256x128xf32>
    %c0_28 = arith.constant 0 : index
    %c0_29 = arith.constant 0 : index
    %54 = vector.load %arg12[%c0_28, %c0_29] : memref<1x128xf32, #tpu.memory_space<vmem>>, vector<1x128xf32>
    %55 = vector.broadcast %54 : vector<1x128xf32> to vector<256x128xf32>
    %56 = arith.addf %53, %55 : vector<256x128xf32>
    %57 = arith.truncf %56 : vector<256x128xf32> to vector<256x128xbf16>
    %c0_30 = arith.constant 0 : index
    %c0_31 = arith.constant 0 : index
    %58 = vector.load %arg13[%c0_30, %c0_31] : memref<256x128xbf16, #tpu.memory_space<vmem>>, vector<256x128xbf16>
    tpu.vector_store %arg13[%c0_30, %c0_31], %57 {strides = array<i32>} : memref<256x128xbf16, #tpu.memory_space<vmem>>, vector<256x128xbf16>,
    return
  }
  func.func @transform_0(%arg0: i32) -> (i32, i32) {
    %c0_i32 = arith.constant 0 : i32
    %c0_i32_0 = arith.constant 0 : i32
    return %arg0, %c0_i32 : i32, i32
  }
  func.func @transform_1(%arg0: i32) -> (i32, i32) {
    %c0_i32 = arith.constant 0 : i32
    %c0_i32_0 = arith.constant 0 : i32
    return %arg0, %c0_i32 : i32, i32
  }
  func.func @transform_2(%arg0: i32) -> (i32, i32) {
    %c0_i32 = arith.constant 0 : i32
    %c0_i32_0 = arith.constant 0 : i32
    %c0_i32_1 = arith.constant 0 : i32
    return %c0_i32, %c0_i32_0 : i32, i32
  }
  func.func @transform_3(%arg0: i32) -> (i32, i32) {
    %c0_i32 = arith.constant 0 : i32
    %c0_i32_0 = arith.constant 0 : i32
    %c0_i32_1 = arith.constant 0 : i32
    return %c0_i32, %c0_i32_0 : i32, i32
  }
  func.func @transform_4(%arg0: i32) -> (i32, i32) {
    %c0_i32 = arith.constant 0 : i32
    %c0_i32_0 = arith.constant 0 : i32
    %c0_i32_1 = arith.constant 0 : i32
    return %c0_i32, %c0_i32_0 : i32, i32
  }
  func.func @transform_5(%arg0: i32) -> (i32, i32) {
    %c0_i32 = arith.constant 0 : i32
    %c0_i32_0 = arith.constant 0 : i32
    %c0_i32_1 = arith.constant 0 : i32
    return %c0_i32, %c0_i32_0 : i32, i32
  }
  func.func @transform_6(%arg0: i32) -> (i32, i32) {
    %c0_i32 = arith.constant 0 : i32
    %c0_i32_0 = arith.constant 0 : i32
    %c0_i32_1 = arith.constant 0 : i32
    return %c0_i32, %c0_i32_0 : i32, i32
  }
  func.func @transform_7(%arg0: i32) -> (i32, i32) {
    %c0_i32 = arith.constant 0 : i32
    %c0_i32_0 = arith.constant 0 : i32
    %c0_i32_1 = arith.constant 0 : i32
    return %c0_i32, %c0_i32_0 : i32, i32
  }
  func.func @transform_8(%arg0: i32) -> (i32, i32) {
    %c0_i32 = arith.constant 0 : i32
    %c0_i32_0 = arith.constant 0 : i32
    %c0_i32_1 = arith.constant 0 : i32
    return %c0_i32, %c0_i32_0 : i32, i32
  }
  func.func @transform_9(%arg0: i32) -> (i32, i32) {
    %c0_i32 = arith.constant 0 : i32
    %c0_i32_0 = arith.constant 0 : i32
    %c0_i32_1 = arith.constant 0 : i32
    return %c0_i32, %c0_i32_0 : i32, i32
  }
  func.func @transform_10(%arg0: i32) -> (i32, i32) {
    %c0_i32 = arith.constant 0 : i32
    %c0_i32_0 = arith.constant 0 : i32
    %c0_i32_1 = arith.constant 0 : i32
    return %c0_i32, %c0_i32_0 : i32, i32
  }
  func.func @transform_11(%arg0: i32) -> (i32, i32) {
    %c0_i32 = arith.constant 0 : i32
    %c0_i32_0 = arith.constant 0 : i32
    %c0_i32_1 = arith.constant 0 : i32
    return %c0_i32, %c0_i32_0 : i32, i32
  }
  func.func @transform_12(%arg0: i32) -> (i32, i32) {
    %c0_i32 = arith.constant 0 : i32
    %c0_i32_0 = arith.constant 0 : i32
    return %arg0, %c0_i32 : i32, i32
  }
}

</mosaic_0001>

<llo_original>
// kernel: deepsdf_like_forward.1
$region0: #{deepsdf_like_forward.1}
  #allocation0 [shape = 'u32[]', space=smem, size = 0x4, offset = 0x4, fixed_abs, tag = 'smem constant byte address 0x4 - core index']
  #allocation1 [shape = 'u32[144,128]{1,0:T(1,128)}', space=vmem, size = 0x12000, scoped, tag = 'internal scratch']
  %s0 = inlined_call_operand.vmem [shape: f32[400,128], index: 0, kind: input, shape index: {}]
  %s1 = inlined_call_operand.vmem [shape: f32[400,32], index: 1, kind: input, shape index: {}]
  %s2 = inlined_call_operand.hbm [shape: bf16[128,256], index: 2, kind: input, shape index: {}]
  %s3 = inlined_call_operand.vmem [shape: bf16[256,256], index: 3, kind: input, shape index: {}]
  %s4 = inlined_call_operand.hbm [shape: bf16[256,128], index: 4, kind: input, shape index: {}]
  %s5 = inlined_call_operand.hbm [shape: bf16[128,128], index: 5, kind: input, shape index: {}]
  %s6 = inlined_call_operand.vmem [shape: bf16[128,64], index: 6, kind: input, shape index: {}]
  %s7 = inlined_call_operand.vmem [shape: bf16[64,32], index: 7, kind: input, shape index: {}]
  %s8 = inlined_call_operand.hbm [shape: bf16[32,1024], index: 8, kind: input, shape index: {}]
  %s9 = inlined_call_operand.vmem [shape: f32[1,1024], index: 9, kind: input, shape index: {}]
  %s10 = inlined_call_operand.vmem [shape: bf16[32,128], index: 10, kind: input, shape index: {}]
  %s11 = inlined_call_operand.vmem [shape: f32[1,128], index: 11, kind: input, shape index: {}]
  %s12 = inlined_call_operand.vmem [shape: bf16[400,128], index: 12, kind: output, shape index: {}]
  %s13 = sld [smem:[#allocation0]]
  $region141: #{deepsdf_like_forward.1} parent=0
    _
  %s15 = ssub.s32 1, %s13
  %s16 = scalar_select 0, %s15, %s13
  $region1: #{deepsdf_like_forward.1} parent=0
    #allocation2 [shape = 'u8[65536]{0}', space=vmem, size = 0x10000, scoped, tag = 'input window, operand 2, single buffered']
    #allocation3 [shape = 's32[2]{0}', space=sflag, size = 0x8, scoped, tag = 'scoped memory for deepsdf_like_forward.1']
    #allocation4 [shape = 'u8[65536]{0}', space=vmem, size = 0x10000, scoped, tag = 'input window, operand 4, single buffered']
    #allocation5 [shape = 's32[1]{0}', space=sflag, size = 0x4, scoped, tag = 'scoped memory for deepsdf_like_forward.1']
    #allocation6 [shape = 'u8[32768]{0}', space=vmem, size = 0x8000, scoped, tag = 'input window, operand 5, single buffered']
    #allocation7 [shape = 'u8[65536]{0}', space=vmem, size = 0x10000, scoped, tag = 'input window, operand 8, single buffered']
    #allocation8 [shape = 's32[1]{0}', space=sflag, size = 0x4, scoped, tag = 'scoped memory for deepsdf_like_forward.1']
    #allocation9 [shape = 'u8[131072]{0}', space=vmem, size = 0x20000, scoped, tag = 'output window, operand 0']
    %17 = vsyncpa [#allocation3], 0
    %18 = vsyncpa [#allocation5], 0
    %19 = vsyncpa [#allocation8], 0
    loop: start=0, step=1, limit=4
    $region2: #{deepsdf_like_forward.1} parent=1 // loop_pre_header
      _
    $region3: #{deepsdf_like_forward.1} parent=1 // loop_header
      %s21 = sphi 0, %s25
      %p22 = scmp.ge.s32.totalorder %s21, 4
      %s31 = sphi 0, %s33
      %s34 = sphi 0, %s31
      %s35 = sphi 0, %s34
      %s51 = sphi 0, %s35
      %s57 = sphi 0, %s59
      %s60 = sphi 0, %s57
      %s61 = sphi 0, %s60
      %s77 = sphi 0, %s61
      %s81 = sphi 0, %s81
      %s83 = sphi 0, %s81
      %s84 = sphi 0, %s83
      %s98 = sphi 0, %s84
      %s102 = sphi 0, %s102
      %s104 = sphi 0, %s102
      %s105 = sphi 0, %s104
      %s119 = sphi 0, %s105
      %s123 = sphi 0, %s123
      %s125 = sphi 0, %s123
      %s126 = sphi 0, %s125
      %s140 = sphi 0, %s126
      %s144 = sphi 0, %s144
      %s146 = sphi 0, %s144
      %s147 = sphi 0, %s146
      %s161 = sphi 0, %s147
      %s165 = sphi 0, %s165
      %s167 = sphi 0, %s165
      %s168 = sphi 0, %s167
      %s182 = sphi 0, %s168
      %s186 = sphi 0, %s186
      %s188 = sphi 0, %s186
      %s189 = sphi 0, %s188
      %s203 = sphi 0, %s189
      %s207 = sphi 0, %s207
      %s209 = sphi 0, %s207
      %s210 = sphi 0, %s209
      %s224 = sphi 0, %s210
      %s228 = sphi 0, %s228
      %s230 = sphi 0, %s228
      %s231 = sphi 0, %s230
      %s245 = sphi 0, %s231
      %s249 = sphi 0, %s249
      %s251 = sphi 0, %s249
      %s252 = sphi 0, %s251
      %s266 = sphi 0, %s252
      %s270 = sphi 0, %s270
      %s272 = sphi 0, %s270
      %s273 = sphi 0, %s272
      %s287 = sphi 0, %s273
      %s293 = sphi 0, %s295
      %s296 = sphi 0, %s293
      %s297 = sphi 0, %s296
      %s313 = sphi 0, %s297
    $region4: #{deepsdf_like_forward.1} parent=1 // loop_header_branch
      %24 = sbr.rel (%p22) target = $region8
    $region5: #{deepsdf_like_forward.1} parent=1 // loop_body
      %s26 = ssub.s32 %s21, 1
      %s27 = ssub.s32 %s21, 2
      %s28 = sadd.s32 %s21, 1
      %s29 = ssub.s32 %s21, %s28
      %p30 = scmp.eq.s32.totalorder %s29, 0
      %s32 = sadd.s32 %s31, 1
      %s33 = scalar_select %p30, %s31, %s32
      %p36 = pneg %p30
      %p37 = scmp.eq.s32.totalorder %s21, 1
      %p38 = por %p36, %p37
      %p39 = scmp.ne.s32.totalorder %s31, %s34
      %p40 = scmp.eq.s32.totalorder %s21, 0
      %p41 = por %p39, %p40
      %p42 = scmp.ne.s32.totalorder %s31, %s34
      %p43 = scmp.eq.s32.totalorder %s26, 1
      %p44 = por %p42, %p43
      %p45 = scmp.ne.s32.totalorder %s34, %s35
      %p46 = scmp.eq.s32.totalorder %s26, 0
      %p47 = por %p45, %p46
      %p48 = scmp.ne.s32.totalorder %s34, %s35
      %p49 = scmp.eq.s32.totalorder %s27, 1
      %p50 = por %p48, %p49
      %p52 = scmp.ne.s32.totalorder %s35, %s51
      %p53 = scmp.eq.s32.totalorder %s27, 0
      %p54 = por %p52, %p53
      %s55 = ssub.s32 %s21, %s28
      %p56 = scmp.eq.s32.totalorder %s55, 0
      %s58 = sadd.s32 %s57, 1
      %s59 = scalar_select %p56, %s57, %s58
      %p62 = pneg %p56
      %p63 = scmp.eq.s32.totalorder %s21, 1
      %p64 = por %p62, %p63
      %p65 = scmp.ne.s32.totalorder %s57, %s60
      %p66 = scmp.eq.s32.totalorder %s21, 0
      %p67 = por %p65, %p66
      %p68 = scmp.ne.s32.totalorder %s57, %s60
      %p69 = scmp.eq.s32.totalorder %s26, 1
      %p70 = por %p68, %p69
      %p71 = scmp.ne.s32.totalorder %s60, %s61
      %p72 = scmp.eq.s32.totalorder %s26, 0
      %p73 = por %p71, %p72
      %p74 = scmp.ne.s32.totalorder %s60, %s61
      %p75 = scmp.eq.s32.totalorder %s27, 1
      %p76 = por %p74, %p75
      %p78 = scmp.ne.s32.totalorder %s61, %s77
      %p79 = scmp.eq.s32.totalorder %s27, 0
      %p80 = por %p78, %p79
      %s82 = sadd.s32 %s81, 1
      %p85 = scmp.eq.s32.totalorder %s21, 1
      %p86 = scmp.ne.s32.totalorder %s81, %s83
      %p87 = scmp.eq.s32.totalorder %s21, 0
      %p88 = por %p86, %p87
      %p89 = scmp.ne.s32.totalorder %s81, %s83
      %p90 = scmp.eq.s32.totalorder %s26, 1
      %p91 = por %p89, %p90
      %p92 = scmp.ne.s32.totalorder %s83, %s84
      %p93 = scmp.eq.s32.totalorder %s26, 0
      %p94 = por %p92, %p93
      %p95 = scmp.ne.s32.totalorder %s83, %s84
      %p96 = scmp.eq.s32.totalorder %s27, 1
      %p97 = por %p95, %p96
      %p99 = scmp.ne.s32.totalorder %s84, %s98
      %p100 = scmp.eq.s32.totalorder %s27, 0
      %p101 = por %p99, %p100
      %s103 = sadd.s32 %s102, 1
      %p106 = scmp.eq.s32.totalorder %s21, 1
      %p107 = scmp.ne.s32.totalorder %s102, %s104
      %p108 = scmp.eq.s32.totalorder %s21, 0
      %p109 = por %p107, %p108
      %p110 = scmp.ne.s32.totalorder %s102, %s104
      %p111 = scmp.eq.s32.totalorder %s26, 1
      %p112 = por %p110, %p111
      %p113 = scmp.ne.s32.totalorder %s104, %s105
      %p114 = scmp.eq.s32.totalorder %s26, 0
      %p115 = por %p113, %p114
      %p116 = scmp.ne.s32.totalorder %s104, %s105
      %p117 = scmp.eq.s32.totalorder %s27, 1
      %p118 = por %p116, %p117
      %p120 = scmp.ne.s32.totalorder %s105, %s119
      %p121 = scmp.eq.s32.totalorder %s27, 0
      %p122 = por %p120, %p121
      %s124 = sadd.s32 %s123, 1
      %p127 = scmp.eq.s32.totalorder %s21, 1
      %p128 = scmp.ne.s32.totalorder %s123, %s125
      %p129 = scmp.eq.s32.totalorder %s21, 0
      %p130 = por %p128, %p129
      %p131 = scmp.ne.s32.totalorder %s123, %s125
      %p132 = scmp.eq.s32.totalorder %s26, 1
      %p133 = por %p131, %p132
      %p134 = scmp.ne.s32.totalorder %s125, %s126
      %p135 = scmp.eq.s32.totalorder %s26, 0
      %p136 = por %p134, %p135
      %p137 = scmp.ne.s32.totalorder %s125, %s126
      %p138 = scmp.eq.s32.totalorder %s27, 1
      %p139 = por %p137, %p138
      %p141 = scmp.ne.s32.totalorder %s126, %s140
      %p142 = scmp.eq.s32.totalorder %s27, 0
      %p143 = por %p141, %p142
      %s145 = sadd.s32 %s144, 1
      %p148 = scmp.eq.s32.totalorder %s21, 1
      %p149 = scmp.ne.s32.totalorder %s144, %s146
      %p150 = scmp.eq.s32.totalorder %s21, 0
      %p151 = por %p149, %p150
      %p152 = scmp.ne.s32.totalorder %s144, %s146
      %p153 = scmp.eq.s32.totalorder %s26, 1
      %p154 = por %p152, %p153
      %p155 = scmp.ne.s32.totalorder %s146, %s147
      %p156 = scmp.eq.s32.totalorder %s26, 0
      %p157 = por %p155, %p156
      %p158 = scmp.ne.s32.totalorder %s146, %s147
      %p159 = scmp.eq.s32.totalorder %s27, 1
      %p160 = por %p158, %p159
      %p162 = scmp.ne.s32.totalorder %s147, %s161
      %p163 = scmp.eq.s32.totalorder %s27, 0
      %p164 = por %p162, %p163
      %s166 = sadd.s32 %s165, 1
      %p169 = scmp.eq.s32.totalorder %s21, 1
      %p170 = scmp.ne.s32.totalorder %s165, %s167
      %p171 = scmp.eq.s32.totalorder %s21, 0
      %p172 = por %p170, %p171
      %p173 = scmp.ne.s32.totalorder %s165, %s167
      %p174 = scmp.eq.s32.totalorder %s26, 1
      %p175 = por %p173, %p174
      %p176 = scmp.ne.s32.totalorder %s167, %s168
      %p177 = scmp.eq.s32.totalorder %s26, 0
      %p178 = por %p176, %p177
      %p179 = scmp.ne.s32.totalorder %s167, %s168
      %p180 = scmp.eq.s32.totalorder %s27, 1
      %p181 = por %p179, %p180
      %p183 = scmp.ne.s32.totalorder %s168, %s182
      %p184 = scmp.eq.s32.totalorder %s27, 0
      %p185 = por %p183, %p184
      %s187 = sadd.s32 %s186, 1
      %p190 = scmp.eq.s32.totalorder %s21, 1
      %p191 = scmp.ne.s32.totalorder %s186, %s188
      %p192 = scmp.eq.s32.totalorder %s21, 0
      %p193 = por %p191, %p192
      %p194 = scmp.ne.s32.totalorder %s186, %s188
      %p195 = scmp.eq.s32.totalorder %s26, 1
      %p196 = por %p194, %p195
      %p197 = scmp.ne.s32.totalorder %s188, %s189
      %p198 = scmp.eq.s32.totalorder %s26, 0
      %p199 = por %p197, %p198
      %p200 = scmp.ne.s32.totalorder %s188, %s189
      %p201 = scmp.eq.s32.totalorder %s27, 1
      %p202 = por %p200, %p201
      %p204 = scmp.ne.s32.totalorder %s189, %s203
      %p205 = scmp.eq.s32.totalorder %s27, 0
      %p206 = por %p204, %p205
      %s208 = sadd.s32 %s207, 1
      %p211 = scmp.eq.s32.totalorder %s21, 1
      %p212 = scmp.ne.s32.totalorder %s207, %s209
      %p213 = scmp.eq.s32.totalorder %s21, 0
      %p214 = por %p212, %p213
      %p215 = scmp.ne.s32.totalorder %s207, %s209
      %p216 = scmp.eq.s32.totalorder %s26, 1
      %p217 = por %p215, %p216
      %p218 = scmp.ne.s32.totalorder %s209, %s210
      %p219 = scmp.eq.s32.totalorder %s26, 0
      %p220 = por %p218, %p219
      %p221 = scmp.ne.s32.totalorder %s209, %s210
      %p222 = scmp.eq.s32.totalorder %s27, 1
      %p223 = por %p221, %p222
      %p225 = scmp.ne.s32.totalorder %s210, %s224
      %p226 = scmp.eq.s32.totalorder %s27, 0
      %p227 = por %p225, %p226
      %s229 = sadd.s32 %s228, 1
      %p232 = scmp.eq.s32.totalorder %s21, 1
      %p233 = scmp.ne.s32.totalorder %s228, %s230
      %p234 = scmp.eq.s32.totalorder %s21, 0
      %p235 = por %p233, %p234
      %p236 = scmp.ne.s32.totalorder %s228, %s230
      %p237 = scmp.eq.s32.totalorder %s26, 1
      %p238 = por %p236, %p237
      %p239 = scmp.ne.s32.totalorder %s230, %s231
      %p240 = scmp.eq.s32.totalorder %s26, 0
      %p241 = por %p239, %p240
      %p242 = scmp.ne.s32.totalorder %s230, %s231
      %p243 = scmp.eq.s32.totalorder %s27, 1
      %p244 = por %p242, %p243
      %p246 = scmp.ne.s32.totalorder %s231, %s245
      %p247 = scmp.eq.s32.totalorder %s27, 0
      %p248 = por %p246, %p247
      %s250 = sadd.s32 %s249, 1
      %p253 = scmp.eq.s32.totalorder %s21, 1
      %p254 = scmp.ne.s32.totalorder %s249, %s251
      %p255 = scmp.eq.s32.totalorder %s21, 0
      %p256 = por %p254, %p255
      %p257 = scmp.ne.s32.totalorder %s249, %s251
      %p258 = scmp.eq.s32.totalorder %s26, 1
      %p259 = por %p257, %p258
      %p260 = scmp.ne.s32.totalorder %s251, %s252
      %p261 = scmp.eq.s32.totalorder %s26, 0
      %p262 = por %p260, %p261
      %p263 = scmp.ne.s32.totalorder %s251, %s252
      %p264 = scmp.eq.s32.totalorder %s27, 1
      %p265 = por %p263, %p264
      %p267 = scmp.ne.s32.totalorder %s252, %s266
      %p268 = scmp.eq.s32.totalorder %s27, 0
      %p269 = por %p267, %p268
      %s271 = sadd.s32 %s270, 1
      %p274 = scmp.eq.s32.totalorder %s21, 1
      %p275 = scmp.ne.s32.totalorder %s270, %s272
      %p276 = scmp.eq.s32.totalorder %s21, 0
      %p277 = por %p275, %p276
      %p278 = scmp.ne.s32.totalorder %s270, %s272
      %p279 = scmp.eq.s32.totalorder %s26, 1
      %p280 = por %p278, %p279
      %p281 = scmp.ne.s32.totalorder %s272, %s273
      %p282 = scmp.eq.s32.totalorder %s26, 0
      %p283 = por %p281, %p282
      %p284 = scmp.ne.s32.totalorder %s272, %s273
      %p285 = scmp.eq.s32.totalorder %s27, 1
      %p286 = por %p284, %p285
      %p288 = scmp.ne.s32.totalorder %s273, %s287
      %p289 = scmp.eq.s32.totalorder %s27, 0
      %p290 = por %p288, %p289
      %s291 = ssub.s32 %s21, %s28
      %p292 = scmp.eq.s32.totalorder %s291, 0
      %s294 = sadd.s32 %s293, 1
      %s295 = scalar_select %p292, %s293, %s294
      %p298 = pneg %p292
      %p299 = scmp.eq.s32.totalorder %s21, 1
      %p300 = por %p298, %p299
      %p301 = scmp.ne.s32.totalorder %s293, %s296
      %p302 = scmp.eq.s32.totalorder %s21, 0
      %p303 = por %p301, %p302
      %p304 = scmp.ne.s32.totalorder %s293, %s296
      %p305 = scmp.eq.s32.totalorder %s26, 1
      %p306 = por %p304, %p305
      %p307 = scmp.ne.s32.totalorder %s296, %s297
      %p308 = scmp.eq.s32.totalorder %s26, 0
      %p309 = por %p307, %p308
      %p310 = scmp.ne.s32.totalorder %s296, %s297
      %p311 = scmp.eq.s32.totalorder %s27, 1
      %p312 = por %p310, %p311
      %p314 = scmp.ne.s32.totalorder %s297, %s313
      %p315 = scmp.eq.s32.totalorder %s27, 0
      %p316 = por %p314, %p315
      %p317 = scmp.le.s32.totalorder 1, %s21
      %p318 = scmp.lt.s32.totalorder %s21, 3
      %p319 = pnand %p317, %p318
      %p320 = pneg %p319
      // Predicated region
      $region9: #{deepsdf_like_forward.1} parent=5 // pred_check
        _
      $region10: #{deepsdf_like_forward.1} parent=5 // pred_check_branch
        %322 = sbr.rel (%p319) target = $region12
      $region11: #{deepsdf_like_forward.1} parent=5 // pred_region
        %s323 = ssub.s32 %s21, 1
        // Predicated region
        $region13: #{deepsdf_like_forward.1} parent=11 // pred_check
          %p324 = pneg %p94
        $region14: #{deepsdf_like_forward.1} parent=11 // pred_check_branch
          %326 = sbr.rel (%p324) target = $region16
        $region15: #{deepsdf_like_forward.1} parent=11 // pred_region
          %s328 = ssub.s32 2048, 2048
          %329 = vsyncadd [#allocation3], %s328
          %s330 = sshll.u32 [#allocation2], 4
          %s331 = int_to_ptr.vmem [resolvable:$true] %s330
          %336 = dma.hbm_to_vmem [thread:$0]  %s2, 2048, %s331, [#allocation3], 128, 128, 8
        $region16: #{deepsdf_like_forward.1} parent=11 // pred_fallthru
          _
        // Predicated region
        $region17: #{deepsdf_like_forward.1} parent=11 // pred_check
          %p337 = pneg %p115
        $region18: #{deepsdf_like_forward.1} parent=11 // pred_check_branch
          %339 = sbr.rel (%p337) target = $region20
        $region19: #{deepsdf_like_forward.1} parent=11 // pred_region
          _
        $region20: #{deepsdf_like_forward.1} parent=11 // pred_fallthru
          _
        // Predicated region
        $region21: #{deepsdf_like_forward.1} parent=11 // pred_check
          %p340 = pneg %p136
        $region22: #{deepsdf_like_forward.1} parent=11 // pred_check_branch
          %342 = sbr.rel (%p340) target = $region24
        $region23: #{deepsdf_like_forward.1} parent=11 // pred_region
          %s344 = ssub.s32 2048, 2048
          %345 = vsyncadd [#allocation5], %s344
          %s346 = sshll.u32 [#allocation4], 4
          %s347 = int_to_ptr.vmem [resolvable:$true] %s346
          %352 = dma.hbm_to_vmem [thread:$0]  %s4, 2048, %s347, [#allocation5], 64, 64, 4
        $region24: #{deepsdf_like_forward.1} parent=11 // pred_fallthru
          _
        // Predicated region
        $region25: #{deepsdf_like_forward.1} parent=11 // pred_check
          %p353 = pneg %p157
        $region26: #{deepsdf_like_forward.1} parent=11 // pred_check_branch
          %355 = sbr.rel (%p353) target = $region28
        $region27: #{deepsdf_like_forward.1} parent=11 // pred_region
          %s357 = ssub.s32 1024, 1024
          %358 = vsyncadd [#allocation5], %s357
          %s359 = sshll.u32 [#allocation6], 4
          %s360 = int_to_ptr.vmem [resolvable:$true] %s359
          %365 = dma.hbm_to_vmem [thread:$0]  %s5, 1024, %s360, [#allocation5], 64, 64, 4
        $region28: #{deepsdf_like_forward.1} parent=11 // pred_fallthru
          _
        // Predicated region
        $region29: #{deepsdf_like_forward.1} parent=11 // pred_check
          %p366 = pneg %p178
        $region30: #{deepsdf_like_forward.1} parent=11 // pred_check_branch
          %368 = sbr.rel (%p366) target = $region32
        $region31: #{deepsdf_like_forward.1} parent=11 // pred_region
          _
        $region32: #{deepsdf_like_forward.1} parent=11 // pred_fallthru
          _
        // Predicated region
        $region33: #{deepsdf_like_forward.1} parent=11 // pred_check
          %p369 = pneg %p199
        $region34: #{deepsdf_like_forward.1} parent=11 // pred_check_branch
          %371 = sbr.rel (%p369) target = $region36
        $region35: #{deepsdf_like_forward.1} parent=11 // pred_region
          _
        $region36: #{deepsdf_like_forward.1} parent=11 // pred_fallthru
          _
        // Predicated region
        $region37: #{deepsdf_like_forward.1} parent=11 // pred_check
          %p372 = pneg %p220
        $region38: #{deepsdf_like_forward.1} parent=11 // pred_check_branch
          %374 = sbr.rel (%p372) target = $region40
        $region39: #{deepsdf_like_forward.1} parent=11 // pred_region
          %s376 = ssub.s32 2048, 2048
          %377 = vsyncadd [#allocation8], %s376
          %s378 = sshll.u32 [#allocation7], 4
          %s379 = int_to_ptr.vmem [resolvable:$true] %s378
          %384 = dma.hbm_to_vmem [thread:$0]  %s8, 2048, %s379, [#allocation8], 512, 512, 32
        $region40: #{deepsdf_like_forward.1} parent=11 // pred_fallthru
          _
        // Predicated region
        $region41: #{deepsdf_like_forward.1} parent=11 // pred_check
          %p385 = pneg %p241
        $region42: #{deepsdf_like_forward.1} parent=11 // pred_check_branch
          %387 = sbr.rel (%p385) target = $region44
        $region43: #{deepsdf_like_forward.1} parent=11 // pred_region
          _
        $region44: #{deepsdf_like_forward.1} parent=11 // pred_fallthru
          _
        // Predicated region
        $region45: #{deepsdf_like_forward.1} parent=11 // pred_check
          %p388 = pneg %p262
        $region46: #{deepsdf_like_forward.1} parent=11 // pred_check_branch
          %390 = sbr.rel (%p388) target = $region48
        $region47: #{deepsdf_like_forward.1} parent=11 // pred_region
          _
        $region48: #{deepsdf_like_forward.1} parent=11 // pred_fallthru
          _
        // Predicated region
        $region49: #{deepsdf_like_forward.1} parent=11 // pred_check
          %p391 = pneg %p283
        $region50: #{deepsdf_like_forward.1} parent=11 // pred_check_branch
          %393 = sbr.rel (%p391) target = $region52
        $region51: #{deepsdf_like_forward.1} parent=11 // pred_region
          _
        $region52: #{deepsdf_like_forward.1} parent=11 // pred_fallthru
          _
      $region12: #{deepsdf_like_forward.1} parent=5 // pred_fallthru
        _
      %p394 = scmp.lt.s32.totalorder %s21, 2
      // Predicated region
      $region53: #{deepsdf_like_forward.1} parent=5 // pred_check
        %p395 = pneg %p394
      $region54: #{deepsdf_like_forward.1} parent=5 // pred_check_branch
        %397 = sbr.rel (%p395) target = $region56
      $region55: #{deepsdf_like_forward.1} parent=5 // pred_region
        // Predicated region
        $region57: #{deepsdf_like_forward.1} parent=55 // pred_check
          %p398 = pneg %p41
        $region58: #{deepsdf_like_forward.1} parent=55 // pred_check_branch
          %400 = sbr.rel (%p398) target = $region60
        $region59: #{deepsdf_like_forward.1} parent=55 // pred_region
          %s401 = smul.u32 32, %s21
          %s402 = ssub.s32 50, %s401
          %p403 = scmp.lt.s32.totalorder %s402, 32
          %s404 = scalar_select %p403, %s402, 32
          %s405 = smul.u32 128, %s404
          %p406 = scmp.lt.s32.totalorder %s401, 49
          %s407 = scalar_select %p406, %s401, 49
          %s408 = smul.addr %s407, 8
          %s409 = scalar_lea.vmem %s0, %s408
          %s410 = smul.u32 32, %s21
          %s411 = ssub.s32 50, %s410
          %p412 = scmp.lt.s32.totalorder %s411, 32
          %s413 = scalar_select %p412, %s411, 32
          %s414 = smul.u32 128, %s413
        $region60: #{deepsdf_like_forward.1} parent=55 // pred_fallthru
          _
        // Predicated region
        $region61: #{deepsdf_like_forward.1} parent=55 // pred_check
          %p415 = pneg %p67
        $region62: #{deepsdf_like_forward.1} parent=55 // pred_check_branch
          %417 = sbr.rel (%p415) target = $region64
        $region63: #{deepsdf_like_forward.1} parent=55 // pred_region
          %s418 = smul.u32 32, %s21
          %s419 = ssub.s32 50, %s418
          %p420 = scmp.lt.s32.totalorder %s419, 32
          %s421 = scalar_select %p420, %s419, 32
          %s422 = smul.u32 128, %s421
          %p423 = scmp.lt.s32.totalorder %s418, 49
          %s424 = scalar_select %p423, %s418, 49
          %s425 = smul.addr %s424, 8
          %s426 = scalar_lea.vmem %s1, %s425
          %s427 = smul.u32 32, %s21
          %s428 = ssub.s32 50, %s427
          %p429 = scmp.lt.s32.totalorder %s428, 32
          %s430 = scalar_select %p429, %s428, 32
          %s431 = smul.u32 128, %s430
        $region64: #{deepsdf_like_forward.1} parent=55 // pred_fallthru
          _
      $region56: #{deepsdf_like_forward.1} parent=5 // pred_fallthru
        _
      %p432 = scmp.le.s32.totalorder 1, %s21
      %p433 = scmp.lt.s32.totalorder %s21, 3
      %p434 = pnand %p432, %p433
      %p435 = pneg %p434
      // Predicated region
      $region65: #{deepsdf_like_forward.1} parent=5 // pred_check
        _
      $region66: #{deepsdf_like_forward.1} parent=5 // pred_check_branch
        %437 = sbr.rel (%p434) target = $region68
      $region67: #{deepsdf_like_forward.1} parent=5 // pred_region
        %s438 = ssub.s32 %s21, 1
        // Predicated region
        $region69: #{deepsdf_like_forward.1} parent=67 // pred_check
          %p439 = pneg %p94
        $region70: #{deepsdf_like_forward.1} parent=67 // pred_check_branch
          %441 = sbr.rel (%p439) target = $region72
        $region71: #{deepsdf_like_forward.1} parent=67 // pred_region
          %442 = dma.done [#allocation3], 2048
        $region72: #{deepsdf_like_forward.1} parent=67 // pred_fallthru
          _
        // Predicated region
        $region73: #{deepsdf_like_forward.1} parent=67 // pred_check
          %p443 = pneg %p136
        $region74: #{deepsdf_like_forward.1} parent=67 // pred_check_branch
          %445 = sbr.rel (%p443) target = $region76
        $region75: #{deepsdf_like_forward.1} parent=67 // pred_region
          %446 = dma.done [#allocation5], 2048
        $region76: #{deepsdf_like_forward.1} parent=67 // pred_fallthru
          _
        // Predicated region
        $region77: #{deepsdf_like_forward.1} parent=67 // pred_check
          %p447 = pneg %p157
        $region78: #{deepsdf_like_forward.1} parent=67 // pred_check_branch
          %449 = sbr.rel (%p447) target = $region80
        $region79: #{deepsdf_like_forward.1} parent=67 // pred_region
          %450 = dma.done [#allocation5], 1024
        $region80: #{deepsdf_like_forward.1} parent=67 // pred_fallthru
          _
        // Predicated region
        $region81: #{deepsdf_like_forward.1} parent=67 // pred_check
          %p451 = pneg %p220
        $region82: #{deepsdf_like_forward.1} parent=67 // pred_check_branch
          %453 = sbr.rel (%p451) target = $region84
        $region83: #{deepsdf_like_forward.1} parent=67 // pred_region
          %454 = dma.done [#allocation8], 2048
        $region84: #{deepsdf_like_forward.1} parent=67 // pred_fallthru
          _
        %s455 = smul.u32 32, %s26
        %s456 = ssub.s32 50, %s455
        %p457 = scmp.lt.s32.totalorder %s456, 32
        %s458 = scalar_select %p457, %s456, 32
        %s459 = smul.u32 128, %s458
        %p460 = scmp.lt.s32.totalorder %s455, 49
        %s461 = scalar_select %p460, %s455, 49
        %s462 = smul.addr %s461, 8
        %s463 = scalar_lea.vmem %s0, %s462
        %p464 = pneg %p47
        %p465 = pneg %p44
        %s466 = smul.u32 32, %s26
        %s467 = ssub.s32 50, %s466
        %p468 = scmp.lt.s32.totalorder %s467, 32
        %s469 = scalar_select %p468, %s467, 32
        %s470 = smul.u32 128, %s469
        %p471 = scmp.lt.s32.totalorder %s466, 49
        %s472 = scalar_select %p471, %s466, 49
        %s473 = smul.addr %s472, 8
        %s474 = scalar_lea.vmem %s1, %s473
        %p475 = pneg %p73
        %p476 = pneg %p70
        %p477 = pneg %p94
        %p478 = pneg %p91
        %p479 = pneg %p115
        %p480 = pneg %p112
        %p481 = pneg %p136
        %p482 = pneg %p133
        %p483 = pneg %p157
        %p484 = pneg %p154
        %p485 = pneg %p178
        %p486 = pneg %p175
        %p487 = pneg %p199
        %p488 = pneg %p196
        %p489 = pneg %p220
        %p490 = pneg %p217
        %p491 = pneg %p241
        %p492 = pneg %p238
        %p493 = pneg %p262
        %p494 = pneg %p259
        %p495 = pneg %p283
        %p496 = pneg %p280
        %p497 = pneg %p309
        %p498 = pneg %p306
        %s499 = sand.u32 %s296, 1
        %s500 = sand.u32 %s296, 1
        %s501 = smul.addr %s500, 128
        %s502 = scalar_lea.vmem [#allocation9], %s501
        %s503 = smul.u32 32, %s26
        %s504 = ssub.s32 50, %s503
        %p505 = scmp.lt.s32.totalorder %s504, 32
        %s506 = scalar_select %p505, %s504, 32
        %s507 = smul.u32 128, %s506
        %p508 = scmp.lt.s32.totalorder %s503, 49
        %s509 = scalar_select %p508, %s503, 49
        %s510 = smul.addr %s509, 8
        %s511 = scalar_lea.vmem %s0, %s510
        %s512 = smul.u32 32, %s26
        %s513 = ssub.s32 50, %s512
        %p514 = scmp.lt.s32.totalorder %s513, 32
        %s515 = scalar_select %p514, %s513, 32
        %s516 = smul.u32 128, %s515
        %s517 = smul.u32 32, %s26
        %s518 = ssub.s32 50, %s517
        %p519 = scmp.lt.s32.totalorder %s518, 32
        %s520 = scalar_select %p519, %s518, 32
        %s521 = smul.u32 128, %s520
        %p522 = scmp.lt.s32.totalorder %s517, 49
        %s523 = scalar_select %p522, %s517, 49
        %s524 = smul.addr %s523, 8
        %s525 = scalar_lea.vmem %s1, %s524
        %s526 = smul.u32 32, %s26
        %s527 = ssub.s32 50, %s526
        %p528 = scmp.lt.s32.totalorder %s527, 32
        %s529 = scalar_select %p528, %s527, 32
        %s530 = smul.u32 128, %s529
        %s531 = smul.u32 32, %s26
        %s532 = ssub.s32 50, %s531
        %p533 = scmp.lt.s32.totalorder %s532, 32
        %s534 = scalar_select %p533, %s532, 32
        %s535 = smul.u32 64, %s534
        %v537 = vld [vmem:[%s511] sm:$0xff]
        %v538 = vld [vmem:[%s511 + $0x8] sm:$0xff]
        %v539 = vld [vmem:[%s511 + $0x10] sm:$0xff]
        %v540 = vld [vmem:[%s511 + $0x18] sm:$0xff]
        %v541 = vld [vmem:[%s511 + $0x20] sm:$0xff]
        %v542 = vld [vmem:[%s511 + $0x28] sm:$0xff]
        %v543 = vld [vmem:[%s511 + $0x30] sm:$0xff]
        %v544 = vld [vmem:[%s511 + $0x38] sm:$0xff]
        %v545 = vld [vmem:[%s511 + $0x40] sm:$0xff]
        %v546 = vld [vmem:[%s511 + $0x48] sm:$0xff]
        %v547 = vld [vmem:[%s511 + $0x50] sm:$0xff]
        %v548 = vld [vmem:[%s511 + $0x58] sm:$0xff]
        %v549 = vld [vmem:[%s511 + $0x60] sm:$0xff]
        %v550 = vld [vmem:[%s511 + $0x68] sm:$0xff]
        %v551 = vld [vmem:[%s511 + $0x70] sm:$0xff]
        %v552 = vld [vmem:[%s511 + $0x78] sm:$0xff]
        %v553 = vld [vmem:[%s511 + $0x80] sm:$0xff]
        %v554 = vld [vmem:[%s511 + $0x88] sm:$0xff]
        %v555 = vld [vmem:[%s511 + $0x90] sm:$0xff]
        %v556 = vld [vmem:[%s511 + $0x98] sm:$0xff]
        %v557 = vld [vmem:[%s511 + $0xa0] sm:$0xff]
        %v558 = vld [vmem:[%s511 + $0xa8] sm:$0xff]
        %v559 = vld [vmem:[%s511 + $0xb0] sm:$0xff]
        %v560 = vld [vmem:[%s511 + $0xb8] sm:$0xff]
        %v561 = vld [vmem:[%s511 + $0xc0] sm:$0xff]
        %v562 = vld [vmem:[%s511 + $0xc8] sm:$0xff]
        %v563 = vld [vmem:[%s511 + $0xd0] sm:$0xff]
        %v564 = vld [vmem:[%s511 + $0xd8] sm:$0xff]
        %v565 = vld [vmem:[%s511 + $0xe0] sm:$0xff]
        %v566 = vld [vmem:[%s511 + $0xe8] sm:$0xff]
        %v567 = vld [vmem:[%s511 + $0xf0] sm:$0xff]
        %v568 = vld [vmem:[%s511 + $0xf8] sm:$0xff]
        %v569 = vpack.c.bf16 %v538, %v537
        %v570 = vpack.c.bf16 %v540, %v539
        %v571 = vpack.c.bf16 %v542, %v541
        %v572 = vpack.c.bf16 %v544, %v543
        %v573 = vpack.c.bf16 %v546, %v545
        %v574 = vpack.c.bf16 %v548, %v547
        %v575 = vpack.c.bf16 %v550, %v549
        %v576 = vpack.c.bf16 %v552, %v551
        %v577 = vpack.c.bf16 %v554, %v553
        %v578 = vpack.c.bf16 %v556, %v555
        %v579 = vpack.c.bf16 %v558, %v557
        %v580 = vpack.c.bf16 %v560, %v559
        %v581 = vpack.c.bf16 %v562, %v561
        %v582 = vpack.c.bf16 %v564, %v563
        %v583 = vpack.c.bf16 %v566, %v565
        %v584 = vpack.c.bf16 %v568, %v567
        %v585 = vld [vmem:[%s525] sm:$0xff]
        %v586 = vld [vmem:[%s525 + $0x8] sm:$0xff]
        %v587 = vld [vmem:[%s525 + $0x10] sm:$0xff]
        %v588 = vld [vmem:[%s525 + $0x18] sm:$0xff]
        %v589 = vld [vmem:[%s525 + $0x20] sm:$0xff]
        %v590 = vld [vmem:[%s525 + $0x28] sm:$0xff]
        %v591 = vld [vmem:[%s525 + $0x30] sm:$0xff]
        %v592 = vld [vmem:[%s525 + $0x38] sm:$0xff]
        %v593 = vld [vmem:[%s525 + $0x40] sm:$0xff]
        %v594 = vld [vmem:[%s525 + $0x48] sm:$0xff]
        %v595 = vld [vmem:[%s525 + $0x50] sm:$0xff]
        %v596 = vld [vmem:[%s525 + $0x58] sm:$0xff]
        %v597 = vld [vmem:[%s525 + $0x60] sm:$0xff]
        %v598 = vld [vmem:[%s525 + $0x68] sm:$0xff]
        %v599 = vld [vmem:[%s525 + $0x70] sm:$0xff]
        %v600 = vld [vmem:[%s525 + $0x78] sm:$0xff]
        %v601 = vld [vmem:[%s525 + $0x80] sm:$0xff]
        %v602 = vld [vmem:[%s525 + $0x88] sm:$0xff]
        %v603 = vld [vmem:[%s525 + $0x90] sm:$0xff]
        %v604 = vld [vmem:[%s525 + $0x98] sm:$0xff]
        %v605 = vld [vmem:[%s525 + $0xa0] sm:$0xff]
        %v606 = vld [vmem:[%s525 + $0xa8] sm:$0xff]
        %v607 = vld [vmem:[%s525 + $0xb0] sm:$0xff]
        %v608 = vld [vmem:[%s525 + $0xb8] sm:$0xff]
        %v609 = vld [vmem:[%s525 + $0xc0] sm:$0xff]
        %v610 = vld [vmem:[%s525 + $0xc8] sm:$0xff]
        %v611 = vld [vmem:[%s525 + $0xd0] sm:$0xff]
        %v612 = vld [vmem:[%s525 + $0xd8] sm:$0xff]
        %v613 = vld [vmem:[%s525 + $0xe0] sm:$0xff]
        %v614 = vld [vmem:[%s525 + $0xe8] sm:$0xff]
        %v615 = vld [vmem:[%s525 + $0xf0] sm:$0xff]
        %v616 = vld [vmem:[%s525 + $0xf8] sm:$0xff]
        %v617 = vpack.c.bf16 %v586, %v585
        %v618 = vpack.c.bf16 %v588, %v587
        %v619 = vpack.c.bf16 %v590, %v589
        %v620 = vpack.c.bf16 %v592, %v591
        %v621 = vpack.c.bf16 %v594, %v593
        %v622 = vpack.c.bf16 %v596, %v595
        %v623 = vpack.c.bf16 %v598, %v597
        %v624 = vpack.c.bf16 %v600, %v599
        %v625 = vpack.c.bf16 %v602, %v601
        %v626 = vpack.c.bf16 %v604, %v603
        %v627 = vpack.c.bf16 %v606, %v605
        %v628 = vpack.c.bf16 %v608, %v607
        %v629 = vpack.c.bf16 %v610, %v609
        %v630 = vpack.c.bf16 %v612, %v611
        %v631 = vpack.c.bf16 %v614, %v613
        %v632 = vpack.c.bf16 %v616, %v615
        %v633 = vld [vmem:[#allocation7] sm:$0xff]
        %v634 = vld [vmem:[#allocation7 + $0x8] sm:$0xff]
        %v635 = vld [vmem:[#allocation7 + $0x10] sm:$0xff]
        %v636 = vld [vmem:[#allocation7 + $0x18] sm:$0xff]
        %v637 = vld [vmem:[#allocation7 + $0x20] sm:$0xff]
        %v638 = vld [vmem:[#allocation7 + $0x28] sm:$0xff]
        %v639 = vld [vmem:[#allocation7 + $0x30] sm:$0xff]
        %v640 = vld [vmem:[#allocation7 + $0x38] sm:$0xff]
        %v641 = vld [vmem:[#allocation7 + $0x40] sm:$0xff]
        %v642 = vld [vmem:[#allocation7 + $0x48] sm:$0xff]
        %v643 = vld [vmem:[#allocation7 + $0x50] sm:$0xff]
        %v644 = vld [vmem:[#allocation7 + $0x58] sm:$0xff]
        %v645 = vld [vmem:[#allocation7 + $0x60] sm:$0xff]
        %v646 = vld [vmem:[#allocation7 + $0x68] sm:$0xff]
        %v647 = vld [vmem:[#allocation7 + $0x70] sm:$0xff]
        %v648 = vld [vmem:[#allocation7 + $0x78] sm:$0xff]
        %v649 = vld [vmem:[%s9] sm:$0xff]
        %v651 = vlaneseq
        %v652 = vshrl.u32 %v651, 7
        %v653 = vsub.s32 0, %v652
        %v654 = vrot.slane %v649, %v653
        %v655 = vlaneseq
        %v656 = vshrl.u32 %v655, 7
        %v657 = vsub.s32 1, %v656
        %v658 = vrot.slane %v649, %v657
        %v659 = vlaneseq
        %v660 = vshrl.u32 %v659, 7
        %v661 = vsub.s32 2, %v660
        %v662 = vrot.slane %v649, %v661
        %v663 = vlaneseq
        %v664 = vshrl.u32 %v663, 7
        %v665 = vsub.s32 3, %v664
        %v666 = vrot.slane %v649, %v665
        %v667 = vlaneseq
        %v668 = vshrl.u32 %v667, 7
        %v669 = vsub.s32 4, %v668
        %v670 = vrot.slane %v649, %v669
        %v671 = vlaneseq
        %v672 = vshrl.u32 %v671, 7
        %v673 = vsub.s32 5, %v672
        %v674 = vrot.slane %v649, %v673
        %v675 = vlaneseq
        %v676 = vshrl.u32 %v675, 7
        %v677 = vsub.s32 6, %v676
        %v678 = vrot.slane %v649, %v677
        %v679 = vlaneseq
        %v680 = vshrl.u32 %v679, 7
        %v681 = vsub.s32 7, %v680
        %v682 = vrot.slane %v649, %v681
        %v707 = vunpack.c.l.b16 %v633
        %v708 = vunpack.c.h.b16 %v633
        %v709 = vunpack.c.l.b16 %v634
        %v710 = vunpack.c.h.b16 %v634
        %v711 = vunpack.c.l.b16 %v635
        %v712 = vunpack.c.h.b16 %v635
        %v713 = vunpack.c.l.b16 %v636
        %v714 = vunpack.c.h.b16 %v636
        %v715 = vunpack.c.l.b16 %v637
        %v716 = vunpack.c.h.b16 %v637
        %v717 = vunpack.c.l.b16 %v638
        %v718 = vunpack.c.h.b16 %v638
        %v719 = vunpack.c.l.b16 %v639
        %v720 = vunpack.c.h.b16 %v639
        %v721 = vunpack.c.l.b16 %v640
        %v722 = vunpack.c.h.b16 %v640
        %v723 = vunpack.c.l.b16 %v641
        %v724 = vunpack.c.h.b16 %v641
        %v725 = vunpack.c.l.b16 %v642
        %v726 = vunpack.c.h.b16 %v642
        %v727 = vunpack.c.l.b16 %v643
        %v728 = vunpack.c.h.b16 %v643
        %v729 = vunpack.c.l.b16 %v644
        %v730 = vunpack.c.h.b16 %v644
        %v731 = vunpack.c.l.b16 %v645
        %v732 = vunpack.c.h.b16 %v645
        %v733 = vunpack.c.l.b16 %v646
        %v734 = vunpack.c.h.b16 %v646
        %v735 = vunpack.c.l.b16 %v647
        %v736 = vunpack.c.h.b16 %v647
        %v737 = vunpack.c.l.b16 %v648
        %v738 = vunpack.c.h.b16 %v648
        %v739 = vpack.c.b16 %v715, %v707
        %v740 = vpack.c.b16 %v716, %v708
        %v741 = vpack.c.b16 %v717, %v709
        %v742 = vpack.c.b16 %v718, %v710
        %v743 = vpack.c.b16 %v719, %v711
        %v744 = vpack.c.b16 %v720, %v712
        %v745 = vpack.c.b16 %v721, %v713
        %v746 = vpack.c.b16 %v722, %v714
        %v747 = vpack.c.b16 %v731, %v723
        %v748 = vpack.c.b16 %v732, %v724
        %v749 = vpack.c.b16 %v733, %v725
        %v750 = vpack.c.b16 %v734, %v726
        %v751 = vpack.c.b16 %v735, %v727
        %v752 = vpack.c.b16 %v736, %v728
        %v753 = vpack.c.b16 %v737, %v729
        %v754 = vpack.c.b16 %v738, %v730
        %vm771 = vcmask 261120
        %v773 = vsel %vm771, %v617, 0
        %v776 = vsel %vm771, %v618, 0
        %v779 = vsel %vm771, %v619, 0
        %v782 = vsel %vm771, %v620, 0
        %v785 = vsel %vm771, %v621, 0
        %v788 = vsel %vm771, %v622, 0
        %v791 = vsel %vm771, %v623, 0
        %v794 = vsel %vm771, %v624, 0
        %v797 = vsel %vm771, %v625, 0
        %v800 = vsel %vm771, %v626, 0
        %v803 = vsel %vm771, %v627, 0
        %v806 = vsel %vm771, %v628, 0
        %v809 = vsel %vm771, %v629, 0
        %v812 = vsel %vm771, %v630, 0
        %v815 = vsel %vm771, %v631, 0
        %v818 = vsel %vm771, %v632, 0
        %820 = vmatprep.subr.bf16.mxu0 %v740
        %821 = vmatpush1.bf16.msra.mxu0 %v739
        %822 = vmatprep.subr.bf16.mxu0 %v748
        %823 = vmatpush1.bf16.msra.mxu0 %v747
        %824 = vmatprep.subr.bf16.mxu0 0
        %825 = vmatpush1.bf16.msra.mxu0 0
        %826 = vmatprep.subr.bf16.mxu0 0
        %827 = vmatpush1.bf16.msra.mxu0 0
        %828 = vmatprep.subr.bf16.mxu0 0
        %829 = vmatpush1.bf16.msra.mxu0 0
        %830 = vmatprep.subr.bf16.mxu0 0
        %831 = vmatpush1.bf16.msra.mxu0 0
        %832 = vmatprep.subr.bf16.mxu0 0
        %833 = vmatpush1.bf16.msra.mxu0 0
        %834 = vmatprep.subr.bf16.mxu0 0
        %835 = vmatpush1.bf16.msra.mxu0 0
        %836 = vmatprep.subr.bf16.mxu0 0
        %837 = vmatpush1.bf16.msra.mxu0 0
        %838 = vmatprep.subr.bf16.mxu0 0
        %839 = vmatpush1.bf16.msra.mxu0 0
        %840 = vmatprep.subr.bf16.mxu0 0
        %841 = vmatpush1.bf16.msra.mxu0 0
        %842 = vmatprep.subr.bf16.mxu0 0
        %843 = vmatpush1.bf16.msra.mxu0 0
        %844 = vmatprep.subr.bf16.mxu0 0
        %845 = vmatpush1.bf16.msra.mxu0 0
        %846 = vmatprep.subr.bf16.mxu0 0
        %847 = vmatpush1.bf16.msra.mxu0 0
        %848 = vmatprep.subr.bf16.mxu0 0
        %849 = vmatpush1.bf16.msra.mxu0 0
        %850 = vmatprep.subr.bf16.mxu0 0
        %851 = vmatpush1.bf16.msra.mxu0 0
        %852 = vmatprep.mubr.bf16.mxu0 0
        %853 = vmatmul.mubr.bf16.gmra.mrb[0].mxu0 %v773
        %v854 = vpop.f32.mrb[0].mxu0
        %v855 = vadd.f32 %v654, %v854
        %v856 = vpop.f32.mrb[0].mxu0
        %v857 = vadd.f32 %v658, %v856
        %v858 = vpop.f32.mrb[0].mxu0
        %v859 = vadd.f32 %v654, %v858
        %v860 = vpop.f32.mrb[0].mxu0
        %v861 = vadd.f32 %v658, %v860
        %862 = vmatprep.mubr.bf16.mxu0 0
        %863 = vmatmul.mubr.bf16.gmra.mrb[0].mxu0 %v776
        %v864 = vpop.f32.mrb[0].mxu0
        %v865 = vadd.f32 %v654, %v864
        %v866 = vpop.f32.mrb[0].mxu0
        %v867 = vadd.f32 %v658, %v866
        %v868 = vpop.f32.mrb[0].mxu0
        %v869 = vadd.f32 %v654, %v868
        %v870 = vpop.f32.mrb[0].mxu0
        %v871 = vadd.f32 %v658, %v870
        %872 = vmatprep.mubr.bf16.mxu0 0
        %873 = vmatmul.mubr.bf16.gmra.mrb[0].mxu0 %v779
        %v874 = vpop.f32.mrb[0].mxu0
        %v875 = vadd.f32 %v654, %v874
        %v876 = vpop.f32.mrb[0].mxu0
        %v877 = vadd.f32 %v658, %v876
        %v878 = vpop.f32.mrb[0].mxu0
        %v879 = vadd.f32 %v654, %v878
        %v880 = vpop.f32.mrb[0].mxu0
        %v881 = vadd.f32 %v658, %v880
        %882 = vmatprep.mubr.bf16.mxu0 0
        %883 = vmatmul.mubr.bf16.gmra.mrb[0].mxu0 %v782
        %v884 = vpop.f32.mrb[0].mxu0
        %v885 = vadd.f32 %v654, %v884
        %v886 = vpop.f32.mrb[0].mxu0
        %v887 = vadd.f32 %v658, %v886
        %v888 = vpop.f32.mrb[0].mxu0
        %v889 = vadd.f32 %v654, %v888
        %v890 = vpop.f32.mrb[0].mxu0
        %v891 = vadd.f32 %v658, %v890
        %892 = vmatprep.mubr.bf16.mxu0 0
        %893 = vmatmul.mubr.bf16.gmra.mrb[0].mxu0 %v785
        %v894 = vpop.f32.mrb[0].mxu0
        %v895 = vadd.f32 %v654, %v894
        %v896 = vpop.f32.mrb[0].mxu0
        %v897 = vadd.f32 %v658, %v896
        %v898 = vpop.f32.mrb[0].mxu0
        %v899 = vadd.f32 %v654, %v898
        %v900 = vpop.f32.mrb[0].mxu0
        %v901 = vadd.f32 %v658, %v900
        %902 = vmatprep.mubr.bf16.mxu0 0
        %903 = vmatmul.mubr.bf16.gmra.mrb[0].mxu0 %v788
        %v904 = vpop.f32.mrb[0].mxu0
        %v905 = vadd.f32 %v654, %v904
        %v906 = vpop.f32.mrb[0].mxu0
        %v907 = vadd.f32 %v658, %v906
        %v908 = vpop.f32.mrb[0].mxu0
        %v909 = vadd.f32 %v654, %v908
        %v910 = vpop.f32.mrb[0].mxu0
        %v911 = vadd.f32 %v658, %v910
        %912 = vmatprep.mubr.bf16.mxu0 0
        %913 = vmatmul.mubr.bf16.gmra.mrb[0].mxu0 %v791
        %v914 = vpop.f32.mrb[0].mxu0
        %v915 = vadd.f32 %v654, %v914
        %v916 = vpop.f32.mrb[0].mxu0
        %v917 = vadd.f32 %v658, %v916
        %v918 = vpop.f32.mrb[0].mxu0
        %v919 = vadd.f32 %v654, %v918
        %v920 = vpop.f32.mrb[0].mxu0
        %v921 = vadd.f32 %v658, %v920
        %922 = vmatprep.mubr.bf16.mxu0 0
        %923 = vmatmul.mubr.bf16.gmra.mrb[0].mxu0 %v794
        %v924 = vpop.f32.mrb[0].mxu0
        %v925 = vadd.f32 %v654, %v924
        %v926 = vpop.f32.mrb[0].mxu0
        %v927 = vadd.f32 %v658, %v926
        %v928 = vpop.f32.mrb[0].mxu0
        %v929 = vadd.f32 %v654, %v928
        %v930 = vpop.f32.mrb[0].mxu0
        %v931 = vadd.f32 %v658, %v930
        %932 = vmatprep.mubr.bf16.mxu0 0
        %933 = vmatmul.mubr.bf16.gmra.mrb[0].mxu0 %v797
        %v934 = vpop.f32.mrb[0].mxu0
        %v935 = vadd.f32 %v654, %v934
        %v936 = vpop.f32.mrb[0].mxu0
        %v937 = vadd.f32 %v658, %v936
        %v938 = vpop.f32.mrb[0].mxu0
        %v939 = vadd.f32 %v654, %v938
        %v940 = vpop.f32.mrb[0].mxu0
        %v941 = vadd.f32 %v658, %v940
        %942 = vmatprep.mubr.bf16.mxu0 0
        %943 = vmatmul.mubr.bf16.gmra.mrb[0].mxu0 %v800
        %v944 = vpop.f32.mrb[0].mxu0
        %v945 = vadd.f32 %v654, %v944
        %v946 = vpop.f32.mrb[0].mxu0
        %v947 = vadd.f32 %v658, %v946
        %v948 = vpop.f32.mrb[0].mxu0
        %v949 = vadd.f32 %v654, %v948
        %v950 = vpop.f32.mrb[0].mxu0
        %v951 = vadd.f32 %v658, %v950
        %952 = vmatprep.mubr.bf16.mxu0 0
        %953 = vmatmul.mubr.bf16.gmra.mrb[0].mxu0 %v803
        %v954 = vpop.f32.mrb[0].mxu0
        %v955 = vadd.f32 %v654, %v954
        %v956 = vpop.f32.mrb[0].mxu0
        %v957 = vadd.f32 %v658, %v956
        %v958 = vpop.f32.mrb[0].mxu0
        %v959 = vadd.f32 %v654, %v958
        %v960 = vpop.f32.mrb[0].mxu0
        %v961 = vadd.f32 %v658, %v960
        %962 = vmatprep.mubr.bf16.mxu0 0
        %963 = vmatmul.mubr.bf16.gmra.mrb[0].mxu0 %v806
        %v964 = vpop.f32.mrb[0].mxu0
        %v965 = vadd.f32 %v654, %v964
        %v966 = vpop.f32.mrb[0].mxu0
        %v967 = vadd.f32 %v658, %v966
        %v968 = vpop.f32.mrb[0].mxu0
        %v969 = vadd.f32 %v654, %v968
        %v970 = vpop.f32.mrb[0].mxu0
        %v971 = vadd.f32 %v658, %v970
        %972 = vmatprep.mubr.bf16.mxu0 0
        %973 = vmatmul.mubr.bf16.gmra.mrb[0].mxu0 %v809
        %v974 = vpop.f32.mrb[0].mxu0
        %v975 = vadd.f32 %v654, %v974
        %v976 = vpop.f32.mrb[0].mxu0
        %v977 = vadd.f32 %v658, %v976
        %v978 = vpop.f32.mrb[0].mxu0
        %v979 = vadd.f32 %v654, %v978
        %v980 = vpop.f32.mrb[0].mxu0
        %v981 = vadd.f32 %v658, %v980
        %982 = vmatprep.mubr.bf16.mxu0 0
        %983 = vmatmul.mubr.bf16.gmra.mrb[0].mxu0 %v812
        %v984 = vpop.f32.mrb[0].mxu0
        %v985 = vadd.f32 %v654, %v984
        %v986 = vpop.f32.mrb[0].mxu0
        %v987 = vadd.f32 %v658, %v986
        %v988 = vpop.f32.mrb[0].mxu0
        %v989 = vadd.f32 %v654, %v988
        %v990 = vpop.f32.mrb[0].mxu0
        %v991 = vadd.f32 %v658, %v990
        %992 = vmatprep.mubr.bf16.mxu0 0
        %993 = vmatmul.mubr.bf16.gmra.mrb[0].mxu0 %v815
        %v994 = vpop.f32.mrb[0].mxu0
        %v995 = vadd.f32 %v654, %v994
        %v996 = vpop.f32.mrb[0].mxu0
        %v997 = vadd.f32 %v658, %v996
        %v998 = vpop.f32.mrb[0].mxu0
        %v999 = vadd.f32 %v654, %v998
        %v1000 = vpop.f32.mrb[0].mxu0
        %v1001 = vadd.f32 %v658, %v1000
        %1002 = vmatprep.mubr.bf16.mxu0 0
        %1003 = vmatmul.mubr.bf16.gmra.mrb[0].mxu0 %v818
        %v1004 = vpop.f32.mrb[0].mxu0
        %v1005 = vadd.f32 %v654, %v1004
        %v1006 = vpop.f32.mrb[0].mxu0
        %v1007 = vadd.f32 %v658, %v1006
        %v1008 = vpop.f32.mrb[0].mxu0
        %v1009 = vadd.f32 %v654, %v1008
        %v1010 = vpop.f32.mrb[0].mxu0
        %v1011 = vadd.f32 %v658, %v1010
        %1012 = vdwg.mxu0
        %1013 = vmatprep.subr.bf16.mxu0 %v742
        %1014 = vmatpush1.bf16.msra.mxu0 %v741
        %1015 = vmatprep.subr.bf16.mxu0 %v750
        %1016 = vmatpush1.bf16.msra.mxu0 %v749
        %1017 = vmatprep.subr.bf16.mxu0 0
        %1018 = vmatpush1.bf16.msra.mxu0 0
        %1019 = vmatprep.subr.bf16.mxu0 0
        %1020 = vmatpush1.bf16.msra.mxu0 0
        %1021 = vmatprep.subr.bf16.mxu0 0
        %1022 = vmatpush1.bf16.msra.mxu0 0
        %1023 = vmatprep.subr.bf16.mxu0 0
        %1024 = vmatpush1.bf16.msra.mxu0 0
        %1025 = vmatprep.subr.bf16.mxu0 0
        %1026 = vmatpush1.bf16.msra.mxu0 0
        %1027 = vmatprep.subr.bf16.mxu0 0
        %1028 = vmatpush1.bf16.msra.mxu0 0
        %1029 = vmatprep.subr.bf16.mxu0 0
        %1030 = vmatpush1.bf16.msra.mxu0 0
        %1031 = vmatprep.subr.bf16.mxu0 0
        %1032 = vmatpush1.bf16.msra.mxu0 0
        %1033 = vmatprep.subr.bf16.mxu0 0
        %1034 = vmatpush1.bf16.msra.mxu0 0
        %1035 = vmatprep.subr.bf16.mxu0 0
        %1036 = vmatpush1.bf16.msra.mxu0 0
        %1037 = vmatprep.subr.bf16.mxu0 0
        %1038 = vmatpush1.bf16.msra.mxu0 0
        %1039 = vmatprep.subr.bf16.mxu0 0
        %1040 = vmatpush1.bf16.msra.mxu0 0
        %1041 = vmatprep.subr.bf16.mxu0 0
        %1042 = vmatpush1.bf16.msra.mxu0 0
        %1043 = vmatprep.subr.bf16.mxu0 0
        %1044 = vmatpush1.bf16.msra.mxu0 0
        %1045 = vmatprep.mubr.bf16.mxu0 0
        %1046 = vmatmul.mubr.bf16.gmra.mrb[0].mxu0 %v773
        %v1047 = vpop.f32.mrb[0].mxu0
        %v1048 = vadd.f32 %v662, %v1047
        %v1049 = vpop.f32.mrb[0].mxu0
        %v1050 = vadd.f32 %v666, %v1049
        %v1051 = vpop.f32.mrb[0].mxu0
        %v1052 = vadd.f32 %v662, %v1051
        %v1053 = vpop.f32.mrb[0].mxu0
        %v1054 = vadd.f32 %v666, %v1053
        %1055 = vmatprep.mubr.bf16.mxu0 0
        %1056 = vmatmul.mubr.bf16.gmra.mrb[0].mxu0 %v776
        %v1057 = vpop.f32.mrb[0].mxu0
        %v1058 = vadd.f32 %v662, %v1057
        %v1059 = vpop.f32.mrb[0].mxu0
        %v1060 = vadd.f32 %v666, %v1059
        %v1061 = vpop.f32.mrb[0].mxu0
        %v1062 = vadd.f32 %v662, %v1061
        %v1063 = vpop.f32.mrb[0].mxu0
        %v1064 = vadd.f32 %v666, %v1063
        %1065 = vmatprep.mubr.bf16.mxu0 0
        %1066 = vmatmul.mubr.bf16.gmra.mrb[0].mxu0 %v779
        %v1067 = vpop.f32.mrb[0].mxu0
        %v1068 = vadd.f32 %v662, %v1067
        %v1069 = vpop.f32.mrb[0].mxu0
        %v1070 = vadd.f32 %v666, %v1069
        %v1071 = vpop.f32.mrb[0].mxu0
        %v1072 = vadd.f32 %v662, %v1071
        %v1073 = vpop.f32.mrb[0].mxu0
        %v1074 = vadd.f32 %v666, %v1073
        %1075 = vmatprep.mubr.bf16.mxu0 0
        %1076 = vmatmul.mubr.bf16.gmra.mrb[0].mxu0 %v782
        %v1077 = vpop.f32.mrb[0].mxu0
        %v1078 = vadd.f32 %v662, %v1077
        %v1079 = vpop.f32.mrb[0].mxu0
        %v1080 = vadd.f32 %v666, %v1079
        %v1081 = vpop.f32.mrb[0].mxu0
        %v1082 = vadd.f32 %v662, %v1081
        %v1083 = vpop.f32.mrb[0].mxu0
        %v1084 = vadd.f32 %v666, %v1083
        %1085 = vmatprep.mubr.bf16.mxu0 0
        %1086 = vmatmul.mubr.bf16.gmra.mrb[0].mxu0 %v785
        %v1087 = vpop.f32.mrb[0].mxu0
        %v1088 = vadd.f32 %v662, %v1087
        %v1089 = vpop.f32.mrb[0].mxu0
        %v1090 = vadd.f32 %v666, %v1089
        %v1091 = vpop.f32.mrb[0].mxu0
        %v1092 = vadd.f32 %v662, %v1091
        %v1093 = vpop.f32.mrb[0].mxu0
        %v1094 = vadd.f32 %v666, %v1093
        %1095 = vmatprep.mubr.bf16.mxu0 0
        %1096 = vmatmul.mubr.bf16.gmra.mrb[0].mxu0 %v788
        %v1097 = vpop.f32.mrb[0].mxu0
        %v1098 = vadd.f32 %v662, %v1097
        %v1099 = vpop.f32.mrb[0].mxu0
        %v1100 = vadd.f32 %v666, %v1099
        %v1101 = vpop.f32.mrb[0].mxu0
        %v1102 = vadd.f32 %v662, %v1101
        %v1103 = vpop.f32.mrb[0].mxu0
        %v1104 = vadd.f32 %v666, %v1103
        %1105 = vmatprep.mubr.bf16.mxu0 0
        %1106 = vmatmul.mubr.bf16.gmra.mrb[0].mxu0 %v791
        %v1107 = vpop.f32.mrb[0].mxu0
        %v1108 = vadd.f32 %v662, %v1107
        %v1109 = vpop.f32.mrb[0].mxu0
        %v1110 = vadd.f32 %v666, %v1109
        %v1111 = vpop.f32.mrb[0].mxu0
        %v1112 = vadd.f32 %v662, %v1111
        %v1113 = vpop.f32.mrb[0].mxu0
        %v1114 = vadd.f32 %v666, %v1113
        %1115 = vmatprep.mubr.bf16.mxu0 0
        %1116 = vmatmul.mubr.bf16.gmra.mrb[0].mxu0 %v794
        %v1117 = vpop.f32.mrb[0].mxu0
        %v1118 = vadd.f32 %v662, %v1117
        %v1119 = vpop.f32.mrb[0].mxu0
        %v1120 = vadd.f32 %v666, %v1119
        %v1121 = vpop.f32.mrb[0].mxu0
        %v1122 = vadd.f32 %v662, %v1121
        %v1123 = vpop.f32.mrb[0].mxu0
        %v1124 = vadd.f32 %v666, %v1123
        %1125 = vmatprep.mubr.bf16.mxu0 0
        %1126 = vmatmul.mubr.bf16.gmra.mrb[0].mxu0 %v797
        %v1127 = vpop.f32.mrb[0].mxu0
        %v1128 = vadd.f32 %v662, %v1127
        %v1129 = vpop.f32.mrb[0].mxu0
        %v1130 = vadd.f32 %v666, %v1129
        %v1131 = vpop.f32.mrb[0].mxu0
        %v1132 = vadd.f32 %v662, %v1131
        %v1133 = vpop.f32.mrb[0].mxu0
        %v1134 = vadd.f32 %v666, %v1133
        %1135 = vmatprep.mubr.bf16.mxu0 0
        %1136 = vmatmul.mubr.bf16.gmra.mrb[0].mxu0 %v800
        %v1137 = vpop.f32.mrb[0].mxu0
        %v1138 = vadd.f32 %v662, %v1137
        %v1139 = vpop.f32.mrb[0].mxu0
        %v1140 = vadd.f32 %v666, %v1139
        %v1141 = vpop.f32.mrb[0].mxu0
        %v1142 = vadd.f32 %v662, %v1141
        %v1143 = vpop.f32.mrb[0].mxu0
        %v1144 = vadd.f32 %v666, %v1143
        %1145 = vmatprep.mubr.bf16.mxu0 0
        %1146 = vmatmul.mubr.bf16.gmra.mrb[0].mxu0 %v803
        %v1147 = vpop.f32.mrb[0].mxu0
        %v1148 = vadd.f32 %v662, %v1147
        %v1149 = vpop.f32.mrb[0].mxu0
        %v1150 = vadd.f32 %v666, %v1149
        %v1151 = vpop.f32.mrb[0].mxu0
        %v1152 = vadd.f32 %v662, %v1151
        %v1153 = vpop.f32.mrb[0].mxu0
        %v1154 = vadd.f32 %v666, %v1153
        %1155 = vmatprep.mubr.bf16.mxu0 0
        %1156 = vmatmul.mubr.bf16.gmra.mrb[0].mxu0 %v806
        %v1157 = vpop.f32.mrb[0].mxu0
        %v1158 = vadd.f32 %v662, %v1157
        %v1159 = vpop.f32.mrb[0].mxu0
        %v1160 = vadd.f32 %v666, %v1159
        %v1161 = vpop.f32.mrb[0].mxu0
        %v1162 = vadd.f32 %v662, %v1161
        %v1163 = vpop.f32.mrb[0].mxu0
        %v1164 = vadd.f32 %v666, %v1163
        %1165 = vmatprep.mubr.bf16.mxu0 0
        %1166 = vmatmul.mubr.bf16.gmra.mrb[0].mxu0 %v809
        %v1167 = vpop.f32.mrb[0].mxu0
        %v1168 = vadd.f32 %v662, %v1167
        %v1169 = vpop.f32.mrb[0].mxu0
        %v1170 = vadd.f32 %v666, %v1169
        %v1171 = vpop.f32.mrb[0].mxu0
        %v1172 = vadd.f32 %v662, %v1171
        %v1173 = vpop.f32.mrb[0].mxu0
        %v1174 = vadd.f32 %v666, %v1173
        %1175 = vmatprep.mubr.bf16.mxu0 0
        %1176 = vmatmul.mubr.bf16.gmra.mrb[0].mxu0 %v812
        %v1177 = vpop.f32.mrb[0].mxu0
        %v1178 = vadd.f32 %v662, %v1177
        %v1179 = vpop.f32.mrb[0].mxu0
        %v1180 = vadd.f32 %v666, %v1179
        %v1181 = vpop.f32.mrb[0].mxu0
        %v1182 = vadd.f32 %v662, %v1181
        %v1183 = vpop.f32.mrb[0].mxu0
        %v1184 = vadd.f32 %v666, %v1183
        %1185 = vmatprep.mubr.bf16.mxu0 0
        %1186 = vmatmul.mubr.bf16.gmra.mrb[0].mxu0 %v815
        %v1187 = vpop.f32.mrb[0].mxu0
        %v1188 = vadd.f32 %v662, %v1187
        %v1189 = vpop.f32.mrb[0].mxu0
        %v1190 = vadd.f32 %v666, %v1189
        %v1191 = vpop.f32.mrb[0].mxu0
        %v1192 = vadd.f32 %v662, %v1191
        %v1193 = vpop.f32.mrb[0].mxu0
        %v1194 = vadd.f32 %v666, %v1193
        %1195 = vmatprep.mubr.bf16.mxu0 0
        %1196 = vmatmul.mubr.bf16.gmra.mrb[0].mxu0 %v818
        %v1197 = vpop.f32.mrb[0].mxu0
        %v1198 = vadd.f32 %v662, %v1197
        %v1199 = vpop.f32.mrb[0].mxu0
        %v1200 = vadd.f32 %v666, %v1199
        %v1201 = vpop.f32.mrb[0].mxu0
        %v1202 = vadd.f32 %v662, %v1201
        %v1203 = vpop.f32.mrb[0].mxu0
        %v1204 = vadd.f32 %v666, %v1203
        %1205 = vdwg.mxu0
        %1206 = vmatprep.subr.bf16.mxu0 %v744
        %1207 = vmatpush1.bf16.msra.mxu0 %v743
        %1208 = vmatprep.subr.bf16.mxu0 %v752
        %1209 = vmatpush1.bf16.msra.mxu0 %v751
        %1210 = vmatprep.subr.bf16.mxu0 0
        %1211 = vmatpush1.bf16.msra.mxu0 0
        %1212 = vmatprep.subr.bf16.mxu0 0
        %1213 = vmatpush1.bf16.msra.mxu0 0
        %1214 = vmatprep.subr.bf16.mxu0 0
        %1215 = vmatpush1.bf16.msra.mxu0 0
        %1216 = vmatprep.subr.bf16.mxu0 0
        %1217 = vmatpush1.bf16.msra.mxu0 0
        %1218 = vmatprep.subr.bf16.mxu0 0
        %1219 = vmatpush1.bf16.msra.mxu0 0
        %1220 = vmatprep.subr.bf16.mxu0 0
        %1221 = vmatpush1.bf16.msra.mxu0 0
        %1222 = vmatprep.subr.bf16.mxu0 0
        %1223 = vmatpush1.bf16.msra.mxu0 0
        %1224 = vmatprep.subr.bf16.mxu0 0
        %1225 = vmatpush1.bf16.msra.mxu0 0
        %1226 = vmatprep.subr.bf16.mxu0 0
        %1227 = vmatpush1.bf16.msra.mxu0 0
        %1228 = vmatprep.subr.bf16.mxu0 0
        %1229 = vmatpush1.bf16.msra.mxu0 0
        %1230 = vmatprep.subr.bf16.mxu0 0
        %1231 = vmatpush1.bf16.msra.mxu0 0
        %1232 = vmatprep.subr.bf16.mxu0 0
        %1233 = vmatpush1.bf16.msra.mxu0 0
        %1234 = vmatprep.subr.bf16.mxu0 0
        %1235 = vmatpush1.bf16.msra.mxu0 0
        %1236 = vmatprep.subr.bf16.mxu0 0
        %1237 = vmatpush1.bf16.msra.mxu0 0
        %1238 = vmatprep.mubr.bf16.mxu0 0
        %1239 = vmatmul.mubr.bf16.gmra.mrb[0].mxu0 %v773
        %v1240 = vpop.f32.mrb[0].mxu0
        %v1241 = vadd.f32 %v670, %v1240
        %v1242 = vpop.f32.mrb[0].mxu0
        %v1243 = vadd.f32 %v674, %v1242
        %v1244 = vpop.f32.mrb[0].mxu0
        %v1245 = vadd.f32 %v670, %v1244
        %v1246 = vpop.f32.mrb[0].mxu0
        %v1247 = vadd.f32 %v674, %v1246
        %1248 = vmatprep.mubr.bf16.mxu0 0
        %1249 = vmatmul.mubr.bf16.gmra.mrb[0].mxu0 %v776
        %v1250 = vpop.f32.mrb[0].mxu0
        %v1251 = vadd.f32 %v670, %v1250
        %v1252 = vpop.f32.mrb[0].mxu0
        %v1253 = vadd.f32 %v674, %v1252
        %v1254 = vpop.f32.mrb[0].mxu0
        %v1255 = vadd.f32 %v670, %v1254
        %v1256 = vpop.f32.mrb[0].mxu0
        %v1257 = vadd.f32 %v674, %v1256
        %1258 = vmatprep.mubr.bf16.mxu0 0
        %1259 = vmatmul.mubr.bf16.gmra.mrb[0].mxu0 %v779
        %v1260 = vpop.f32.mrb[0].mxu0
        %v1261 = vadd.f32 %v670, %v1260
        %v1262 = vpop.f32.mrb[0].mxu0
        %v1263 = vadd.f32 %v674, %v1262
        %v1264 = vpop.f32.mrb[0].mxu0
        %v1265 = vadd.f32 %v670, %v1264
        %v1266 = vpop.f32.mrb[0].mxu0
        %v1267 = vadd.f32 %v674, %v1266
        %1268 = vmatprep.mubr.bf16.mxu0 0
        %1269 = vmatmul.mubr.bf16.gmra.mrb[0].mxu0 %v782
        %v1270 = vpop.f32.mrb[0].mxu0
        %v1271 = vadd.f32 %v670, %v1270
        %v1272 = vpop.f32.mrb[0].mxu0
        %v1273 = vadd.f32 %v674, %v1272
        %v1274 = vpop.f32.mrb[0].mxu0
        %v1275 = vadd.f32 %v670, %v1274
        %v1276 = vpop.f32.mrb[0].mxu0
        %v1277 = vadd.f32 %v674, %v1276
        %1278 = vmatprep.mubr.bf16.mxu0 0
        %1279 = vmatmul.mubr.bf16.gmra.mrb[0].mxu0 %v785
        %v1280 = vpop.f32.mrb[0].mxu0
        %v1281 = vadd.f32 %v670, %v1280
        %v1282 = vpop.f32.mrb[0].mxu0
        %v1283 = vadd.f32 %v674, %v1282
        %v1284 = vpop.f32.mrb[0].mxu0
        %v1285 = vadd.f32 %v670, %v1284
        %v1286 = vpop.f32.mrb[0].mxu0
        %v1287 = vadd.f32 %v674, %v1286
        %1288 = vmatprep.mubr.bf16.mxu0 0
        %1289 = vmatmul.mubr.bf16.gmra.mrb[0].mxu0 %v788
        %v1290 = vpop.f32.mrb[0].mxu0
        %v1291 = vadd.f32 %v670, %v1290
        %v1292 = vpop.f32.mrb[0].mxu0
        %v1293 = vadd.f32 %v674, %v1292
        %v1294 = vpop.f32.mrb[0].mxu0
        %v1295 = vadd.f32 %v670, %v1294
        %v1296 = vpop.f32.mrb[0].mxu0
        %v1297 = vadd.f32 %v674, %v1296
        %1298 = vmatprep.mubr.bf16.mxu0 0
        %1299 = vmatmul.mubr.bf16.gmra.mrb[0].mxu0 %v791
        %v1300 = vpop.f32.mrb[0].mxu0
        %v1301 = vadd.f32 %v670, %v1300
        %v1302 = vpop.f32.mrb[0].mxu0
        %v1303 = vadd.f32 %v674, %v1302
        %v1304 = vpop.f32.mrb[0].mxu0
        %v1305 = vadd.f32 %v670, %v1304
        %v1306 = vpop.f32.mrb[0].mxu0
        %v1307 = vadd.f32 %v674, %v1306
        %1308 = vmatprep.mubr.bf16.mxu0 0
        %1309 = vmatmul.mubr.bf16.gmra.mrb[0].mxu0 %v794
        %v1310 = vpop.f32.mrb[0].mxu0
        %v1311 = vadd.f32 %v670, %v1310
        %v1312 = vpop.f32.mrb[0].mxu0
        %v1313 = vadd.f32 %v674, %v1312
        %v1314 = vpop.f32.mrb[0].mxu0
        %v1315 = vadd.f32 %v670, %v1314
        %v1316 = vpop.f32.mrb[0].mxu0
        %v1317 = vadd.f32 %v674, %v1316
        %1318 = vmatprep.mubr.bf16.mxu0 0
        %1319 = vmatmul.mubr.bf16.gmra.mrb[0].mxu0 %v797
        %v1320 = vpop.f32.mrb[0].mxu0
        %v1321 = vadd.f32 %v670, %v1320
        %v1322 = vpop.f32.mrb[0].mxu0
        %v1323 = vadd.f32 %v674, %v1322
        %v1324 = vpop.f32.mrb[0].mxu0
        %v1325 = vadd.f32 %v670, %v1324
        %v1326 = vpop.f32.mrb[0].mxu0
        %v1327 = vadd.f32 %v674, %v1326
        %1328 = vmatprep.mubr.bf16.mxu0 0
        %1329 = vmatmul.mubr.bf16.gmra.mrb[0].mxu0 %v800
        %v1330 = vpop.f32.mrb[0].mxu0
        %v1331 = vadd.f32 %v670, %v1330
        %v1332 = vpop.f32.mrb[0].mxu0
        %v1333 = vadd.f32 %v674, %v1332
        %v1334 = vpop.f32.mrb[0].mxu0
        %v1335 = vadd.f32 %v670, %v1334
        %v1336 = vpop.f32.mrb[0].mxu0
        %v1337 = vadd.f32 %v674, %v1336
        %1338 = vmatprep.mubr.bf16.mxu0 0
        %1339 = vmatmul.mubr.bf16.gmra.mrb[0].mxu0 %v803
        %v1340 = vpop.f32.mrb[0].mxu0
        %v1341 = vadd.f32 %v670, %v1340
        %v1342 = vpop.f32.mrb[0].mxu0
        %v1343 = vadd.f32 %v674, %v1342
        %v1344 = vpop.f32.mrb[0].mxu0
        %v1345 = vadd.f32 %v670, %v1344
        %v1346 = vpop.f32.mrb[0].mxu0
        %v1347 = vadd.f32 %v674, %v1346
        %1348 = vmatprep.mubr.bf16.mxu0 0
        %1349 = vmatmul.mubr.bf16.gmra.mrb[0].mxu0 %v806
        %v1350 = vpop.f32.mrb[0].mxu0
        %v1351 = vadd.f32 %v670, %v1350
        %v1352 = vpop.f32.mrb[0].mxu0
        %v1353 = vadd.f32 %v674, %v1352
        %v1354 = vpop.f32.mrb[0].mxu0
        %v1355 = vadd.f32 %v670, %v1354
        %v1356 = vpop.f32.mrb[0].mxu0
        %v1357 = vadd.f32 %v674, %v1356
        %1358 = vmatprep.mubr.bf16.mxu0 0
        %1359 = vmatmul.mubr.bf16.gmra.mrb[0].mxu0 %v809
        %v1360 = vpop.f32.mrb[0].mxu0
        %v1361 = vadd.f32 %v670, %v1360
        %v1362 = vpop.f32.mrb[0].mxu0
        %v1363 = vadd.f32 %v674, %v1362
        %v1364 = vpop.f32.mrb[0].mxu0
        %v1365 = vadd.f32 %v670, %v1364
        %v1366 = vpop.f32.mrb[0].mxu0
        %v1367 = vadd.f32 %v674, %v1366
        %1368 = vmatprep.mubr.bf16.mxu0 0
        %1369 = vmatmul.mubr.bf16.gmra.mrb[0].mxu0 %v812
        %v1370 = vpop.f32.mrb[0].mxu0
        %v1371 = vadd.f32 %v670, %v1370
        %v1372 = vpop.f32.mrb[0].mxu0
        %v1373 = vadd.f32 %v674, %v1372
        %v1374 = vpop.f32.mrb[0].mxu0
        %v1375 = vadd.f32 %v670, %v1374
        %v1376 = vpop.f32.mrb[0].mxu0
        %v1377 = vadd.f32 %v674, %v1376
        %1378 = vmatprep.mubr.bf16.mxu0 0
        %1379 = vmatmul.mubr.bf16.gmra.mrb[0].mxu0 %v815
        %v1380 = vpop.f32.mrb[0].mxu0
        %v1381 = vadd.f32 %v670, %v1380
        %v1382 = vpop.f32.mrb[0].mxu0
        %v1383 = vadd.f32 %v674, %v1382
        %v1384 = vpop.f32.mrb[0].mxu0
        %v1385 = vadd.f32 %v670, %v1384
        %v1386 = vpop.f32.mrb[0].mxu0
        %v1387 = vadd.f32 %v674, %v1386
        %1388 = vmatprep.mubr.bf16.mxu0 0
        %1389 = vmatmul.mubr.bf16.gmra.mrb[0].mxu0 %v818
        %v1390 = vpop.f32.mrb[0].mxu0
        %v1391 = vadd.f32 %v670, %v1390
        %v1392 = vpop.f32.mrb[0].mxu0
        %v1393 = vadd.f32 %v674, %v1392
        %v1394 = vpop.f32.mrb[0].mxu0
        %v1395 = vadd.f32 %v670, %v1394
        %v1396 = vpop.f32.mrb[0].mxu0
        %v1397 = vadd.f32 %v674, %v1396
        %1398 = vdwg.mxu0
        %1399 = vmatprep.subr.bf16.mxu0 %v746
        %1400 = vmatpush1.bf16.msra.mxu0 %v745
        %1401 = vmatprep.subr.bf16.mxu0 %v754
        %1402 = vmatpush1.bf16.msra.mxu0 %v753
        %1403 = vmatprep.subr.bf16.mxu0 0
        %1404 = vmatpush1.bf16.msra.mxu0 0
        %1405 = vmatprep.subr.bf16.mxu0 0
        %1406 = vmatpush1.bf16.msra.mxu0 0
        %1407 = vmatprep.subr.bf16.mxu0 0
        %1408 = vmatpush1.bf16.msra.mxu0 0
        %1409 = vmatprep.subr.bf16.mxu0 0
        %1410 = vmatpush1.bf16.msra.mxu0 0
        %1411 = vmatprep.subr.bf16.mxu0 0
        %1412 = vmatpush1.bf16.msra.mxu0 0
        %1413 = vmatprep.subr.bf16.mxu0 0
        %1414 = vmatpush1.bf16.msra.mxu0 0
        %1415 = vmatprep.subr.bf16.mxu0 0
        %1416 = vmatpush1.bf16.msra.mxu0 0
        %1417 = vmatprep.subr.bf16.mxu0 0
        %1418 = vmatpush1.bf16.msra.mxu0 0
        %1419 = vmatprep.subr.bf16.mxu0 0
        %1420 = vmatpush1.bf16.msra.mxu0 0
        %1421 = vmatprep.subr.bf16.mxu0 0
        %1422 = vmatpush1.bf16.msra.mxu0 0
        %1423 = vmatprep.subr.bf16.mxu0 0
        %1424 = vmatpush1.bf16.msra.mxu0 0
        %1425 = vmatprep.subr.bf16.mxu0 0
        %1426 = vmatpush1.bf16.msra.mxu0 0
        %1427 = vmatprep.subr.bf16.mxu0 0
        %1428 = vmatpush1.bf16.msra.mxu0 0
        %1429 = vmatprep.subr.bf16.mxu0 0
        %1430 = vmatpush1.bf16.msra.mxu0 0
        %1431 = vmatprep.mubr.bf16.mxu0 0
        %1432 = vmatmul.mubr.bf16.gmra.mrb[0].mxu0 %v773
        %v1433 = vpop.f32.mrb[0].mxu0
        %v1434 = vadd.f32 %v678, %v1433
        %v1435 = vpop.f32.mrb[0].mxu0
        %v1436 = vadd.f32 %v682, %v1435
        %v1437 = vpop.f32.mrb[0].mxu0
        %v1438 = vadd.f32 %v678, %v1437
        %v1439 = vpop.f32.mrb[0].mxu0
        %v1440 = vadd.f32 %v682, %v1439
        %1441 = vmatprep.mubr.bf16.mxu0 0
        %1442 = vmatmul.mubr.bf16.gmra.mrb[0].mxu0 %v776
        %v1443 = vpop.f32.mrb[0].mxu0
        %v1444 = vadd.f32 %v678, %v1443
        %v1445 = vpop.f32.mrb[0].mxu0
        %v1446 = vadd.f32 %v682, %v1445
        %v1447 = vpop.f32.mrb[0].mxu0
        %v1448 = vadd.f32 %v678, %v1447
        %v1449 = vpop.f32.mrb[0].mxu0
        %v1450 = vadd.f32 %v682, %v1449
        %1451 = vmatprep.mubr.bf16.mxu0 0
        %1452 = vmatmul.mubr.bf16.gmra.mrb[0].mxu0 %v779
        %v1453 = vpop.f32.mrb[0].mxu0
        %v1454 = vadd.f32 %v678, %v1453
        %v1455 = vpop.f32.mrb[0].mxu0
        %v1456 = vadd.f32 %v682, %v1455
        %v1457 = vpop.f32.mrb[0].mxu0
        %v1458 = vadd.f32 %v678, %v1457
        %v1459 = vpop.f32.mrb[0].mxu0
        %v1460 = vadd.f32 %v682, %v1459
        %1461 = vmatprep.mubr.bf16.mxu0 0
        %1462 = vmatmul.mubr.bf16.gmra.mrb[0].mxu0 %v782
        %v1463 = vpop.f32.mrb[0].mxu0
        %v1464 = vadd.f32 %v678, %v1463
        %v1465 = vpop.f32.mrb[0].mxu0
        %v1466 = vadd.f32 %v682, %v1465
        %v1467 = vpop.f32.mrb[0].mxu0
        %v1468 = vadd.f32 %v678, %v1467
        %v1469 = vpop.f32.mrb[0].mxu0
        %v1470 = vadd.f32 %v682, %v1469
        %1471 = vmatprep.mubr.bf16.mxu0 0
        %1472 = vmatmul.mubr.bf16.gmra.mrb[0].mxu0 %v785
        %v1473 = vpop.f32.mrb[0].mxu0
        %v1474 = vadd.f32 %v678, %v1473
        %v1475 = vpop.f32.mrb[0].mxu0
        %v1476 = vadd.f32 %v682, %v1475
        %v1477 = vpop.f32.mrb[0].mxu0
        %v1478 = vadd.f32 %v678, %v1477
        %v1479 = vpop.f32.mrb[0].mxu0
        %v1480 = vadd.f32 %v682, %v1479
        %1481 = vmatprep.mubr.bf16.mxu0 0
        %1482 = vmatmul.mubr.bf16.gmra.mrb[0].mxu0 %v788
        %v1483 = vpop.f32.mrb[0].mxu0
        %v1484 = vadd.f32 %v678, %v1483
        %v1485 = vpop.f32.mrb[0].mxu0
        %v1486 = vadd.f32 %v682, %v1485
        %v1487 = vpop.f32.mrb[0].mxu0
        %v1488 = vadd.f32 %v678, %v1487
        %v1489 = vpop.f32.mrb[0].mxu0
        %v1490 = vadd.f32 %v682, %v1489
        %1491 = vmatprep.mubr.bf16.mxu0 0
        %1492 = vmatmul.mubr.bf16.gmra.mrb[0].mxu0 %v791
        %v1493 = vpop.f32.mrb[0].mxu0
        %v1494 = vadd.f32 %v678, %v1493
        %v1495 = vpop.f32.mrb[0].mxu0
        %v1496 = vadd.f32 %v682, %v1495
        %v1497 = vpop.f32.mrb[0].mxu0
        %v1498 = vadd.f32 %v678, %v1497
        %v1499 = vpop.f32.mrb[0].mxu0
        %v1500 = vadd.f32 %v682, %v1499
        %1501 = vmatprep.mubr.bf16.mxu0 0
        %1502 = vmatmul.mubr.bf16.gmra.mrb[0].mxu0 %v794
        %v1503 = vpop.f32.mrb[0].mxu0
        %v1504 = vadd.f32 %v678, %v1503
        %v1505 = vpop.f32.mrb[0].mxu0
        %v1506 = vadd.f32 %v682, %v1505
        %v1507 = vpop.f32.mrb[0].mxu0
        %v1508 = vadd.f32 %v678, %v1507
        %v1509 = vpop.f32.mrb[0].mxu0
        %v1510 = vadd.f32 %v682, %v1509
        %1511 = vmatprep.mubr.bf16.mxu0 0
        %1512 = vmatmul.mubr.bf16.gmra.mrb[0].mxu0 %v797
        %v1513 = vpop.f32.mrb[0].mxu0
        %v1514 = vadd.f32 %v678, %v1513
        %v1515 = vpop.f32.mrb[0].mxu0
        %v1516 = vadd.f32 %v682, %v1515
        %v1517 = vpop.f32.mrb[0].mxu0
        %v1518 = vadd.f32 %v678, %v1517
        %v1519 = vpop.f32.mrb[0].mxu0
        %v1520 = vadd.f32 %v682, %v1519
        %1521 = vmatprep.mubr.bf16.mxu0 0
        %1522 = vmatmul.mubr.bf16.gmra.mrb[0].mxu0 %v800
        %v1523 = vpop.f32.mrb[0].mxu0
        %v1524 = vadd.f32 %v678, %v1523
        %v1525 = vpop.f32.mrb[0].mxu0
        %v1526 = vadd.f32 %v682, %v1525
        %v1527 = vpop.f32.mrb[0].mxu0
        %v1528 = vadd.f32 %v678, %v1527
        %v1529 = vpop.f32.mrb[0].mxu0
        %v1530 = vadd.f32 %v682, %v1529
        %1531 = vmatprep.mubr.bf16.mxu0 0
        %1532 = vmatmul.mubr.bf16.gmra.mrb[0].mxu0 %v803
        %v1533 = vpop.f32.mrb[0].mxu0
        %v1534 = vadd.f32 %v678, %v1533
        %v1535 = vpop.f32.mrb[0].mxu0
        %v1536 = vadd.f32 %v682, %v1535
        %v1537 = vpop.f32.mrb[0].mxu0
        %v1538 = vadd.f32 %v678, %v1537
        %v1539 = vpop.f32.mrb[0].mxu0
        %v1540 = vadd.f32 %v682, %v1539
        %1541 = vmatprep.mubr.bf16.mxu0 0
        %1542 = vmatmul.mubr.bf16.gmra.mrb[0].mxu0 %v806
        %v1543 = vpop.f32.mrb[0].mxu0
        %v1544 = vadd.f32 %v678, %v1543
        %v1545 = vpop.f32.mrb[0].mxu0
        %v1546 = vadd.f32 %v682, %v1545
        %v1547 = vpop.f32.mrb[0].mxu0
        %v1548 = vadd.f32 %v678, %v1547
        %v1549 = vpop.f32.mrb[0].mxu0
        %v1550 = vadd.f32 %v682, %v1549
        %1551 = vmatprep.mubr.bf16.mxu0 0
        %1552 = vmatmul.mubr.bf16.gmra.mrb[0].mxu0 %v809
        %v1553 = vpop.f32.mrb[0].mxu0
        %v1554 = vadd.f32 %v678, %v1553
        %v1555 = vpop.f32.mrb[0].mxu0
        %v1556 = vadd.f32 %v682, %v1555
        %v1557 = vpop.f32.mrb[0].mxu0
        %v1558 = vadd.f32 %v678, %v1557
        %v1559 = vpop.f32.mrb[0].mxu0
        %v1560 = vadd.f32 %v682, %v1559
        %1561 = vmatprep.mubr.bf16.mxu0 0
        %1562 = vmatmul.mubr.bf16.gmra.mrb[0].mxu0 %v812
        %v1563 = vpop.f32.mrb[0].mxu0
        %v1564 = vadd.f32 %v678, %v1563
        %v1565 = vpop.f32.mrb[0].mxu0
        %v1566 = vadd.f32 %v682, %v1565
        %v1567 = vpop.f32.mrb[0].mxu0
        %v1568 = vadd.f32 %v678, %v1567
        %v1569 = vpop.f32.mrb[0].mxu0
        %v1570 = vadd.f32 %v682, %v1569
        %1571 = vmatprep.mubr.bf16.mxu0 0
        %1572 = vmatmul.mubr.bf16.gmra.mrb[0].mxu0 %v815
        %v1573 = vpop.f32.mrb[0].mxu0
        %v1574 = vadd.f32 %v678, %v1573
        %v1575 = vpop.f32.mrb[0].mxu0
        %v1576 = vadd.f32 %v682, %v1575
        %v1577 = vpop.f32.mrb[0].mxu0
        %v1578 = vadd.f32 %v678, %v1577
        %v1579 = vpop.f32.mrb[0].mxu0
        %v1580 = vadd.f32 %v682, %v1579
        %1581 = vmatprep.mubr.bf16.mxu0 0
        %1582 = vmatmul.mubr.bf16.gmra.mrb[0].mxu0 %v818
        %v1583 = vpop.f32.mrb[0].mxu0
        %v1584 = vadd.f32 %v678, %v1583
        %v1585 = vpop.f32.mrb[0].mxu0
        %v1586 = vadd.f32 %v682, %v1585
        %v1587 = vpop.f32.mrb[0].mxu0
        %v1588 = vadd.f32 %v678, %v1587
        %v1589 = vpop.f32.mrb[0].mxu0
        %v1590 = vadd.f32 %v682, %v1589
        %1591 = vdwg.mxu0
        %v1592 = vpack.c.bf16 %v859, %v855
        %v1593 = vpack.c.bf16 %v861, %v857
        %v1594 = vpack.c.bf16 %v1052, %v1048
        %v1595 = vpack.c.bf16 %v1054, %v1050
        %v1596 = vpack.c.bf16 %v1245, %v1241
        %v1597 = vpack.c.bf16 %v1247, %v1243
        %v1598 = vpack.c.bf16 %v1438, %v1434
        %v1599 = vpack.c.bf16 %v1440, %v1436
        %v1600 = vpack.c.bf16 %v869, %v865
        %v1601 = vpack.c.bf16 %v871, %v867
        %v1602 = vpack.c.bf16 %v1062, %v1058
        %v1603 = vpack.c.bf16 %v1064, %v1060
        %v1604 = vpack.c.bf16 %v1255, %v1251
        %v1605 = vpack.c.bf16 %v1257, %v1253
        %v1606 = vpack.c.bf16 %v1448, %v1444
        %v1607 = vpack.c.bf16 %v1450, %v1446
        %v1608 = vpack.c.bf16 %v879, %v875
        %v1609 = vpack.c.bf16 %v881, %v877
        %v1610 = vpack.c.bf16 %v1072, %v1068
        %v1611 = vpack.c.bf16 %v1074, %v1070
        %v1612 = vpack.c.bf16 %v1265, %v1261
        %v1613 = vpack.c.bf16 %v1267, %v1263
        %v1614 = vpack.c.bf16 %v1458, %v1454
        %v1615 = vpack.c.bf16 %v1460, %v1456
        %v1616 = vpack.c.bf16 %v889, %v885
        %v1617 = vpack.c.bf16 %v891, %v887
        %v1618 = vpack.c.bf16 %v1082, %v1078
        %v1619 = vpack.c.bf16 %v1084, %v1080
        %v1620 = vpack.c.bf16 %v1275, %v1271
        %v1621 = vpack.c.bf16 %v1277, %v1273
        %v1622 = vpack.c.bf16 %v1468, %v1464
        %v1623 = vpack.c.bf16 %v1470, %v1466
        %v1624 = vpack.c.bf16 %v899, %v895
        %v1625 = vpack.c.bf16 %v901, %v897
        %v1626 = vpack.c.bf16 %v1092, %v1088
        %v1627 = vpack.c.bf16 %v1094, %v1090
        %v1628 = vpack.c.bf16 %v1285, %v1281
        %v1629 = vpack.c.bf16 %v1287, %v1283
        %v1630 = vpack.c.bf16 %v1478, %v1474
        %v1631 = vpack.c.bf16 %v1480, %v1476
        %v1632 = vpack.c.bf16 %v909, %v905
        %v1633 = vpack.c.bf16 %v911, %v907
        %v1634 = vpack.c.bf16 %v1102, %v1098
        %v1635 = vpack.c.bf16 %v1104, %v1100
        %v1636 = vpack.c.bf16 %v1295, %v1291
        %v1637 = vpack.c.bf16 %v1297, %v1293
        %v1638 = vpack.c.bf16 %v1488, %v1484
        %v1639 = vpack.c.bf16 %v1490, %v1486
        %v1640 = vpack.c.bf16 %v919, %v915
        %v1641 = vpack.c.bf16 %v921, %v917
        %v1642 = vpack.c.bf16 %v1112, %v1108
        %v1643 = vpack.c.bf16 %v1114, %v1110
        %v1644 = vpack.c.bf16 %v1305, %v1301
        %v1645 = vpack.c.bf16 %v1307, %v1303
        %v1646 = vpack.c.bf16 %v1498, %v1494
        %v1647 = vpack.c.bf16 %v1500, %v1496
        %v1648 = vpack.c.bf16 %v929, %v925
        %v1649 = vpack.c.bf16 %v931, %v927
        %v1650 = vpack.c.bf16 %v1122, %v1118
        %v1651 = vpack.c.bf16 %v1124, %v1120
        %v1652 = vpack.c.bf16 %v1315, %v1311
        %v1653 = vpack.c.bf16 %v1317, %v1313
        %v1654 = vpack.c.bf16 %v1508, %v1504
        %v1655 = vpack.c.bf16 %v1510, %v1506
        %v1656 = vpack.c.bf16 %v939, %v935
        %v1657 = vpack.c.bf16 %v941, %v937
        %v1658 = vpack.c.bf16 %v1132, %v1128
        %v1659 = vpack.c.bf16 %v1134, %v1130
        %v1660 = vpack.c.bf16 %v1325, %v1321
        %v1661 = vpack.c.bf16 %v1327, %v1323
        %v1662 = vpack.c.bf16 %v1518, %v1514
        %v1663 = vpack.c.bf16 %v1520, %v1516
        %v1664 = vpack.c.bf16 %v949, %v945
        %v1665 = vpack.c.bf16 %v951, %v947
        %v1666 = vpack.c.bf16 %v1142, %v1138
        %v1667 = vpack.c.bf16 %v1144, %v1140
        %v1668 = vpack.c.bf16 %v1335, %v1331
        %v1669 = vpack.c.bf16 %v1337, %v1333
        %v1670 = vpack.c.bf16 %v1528, %v1524
        %v1671 = vpack.c.bf16 %v1530, %v1526
        %v1672 = vpack.c.bf16 %v959, %v955
        %v1673 = vpack.c.bf16 %v961, %v957
        %v1674 = vpack.c.bf16 %v1152, %v1148
        %v1675 = vpack.c.bf16 %v1154, %v1150
        %v1676 = vpack.c.bf16 %v1345, %v1341
        %v1677 = vpack.c.bf16 %v1347, %v1343
        %v1678 = vpack.c.bf16 %v1538, %v1534
        %v1679 = vpack.c.bf16 %v1540, %v1536
        %v1680 = vpack.c.bf16 %v969, %v965
        %v1681 = vpack.c.bf16 %v971, %v967
        %v1682 = vpack.c.bf16 %v1162, %v1158
        %v1683 = vpack.c.bf16 %v1164, %v1160
        %v1684 = vpack.c.bf16 %v1355, %v1351
        %v1685 = vpack.c.bf16 %v1357, %v1353
        %v1686 = vpack.c.bf16 %v1548, %v1544
        %v1687 = vpack.c.bf16 %v1550, %v1546
        %v1688 = vpack.c.bf16 %v979, %v975
        %v1689 = vpack.c.bf16 %v981, %v977
        %v1690 = vpack.c.bf16 %v1172, %v1168
        %v1691 = vpack.c.bf16 %v1174, %v1170
        %v1692 = vpack.c.bf16 %v1365, %v1361
        %v1693 = vpack.c.bf16 %v1367, %v1363
        %v1694 = vpack.c.bf16 %v1558, %v1554
        %v1695 = vpack.c.bf16 %v1560, %v1556
        %v1696 = vpack.c.bf16 %v989, %v985
        %v1697 = vpack.c.bf16 %v991, %v987
        %v1698 = vpack.c.bf16 %v1182, %v1178
        %v1699 = vpack.c.bf16 %v1184, %v1180
        %v1700 = vpack.c.bf16 %v1375, %v1371
        %v1701 = vpack.c.bf16 %v1377, %v1373
        %v1702 = vpack.c.bf16 %v1568, %v1564
        %v1703 = vpack.c.bf16 %v1570, %v1566
        %v1704 = vpack.c.bf16 %v999, %v995
        %v1705 = vpack.c.bf16 %v1001, %v997
        %v1706 = vpack.c.bf16 %v1192, %v1188
        %v1707 = vpack.c.bf16 %v1194, %v1190
        %v1708 = vpack.c.bf16 %v1385, %v1381
        %v1709 = vpack.c.bf16 %v1387, %v1383
        %v1710 = vpack.c.bf16 %v1578, %v1574
        %v1711 = vpack.c.bf16 %v1580, %v1576
        %v1712 = vpack.c.bf16 %v1009, %v1005
        %v1713 = vpack.c.bf16 %v1011, %v1007
        %v1714 = vpack.c.bf16 %v1202, %v1198
        %v1715 = vpack.c.bf16 %v1204, %v1200
        %v1716 = vpack.c.bf16 %v1395, %v1391
        %v1717 = vpack.c.bf16 %v1397, %v1393
        %v1718 = vpack.c.bf16 %v1588, %v1584
        %v1719 = vpack.c.bf16 %v1590, %v1586
        %v1720 = vld [vmem:[#allocation2] sm:$0xff]
        %v1721 = vld [vmem:[#allocation2 + $0x8] sm:$0xff]
        %v1722 = vld [vmem:[#allocation2 + $0x10] sm:$0xff]
        %v1723 = vld [vmem:[#allocation2 + $0x18] sm:$0xff]
        %v1724 = vld [vmem:[#allocation2 + $0x20] sm:$0xff]
        %v1725 = vld [vmem:[#allocation2 + $0x28] sm:$0xff]
        %v1726 = vld [vmem:[#allocation2 + $0x30] sm:$0xff]
        %v1727 = vld [vmem:[#allocation2 + $0x38] sm:$0xff]
        %v1728 = vld [vmem:[#allocation2 + $0x40] sm:$0xff]
        %v1729 = vld [vmem:[#allocation2 + $0x48] sm:$0xff]
        %v1730 = vld [vmem:[#allocation2 + $0x50] sm:$0xff]
        %v1731 = vld [vmem:[#allocation2 + $0x58] sm:$0xff]
        %v1732 = vld [vmem:[#allocation2 + $0x60] sm:$0xff]
        %v1733 = vld [vmem:[#allocation2 + $0x68] sm:$0xff]
        %v1734 = vld [vmem:[#allocation2 + $0x70] sm:$0xff]
        %v1735 = vld [vmem:[#allocation2 + $0x78] sm:$0xff]
        %v1736 = vunpack.c.l.bf16 %v1592
        %v1737 = vunpack.c.l.bf16 %v1593
        %v1738 = vunpack.c.h.bf16 %v1592
        %v1739 = vunpack.c.h.bf16 %v1593
        %v1740 = vunpack.c.l.bf16 %v1600
        %v1741 = vunpack.c.l.bf16 %v1601
        %v1742 = vunpack.c.h.bf16 %v1600
        %v1743 = vunpack.c.h.bf16 %v1601
        %v1744 = vunpack.c.l.bf16 %v1608
        %v1745 = vunpack.c.l.bf16 %v1609
        %v1746 = vunpack.c.h.bf16 %v1608
        %v1747 = vunpack.c.h.bf16 %v1609
        %v1748 = vunpack.c.l.bf16 %v1616
        %v1749 = vunpack.c.l.bf16 %v1617
        %v1750 = vunpack.c.h.bf16 %v1616
        %v1751 = vunpack.c.h.bf16 %v1617
        %v1752 = vunpack.c.l.bf16 %v1624
        %v1753 = vunpack.c.l.bf16 %v1625
        %v1754 = vunpack.c.h.bf16 %v1624
        %v1755 = vunpack.c.h.bf16 %v1625
        %v1756 = vunpack.c.l.bf16 %v1632
        %v1757 = vunpack.c.l.bf16 %v1633
        %v1758 = vunpack.c.h.bf16 %v1632
        %v1759 = vunpack.c.h.bf16 %v1633
        %v1760 = vunpack.c.l.bf16 %v1640
        %v1761 = vunpack.c.l.bf16 %v1641
        %v1762 = vunpack.c.h.bf16 %v1640
        %v1763 = vunpack.c.h.bf16 %v1641
        %v1764 = vunpack.c.l.bf16 %v1648
        %v1765 = vunpack.c.l.bf16 %v1649
        %v1766 = vunpack.c.h.bf16 %v1648
        %v1767 = vunpack.c.h.bf16 %v1649
        %v1768 = vunpack.c.l.bf16 %v1656
        %v1769 = vunpack.c.l.bf16 %v1657
        %v1770 = vunpack.c.h.bf16 %v1656
        %v1771 = vunpack.c.h.bf16 %v1657
        %v1772 = vunpack.c.l.bf16 %v1664
        %v1773 = vunpack.c.l.bf16 %v1665
        %v1774 = vunpack.c.h.bf16 %v1664
        %v1775 = vunpack.c.h.bf16 %v1665
        %v1776 = vunpack.c.l.bf16 %v1672
        %v1777 = vunpack.c.l.bf16 %v1673
        %v1778 = vunpack.c.h.bf16 %v1672
        %v1779 = vunpack.c.h.bf16 %v1673
        %v1780 = vunpack.c.l.bf16 %v1680
        %v1781 = vunpack.c.l.bf16 %v1681
        %v1782 = vunpack.c.h.bf16 %v1680
        %v1783 = vunpack.c.h.bf16 %v1681
        %v1784 = vunpack.c.l.bf16 %v1688
        %v1785 = vunpack.c.l.bf16 %v1689
        %v1786 = vunpack.c.h.bf16 %v1688
        %v1787 = vunpack.c.h.bf16 %v1689
        %v1788 = vunpack.c.l.bf16 %v1696
        %v1789 = vunpack.c.l.bf16 %v1697
        %v1790 = vunpack.c.h.bf16 %v1696
        %v1791 = vunpack.c.h.bf16 %v1697
        %v1792 = vunpack.c.l.bf16 %v1704
        %v1793 = vunpack.c.l.bf16 %v1705
        %v1794 = vunpack.c.h.bf16 %v1704
        %v1795 = vunpack.c.h.bf16 %v1705
        %v1796 = vunpack.c.l.bf16 %v1712
        %v1797 = vunpack.c.l.bf16 %v1713
        %v1798 = vunpack.c.h.bf16 %v1712
        %v1799 = vunpack.c.h.bf16 %v1713
        %v1816 = vunpack.c.l.b16 %v1720
        %v1817 = vunpack.c.h.b16 %v1720
        %v1818 = vunpack.c.l.b16 %v1721
        %v1819 = vunpack.c.h.b16 %v1721
        %v1820 = vunpack.c.l.b16 %v1722
        %v1821 = vunpack.c.h.b16 %v1722
        %v1822 = vunpack.c.l.b16 %v1723
        %v1823 = vunpack.c.h.b16 %v1723
        %v1824 = vunpack.c.l.b16 %v1724
        %v1825 = vunpack.c.h.b16 %v1724
        %v1826 = vunpack.c.l.b16 %v1725
        %v1827 = vunpack.c.h.b16 %v1725
        %v1828 = vunpack.c.l.b16 %v1726
        %v1829 = vunpack.c.h.b16 %v1726
        %v1830 = vunpack.c.l.b16 %v1727
        %v1831 = vunpack.c.h.b16 %v1727
        %v1832 = vunpack.c.l.b16 %v1728
        %v1833 = vunpack.c.h.b16 %v1728
        %v1834 = vunpack.c.l.b16 %v1729
        %v1835 = vunpack.c.h.b16 %v1729
        %v1836 = vunpack.c.l.b16 %v1730
        %v1837 = vunpack.c.h.b16 %v1730
        %v1838 = vunpack.c.l.b16 %v1731
        %v1839 = vunpack.c.h.b16 %v1731
        %v1840 = vunpack.c.l.b16 %v1732
        %v1841 = vunpack.c.h.b16 %v1732
        %v1842 = vunpack.c.l.b16 %v1733
        %v1843 = vunpack.c.h.b16 %v1733
        %v1844 = vunpack.c.l.b16 %v1734
        %v1845 = vunpack.c.h.b16 %v1734
        %v1846 = vunpack.c.l.b16 %v1735
        %v1847 = vunpack.c.h.b16 %v1735
        %v1848 = vpack.c.b16 %v1818, %v1816
        %v1849 = vpack.c.b16 %v1819, %v1817
        %v1850 = vpack.c.b16 %v1822, %v1820
        %v1851 = vpack.c.b16 %v1823, %v1821
        %v1852 = vpack.c.b16 %v1826, %v1824
        %v1853 = vpack.c.b16 %v1827, %v1825
        %v1854 = vpack.c.b16 %v1830, %v1828
        %v1855 = vpack.c.b16 %v1831, %v1829
        %v1856 = vpack.c.b16 %v1834, %v1832
        %v1857 = vpack.c.b16 %v1835, %v1833
        %v1858 = vpack.c.b16 %v1838, %v1836
        %v1859 = vpack.c.b16 %v1839, %v1837
        %v1860 = vpack.c.b16 %v1842, %v1840
        %v1861 = vpack.c.b16 %v1843, %v1841
        %v1862 = vpack.c.b16 %v1846, %v1844
        %v1863 = vpack.c.b16 %v1847, %v1845
        %1880 = vmatprep.subr.bf16.mxu0 %v1849
        %1881 = vmatpush1.bf16.msra.mxu0 %v1848
        %1882 = vmatprep.subr.bf16.mxu0 %v1851
        %1883 = vmatpush1.bf16.msra.mxu0 %v1850
        %1884 = vmatprep.subr.bf16.mxu0 %v1853
        %1885 = vmatpush1.bf16.msra.mxu0 %v1852
        %1886 = vmatprep.subr.bf16.mxu0 %v1855
        %1887 = vmatpush1.bf16.msra.mxu0 %v1854
        %1888 = vmatprep.subr.bf16.mxu0 %v1857
        %1889 = vmatpush1.bf16.msra.mxu0 %v1856
        %1890 = vmatprep.subr.bf16.mxu0 %v1859
        %1891 = vmatpush1.bf16.msra.mxu0 %v1858
        %1892 = vmatprep.subr.bf16.mxu0 %v1861
        %1893 = vmatpush1.bf16.msra.mxu0 %v1860
        %1894 = vmatprep.subr.bf16.mxu0 %v1863
        %1895 = vmatpush1.bf16.msra.mxu0 %v1862
        %1896 = vmatprep.subr.bf16.mxu0 0
        %1897 = vmatpush1.bf16.msra.mxu0 0
        %1898 = vmatprep.subr.bf16.mxu0 0
        %1899 = vmatpush1.bf16.msra.mxu0 0
        %1900 = vmatprep.subr.bf16.mxu0 0
        %1901 = vmatpush1.bf16.msra.mxu0 0
        %1902 = vmatprep.subr.bf16.mxu0 0
        %1903 = vmatpush1.bf16.msra.mxu0 0
        %1904 = vmatprep.subr.bf16.mxu0 0
        %1905 = vmatpush1.bf16.msra.mxu0 0
        %1906 = vmatprep.subr.bf16.mxu0 0
        %1907 = vmatpush1.bf16.msra.mxu0 0
        %1908 = vmatprep.subr.bf16.mxu0 0
        %1909 = vmatpush1.bf16.msra.mxu0 0
        %1910 = vmatprep.subr.bf16.mxu0 0
        %1911 = vmatpush1.bf16.msra.mxu0 0
        %1912 = vmatprep.mubr.bf16.mxu0 0
        %1913 = vmatmul.mubr.bf16.gmra.mrb[0].mxu0 %v569
        %v1914 = vpop.f32.mrb[0].mxu0
        %v1915 = vadd.f32 %v1736, %v1914
        %v1916 = vpop.f32.mrb[0].mxu0
        %v1917 = vadd.f32 %v1737, %v1916
        %v1918 = vpop.f32.mrb[0].mxu0
        %v1919 = vadd.f32 %v1738, %v1918
        %v1920 = vpop.f32.mrb[0].mxu0
        %v1921 = vadd.f32 %v1739, %v1920
        %1922 = vmatprep.mubr.bf16.mxu0 0
        %1923 = vmatmul.mubr.bf16.gmra.mrb[0].mxu0 %v570
        %v1924 = vpop.f32.mrb[0].mxu0
        %v1925 = vadd.f32 %v1740, %v1924
        %v1926 = vpop.f32.mrb[0].mxu0
        %v1927 = vadd.f32 %v1741, %v1926
        %v1928 = vpop.f32.mrb[0].mxu0
        %v1929 = vadd.f32 %v1742, %v1928
        %v1930 = vpop.f32.mrb[0].mxu0
        %v1931 = vadd.f32 %v1743, %v1930
        %1932 = vmatprep.mubr.bf16.mxu0 0
        %1933 = vmatmul.mubr.bf16.gmra.mrb[0].mxu0 %v571
        %v1934 = vpop.f32.mrb[0].mxu0
        %v1935 = vadd.f32 %v1744, %v1934
        %v1936 = vpop.f32.mrb[0].mxu0
        %v1937 = vadd.f32 %v1745, %v1936
        %v1938 = vpop.f32.mrb[0].mxu0
        %v1939 = vadd.f32 %v1746, %v1938
        %v1940 = vpop.f32.mrb[0].mxu0
        %v1941 = vadd.f32 %v1747, %v1940
        %1942 = vmatprep.mubr.bf16.mxu0 0
        %1943 = vmatmul.mubr.bf16.gmra.mrb[0].mxu0 %v572
        %v1944 = vpop.f32.mrb[0].mxu0
        %v1945 = vadd.f32 %v1748, %v1944
        %v1946 = vpop.f32.mrb[0].mxu0
        %v1947 = vadd.f32 %v1749, %v1946
        %v1948 = vpop.f32.mrb[0].mxu0
        %v1949 = vadd.f32 %v1750, %v1948
        %v1950 = vpop.f32.mrb[0].mxu0
        %v1951 = vadd.f32 %v1751, %v1950
        %1952 = vmatprep.mubr.bf16.mxu0 0
        %1953 = vmatmul.mubr.bf16.gmra.mrb[0].mxu0 %v573
        %v1954 = vpop.f32.mrb[0].mxu0
        %v1955 = vadd.f32 %v1752, %v1954
        %v1956 = vpop.f32.mrb[0].mxu0
        %v1957 = vadd.f32 %v1753, %v1956
        %v1958 = vpop.f32.mrb[0].mxu0
        %v1959 = vadd.f32 %v1754, %v1958
        %v1960 = vpop.f32.mrb[0].mxu0
        %v1961 = vadd.f32 %v1755, %v1960
        %1962 = vmatprep.mubr.bf16.mxu0 0
        %1963 = vmatmul.mubr.bf16.gmra.mrb[0].mxu0 %v574
        %v1964 = vpop.f32.mrb[0].mxu0
        %v1965 = vadd.f32 %v1756, %v1964
        %v1966 = vpop.f32.mrb[0].mxu0
        %v1967 = vadd.f32 %v1757, %v1966
        %v1968 = vpop.f32.mrb[0].mxu0
        %v1969 = vadd.f32 %v1758, %v1968
        %v1970 = vpop.f32.mrb[0].mxu0
        %v1971 = vadd.f32 %v1759, %v1970
        %1972 = vmatprep.mubr.bf16.mxu0 0
        %1973 = vmatmul.mubr.bf16.gmra.mrb[0].mxu0 %v575
        %v1974 = vpop.f32.mrb[0].mxu0
        %v1975 = vadd.f32 %v1760, %v1974
        %v1976 = vpop.f32.mrb[0].mxu0
        %v1977 = vadd.f32 %v1761, %v1976
        %v1978 = vpop.f32.mrb[0].mxu0
        %v1979 = vadd.f32 %v1762, %v1978
        %v1980 = vpop.f32.mrb[0].mxu0
        %v1981 = vadd.f32 %v1763, %v1980
        %1982 = vmatprep.mubr.bf16.mxu0 0
        %1983 = vmatmul.mubr.bf16.gmra.mrb[0].mxu0 %v576
        %v1984 = vpop.f32.mrb[0].mxu0
        %v1985 = vadd.f32 %v1764, %v1984
        %v1986 = vpop.f32.mrb[0].mxu0
        %v1987 = vadd.f32 %v1765, %v1986
        %v1988 = vpop.f32.mrb[0].mxu0
        %v1989 = vadd.f32 %v1766, %v1988
        %v1990 = vpop.f32.mrb[0].mxu0
        %v1991 = vadd.f32 %v1767, %v1990
        %1992 = vmatprep.mubr.bf16.mxu0 0
        %1993 = vmatmul.mubr.bf16.gmra.mrb[0].mxu0 %v577
        %v1994 = vpop.f32.mrb[0].mxu0
        %v1995 = vadd.f32 %v1768, %v1994
        %v1996 = vpop.f32.mrb[0].mxu0
        %v1997 = vadd.f32 %v1769, %v1996
        %v1998 = vpop.f32.mrb[0].mxu0
        %v1999 = vadd.f32 %v1770, %v1998
        %v2000 = vpop.f32.mrb[0].mxu0
        %v2001 = vadd.f32 %v1771, %v2000
        %2002 = vmatprep.mubr.bf16.mxu0 0
        %2003 = vmatmul.mubr.bf16.gmra.mrb[0].mxu0 %v578
        %v2004 = vpop.f32.mrb[0].mxu0
        %v2005 = vadd.f32 %v1772, %v2004
        %v2006 = vpop.f32.mrb[0].mxu0
        %v2007 = vadd.f32 %v1773, %v2006
        %v2008 = vpop.f32.mrb[0].mxu0
        %v2009 = vadd.f32 %v1774, %v2008
        %v2010 = vpop.f32.mrb[0].mxu0
        %v2011 = vadd.f32 %v1775, %v2010
        %2012 = vmatprep.mubr.bf16.mxu0 0
        %2013 = vmatmul.mubr.bf16.gmra.mrb[0].mxu0 %v579
        %v2014 = vpop.f32.mrb[0].mxu0
        %v2015 = vadd.f32 %v1776, %v2014
        %v2016 = vpop.f32.mrb[0].mxu0
        %v2017 = vadd.f32 %v1777, %v2016
        %v2018 = vpop.f32.mrb[0].mxu0
        %v2019 = vadd.f32 %v1778, %v2018
        %v2020 = vpop.f32.mrb[0].mxu0
        %v2021 = vadd.f32 %v1779, %v2020
        %2022 = vmatprep.mubr.bf16.mxu0 0
        %2023 = vmatmul.mubr.bf16.gmra.mrb[0].mxu0 %v580
        %v2024 = vpop.f32.mrb[0].mxu0
        %v2025 = vadd.f32 %v1780, %v2024
        %v2026 = vpop.f32.mrb[0].mxu0
        %v2027 = vadd.f32 %v1781, %v2026
        %v2028 = vpop.f32.mrb[0].mxu0
        %v2029 = vadd.f32 %v1782, %v2028
        %v2030 = vpop.f32.mrb[0].mxu0
        %v2031 = vadd.f32 %v1783, %v2030
        %2032 = vmatprep.mubr.bf16.mxu0 0
        %2033 = vmatmul.mubr.bf16.gmra.mrb[0].mxu0 %v581
        %v2034 = vpop.f32.mrb[0].mxu0
        %v2035 = vadd.f32 %v1784, %v2034
        %v2036 = vpop.f32.mrb[0].mxu0
        %v2037 = vadd.f32 %v1785, %v2036
        %v2038 = vpop.f32.mrb[0].mxu0
        %v2039 = vadd.f32 %v1786, %v2038
        %v2040 = vpop.f32.mrb[0].mxu0
        %v2041 = vadd.f32 %v1787, %v2040
        %2042 = vmatprep.mubr.bf16.mxu0 0
        %2043 = vmatmul.mubr.bf16.gmra.mrb[0].mxu0 %v582
        %v2044 = vpop.f32.mrb[0].mxu0
        %v2045 = vadd.f32 %v1788, %v2044
        %v2046 = vpop.f32.mrb[0].mxu0
        %v2047 = vadd.f32 %v1789, %v2046
        %v2048 = vpop.f32.mrb[0].mxu0
        %v2049 = vadd.f32 %v1790, %v2048
        %v2050 = vpop.f32.mrb[0].mxu0
        %v2051 = vadd.f32 %v1791, %v2050
        %2052 = vmatprep.mubr.bf16.mxu0 0
        %2053 = vmatmul.mubr.bf16.gmra.mrb[0].mxu0 %v583
        %v2054 = vpop.f32.mrb[0].mxu0
        %v2055 = vadd.f32 %v1792, %v2054
        %v2056 = vpop.f32.mrb[0].mxu0
        %v2057 = vadd.f32 %v1793, %v2056
        %v2058 = vpop.f32.mrb[0].mxu0
        %v2059 = vadd.f32 %v1794, %v2058
        %v2060 = vpop.f32.mrb[0].mxu0
        %v2061 = vadd.f32 %v1795, %v2060
        %2062 = vmatprep.mubr.bf16.mxu0 0
        %2063 = vmatmul.mubr.bf16.gmra.mrb[0].mxu0 %v584
        %v2064 = vpop.f32.mrb[0].mxu0
        %v2065 = vadd.f32 %v1796, %v2064
        %v2066 = vpop.f32.mrb[0].mxu0
        %v2067 = vadd.f32 %v1797, %v2066
        %v2068 = vpop.f32.mrb[0].mxu0
        %v2069 = vadd.f32 %v1798, %v2068
        %v2070 = vpop.f32.mrb[0].mxu0
        %v2071 = vadd.f32 %v1799, %v2070
        %2072 = vdwg.mxu0
        %v2073 = vtanh.pop %v1915
        %v2074 = vtanh.pop %v1917
        %v2075 = vtanh.pop %v1919
        %v2076 = vtanh.pop %v1921
        %v2077 = vtanh.pop %v1925
        %v2078 = vtanh.pop %v1927
        %v2079 = vtanh.pop %v1929
        %v2080 = vtanh.pop %v1931
        %v2081 = vtanh.pop %v1935
        %v2082 = vtanh.pop %v1937
        %v2083 = vtanh.pop %v1939
        %v2084 = vtanh.pop %v1941
        %v2085 = vtanh.pop %v1945
        %v2086 = vtanh.pop %v1947
        %v2087 = vtanh.pop %v1949
        %v2088 = vtanh.pop %v1951
        %v2089 = vtanh.pop %v1955
        %v2090 = vtanh.pop %v1957
        %v2091 = vtanh.pop %v1959
        %v2092 = vtanh.pop %v1961
        %v2093 = vtanh.pop %v1965
        %v2094 = vtanh.pop %v1967
        %v2095 = vtanh.pop %v1969
        %v2096 = vtanh.pop %v1971
        %v2097 = vtanh.pop %v1975
        %v2098 = vtanh.pop %v1977
        %v2099 = vtanh.pop %v1979
        %v2100 = vtanh.pop %v1981
        %v2101 = vtanh.pop %v1985
        %v2102 = vtanh.pop %v1987
        %v2103 = vtanh.pop %v1989
        %v2104 = vtanh.pop %v1991
        %v2105 = vtanh.pop %v1995
        %v2106 = vtanh.pop %v1997
        %v2107 = vtanh.pop %v1999
        %v2108 = vtanh.pop %v2001
        %v2109 = vtanh.pop %v2005
        %v2110 = vtanh.pop %v2007
        %v2111 = vtanh.pop %v2009
        %v2112 = vtanh.pop %v2011
        %v2113 = vtanh.pop %v2015
        %v2114 = vtanh.pop %v2017
        %v2115 = vtanh.pop %v2019
        %v2116 = vtanh.pop %v2021
        %v2117 = vtanh.pop %v2025
        %v2118 = vtanh.pop %v2027
        %v2119 = vtanh.pop %v2029
        %v2120 = vtanh.pop %v2031
        %v2121 = vtanh.pop %v2035
        %v2122 = vtanh.pop %v2037
        %v2123 = vtanh.pop %v2039
        %v2124 = vtanh.pop %v2041
        %v2125 = vtanh.pop %v2045
        %v2126 = vtanh.pop %v2047
        %v2127 = vtanh.pop %v2049
        %v2128 = vtanh.pop %v2051
        %v2129 = vtanh.pop %v2055
        %v2130 = vtanh.pop %v2057
        %v2131 = vtanh.pop %v2059
        %v2132 = vtanh.pop %v2061
        %v2133 = vtanh.pop %v2065
        %v2134 = vtanh.pop %v2067
        %v2135 = vtanh.pop %v2069
        %v2136 = vtanh.pop %v2071
        %v2137 = vpack.c.bf16 %v2075, %v2073
        %v2138 = vpack.c.bf16 %v2076, %v2074
        %v2139 = vpack.c.bf16 %v2079, %v2077
        %v2140 = vpack.c.bf16 %v2080, %v2078
        %v2141 = vpack.c.bf16 %v2083, %v2081
        %v2142 = vpack.c.bf16 %v2084, %v2082
        %v2143 = vpack.c.bf16 %v2087, %v2085
        %v2144 = vpack.c.bf16 %v2088, %v2086
        %v2145 = vpack.c.bf16 %v2091, %v2089
        %v2146 = vpack.c.bf16 %v2092, %v2090
        %v2147 = vpack.c.bf16 %v2095, %v2093
        %v2148 = vpack.c.bf16 %v2096, %v2094
        %v2149 = vpack.c.bf16 %v2099, %v2097
        %v2150 = vpack.c.bf16 %v2100, %v2098
        %v2151 = vpack.c.bf16 %v2103, %v2101
        %v2152 = vpack.c.bf16 %v2104, %v2102
        %v2153 = vpack.c.bf16 %v2107, %v2105
        %v2154 = vpack.c.bf16 %v2108, %v2106
        %v2155 = vpack.c.bf16 %v2111, %v2109
        %v2156 = vpack.c.bf16 %v2112, %v2110
        %v2157 = vpack.c.bf16 %v2115, %v2113
        %v2158 = vpack.c.bf16 %v2116, %v2114
        %v2159 = vpack.c.bf16 %v2119, %v2117
        %v2160 = vpack.c.bf16 %v2120, %v2118
        %v2161 = vpack.c.bf16 %v2123, %v2121
        %v2162 = vpack.c.bf16 %v2124, %v2122
        %v2163 = vpack.c.bf16 %v2127, %v2125
        %v2164 = vpack.c.bf16 %v2128, %v2126
        %v2165 = vpack.c.bf16 %v2131, %v2129
        %v2166 = vpack.c.bf16 %v2132, %v2130
        %v2167 = vpack.c.bf16 %v2135, %v2133
        %v2168 = vpack.c.bf16 %v2136, %v2134
        %v2169 = vld [vmem:[%s3] sm:$0xff]
        %v2170 = vld [vmem:[%s3 + $0x8] sm:$0xff]
        %v2171 = vld [vmem:[%s3 + $0x10] sm:$0xff]
        %v2172 = vld [vmem:[%s3 + $0x18] sm:$0xff]
        %v2173 = vld [vmem:[%s3 + $0x20] sm:$0xff]
        %v2174 = vld [vmem:[%s3 + $0x28] sm:$0xff]
        %v2175 = vld [vmem:[%s3 + $0x30] sm:$0xff]
        %v2176 = vld [vmem:[%s3 + $0x38] sm:$0xff]
        %v2177 = vld [vmem:[%s3 + $0x40] sm:$0xff]
        %v2178 = vld [vmem:[%s3 + $0x48] sm:$0xff]
        %v2179 = vld [vmem:[%s3 + $0x50] sm:$0xff]
        %v2180 = vld [vmem:[%s3 + $0x58] sm:$0xff]
        %v2181 = vld [vmem:[%s3 + $0x60] sm:$0xff]
        %v2182 = vld [vmem:[%s3 + $0x68] sm:$0xff]
        %v2183 = vld [vmem:[%s3 + $0x70] sm:$0xff]
        %v2184 = vld [vmem:[%s3 + $0x78] sm:$0xff]
        %v2185 = vld [vmem:[%s3 + $0x80] sm:$0xff]
        %v2186 = vld [vmem:[%s3 + $0x88] sm:$0xff]
        %v2187 = vld [vmem:[%s3 + $0x90] sm:$0xff]
        %v2188 = vld [vmem:[%s3 + $0x98] sm:$0xff]
        %v2189 = vld [vmem:[%s3 + $0xa0] sm:$0xff]
        %v2190 = vld [vmem:[%s3 + $0xa8] sm:$0xff]
        %v2191 = vld [vmem:[%s3 + $0xb0] sm:$0xff]
        %v2192 = vld [vmem:[%s3 + $0xb8] sm:$0xff]
        %v2193 = vld [vmem:[%s3 + $0xc0] sm:$0xff]
        %v2194 = vld [vmem:[%s3 + $0xc8] sm:$0xff]
        %v2195 = vld [vmem:[%s3 + $0xd0] sm:$0xff]
        %v2196 = vld [vmem:[%s3 + $0xd8] sm:$0xff]
        %v2197 = vld [vmem:[%s3 + $0xe0] sm:$0xff]
        %v2198 = vld [vmem:[%s3 + $0xe8] sm:$0xff]
        %v2199 = vld [vmem:[%s3 + $0xf0] sm:$0xff]
        %v2200 = vld [vmem:[%s3 + $0xf8] sm:$0xff]
        %v2201 = vunpack.c.l.bf16 %v1594
        %v2202 = vunpack.c.l.bf16 %v1595
        %v2203 = vunpack.c.h.bf16 %v1594
        %v2204 = vunpack.c.h.bf16 %v1595
        %v2205 = vunpack.c.l.bf16 %v1602
        %v2206 = vunpack.c.l.bf16 %v1603
        %v2207 = vunpack.c.h.bf16 %v1602
        %v2208 = vunpack.c.h.bf16 %v1603
        %v2209 = vunpack.c.l.bf16 %v1610
        %v2210 = vunpack.c.l.bf16 %v1611
        %v2211 = vunpack.c.h.bf16 %v1610
        %v2212 = vunpack.c.h.bf16 %v1611
        %v2213 = vunpack.c.l.bf16 %v1618
        %v2214 = vunpack.c.l.bf16 %v1619
        %v2215 = vunpack.c.h.bf16 %v1618
        %v2216 = vunpack.c.h.bf16 %v1619
        %v2217 = vunpack.c.l.bf16 %v1626
        %v2218 = vunpack.c.l.bf16 %v1627
        %v2219 = vunpack.c.h.bf16 %v1626
        %v2220 = vunpack.c.h.bf16 %v1627
        %v2221 = vunpack.c.l.bf16 %v1634
        %v2222 = vunpack.c.l.bf16 %v1635
        %v2223 = vunpack.c.h.bf16 %v1634
        %v2224 = vunpack.c.h.bf16 %v1635
        %v2225 = vunpack.c.l.bf16 %v1642
        %v2226 = vunpack.c.l.bf16 %v1643
        %v2227 = vunpack.c.h.bf16 %v1642
        %v2228 = vunpack.c.h.bf16 %v1643
        %v2229 = vunpack.c.l.bf16 %v1650
        %v2230 = vunpack.c.l.bf16 %v1651
        %v2231 = vunpack.c.h.bf16 %v1650
        %v2232 = vunpack.c.h.bf16 %v1651
        %v2233 = vunpack.c.l.bf16 %v1658
        %v2234 = vunpack.c.l.bf16 %v1659
        %v2235 = vunpack.c.h.bf16 %v1658
        %v2236 = vunpack.c.h.bf16 %v1659
        %v2237 = vunpack.c.l.bf16 %v1666
        %v2238 = vunpack.c.l.bf16 %v1667
        %v2239 = vunpack.c.h.bf16 %v1666
        %v2240 = vunpack.c.h.bf16 %v1667
        %v2241 = vunpack.c.l.bf16 %v1674
        %v2242 = vunpack.c.l.bf16 %v1675
        %v2243 = vunpack.c.h.bf16 %v1674
        %v2244 = vunpack.c.h.bf16 %v1675
        %v2245 = vunpack.c.l.bf16 %v1682
        %v2246 = vunpack.c.l.bf16 %v1683
        %v2247 = vunpack.c.h.bf16 %v1682
        %v2248 = vunpack.c.h.bf16 %v1683
        %v2249 = vunpack.c.l.bf16 %v1690
        %v2250 = vunpack.c.l.bf16 %v1691
        %v2251 = vunpack.c.h.bf16 %v1690
        %v2252 = vunpack.c.h.bf16 %v1691
        %v2253 = vunpack.c.l.bf16 %v1698
        %v2254 = vunpack.c.l.bf16 %v1699
        %v2255 = vunpack.c.h.bf16 %v1698
        %v2256 = vunpack.c.h.bf16 %v1699
        %v2257 = vunpack.c.l.bf16 %v1706
        %v2258 = vunpack.c.l.bf16 %v1707
        %v2259 = vunpack.c.h.bf16 %v1706
        %v2260 = vunpack.c.h.bf16 %v1707
        %v2261 = vunpack.c.l.bf16 %v1714
        %v2262 = vunpack.c.l.bf16 %v1715
        %v2263 = vunpack.c.h.bf16 %v1714
        %v2264 = vunpack.c.h.bf16 %v1715
        %v2297 = vunpack.c.l.b16 %v2169
        %v2298 = vunpack.c.h.b16 %v2169
        %v2299 = vunpack.c.l.b16 %v2170
        %v2300 = vunpack.c.h.b16 %v2170
        %v2301 = vunpack.c.l.b16 %v2171
        %v2302 = vunpack.c.h.b16 %v2171
        %v2303 = vunpack.c.l.b16 %v2172
        %v2304 = vunpack.c.h.b16 %v2172
        %v2305 = vunpack.c.l.b16 %v2173
        %v2306 = vunpack.c.h.b16 %v2173
        %v2307 = vunpack.c.l.b16 %v2174
        %v2308 = vunpack.c.h.b16 %v2174
        %v2309 = vunpack.c.l.b16 %v2175
        %v2310 = vunpack.c.h.b16 %v2175
        %v2311 = vunpack.c.l.b16 %v2176
        %v2312 = vunpack.c.h.b16 %v2176
        %v2313 = vunpack.c.l.b16 %v2177
        %v2314 = vunpack.c.h.b16 %v2177
        %v2315 = vunpack.c.l.b16 %v2178
        %v2316 = vunpack.c.h.b16 %v2178
        %v2317 = vunpack.c.l.b16 %v2179
        %v2318 = vunpack.c.h.b16 %v2179
        %v2319 = vunpack.c.l.b16 %v2180
        %v2320 = vunpack.c.h.b16 %v2180
        %v2321 = vunpack.c.l.b16 %v2181
        %v2322 = vunpack.c.h.b16 %v2181
        %v2323 = vunpack.c.l.b16 %v2182
        %v2324 = vunpack.c.h.b16 %v2182
        %v2325 = vunpack.c.l.b16 %v2183
        %v2326 = vunpack.c.h.b16 %v2183
        %v2327 = vunpack.c.l.b16 %v2184
        %v2328 = vunpack.c.h.b16 %v2184
        %v2329 = vunpack.c.l.b16 %v2185
        %v2330 = vunpack.c.h.b16 %v2185
        %v2331 = vunpack.c.l.b16 %v2186
        %v2332 = vunpack.c.h.b16 %v2186
        %v2333 = vunpack.c.l.b16 %v2187
        %v2334 = vunpack.c.h.b16 %v2187
        %v2335 = vunpack.c.l.b16 %v2188
        %v2336 = vunpack.c.h.b16 %v2188
        %v2337 = vunpack.c.l.b16 %v2189
        %v2338 = vunpack.c.h.b16 %v2189
        %v2339 = vunpack.c.l.b16 %v2190
        %v2340 = vunpack.c.h.b16 %v2190
        %v2341 = vunpack.c.l.b16 %v2191
        %v2342 = vunpack.c.h.b16 %v2191
        %v2343 = vunpack.c.l.b16 %v2192
        %v2344 = vunpack.c.h.b16 %v2192
        %v2345 = vunpack.c.l.b16 %v2193
        %v2346 = vunpack.c.h.b16 %v2193
        %v2347 = vunpack.c.l.b16 %v2194
        %v2348 = vunpack.c.h.b16 %v2194
        %v2349 = vunpack.c.l.b16 %v2195
        %v2350 = vunpack.c.h.b16 %v2195
        %v2351 = vunpack.c.l.b16 %v2196
        %v2352 = vunpack.c.h.b16 %v2196
        %v2353 = vunpack.c.l.b16 %v2197
        %v2354 = vunpack.c.h.b16 %v2197
        %v2355 = vunpack.c.l.b16 %v2198
        %v2356 = vunpack.c.h.b16 %v2198
        %v2357 = vunpack.c.l.b16 %v2199
        %v2358 = vunpack.c.h.b16 %v2199
        %v2359 = vunpack.c.l.b16 %v2200
        %v2360 = vunpack.c.h.b16 %v2200
        %v2361 = vpack.c.b16 %v2299, %v2297
        %v2362 = vpack.c.b16 %v2300, %v2298
        %v2363 = vpack.c.b16 %v2303, %v2301
        %v2364 = vpack.c.b16 %v2304, %v2302
        %v2365 = vpack.c.b16 %v2307, %v2305
        %v2366 = vpack.c.b16 %v2308, %v2306
        %v2367 = vpack.c.b16 %v2311, %v2309
        %v2368 = vpack.c.b16 %v2312, %v2310
        %v2369 = vpack.c.b16 %v2315, %v2313
        %v2370 = vpack.c.b16 %v2316, %v2314
        %v2371 = vpack.c.b16 %v2319, %v2317
        %v2372 = vpack.c.b16 %v2320, %v2318
        %v2373 = vpack.c.b16 %v2323, %v2321
        %v2374 = vpack.c.b16 %v2324, %v2322
        %v2375 = vpack.c.b16 %v2327, %v2325
        %v2376 = vpack.c.b16 %v2328, %v2326
        %v2377 = vpack.c.b16 %v2331, %v2329
        %v2378 = vpack.c.b16 %v2332, %v2330
        %v2379 = vpack.c.b16 %v2335, %v2333
        %v2380 = vpack.c.b16 %v2336, %v2334
        %v2381 = vpack.c.b16 %v2339, %v2337
        %v2382 = vpack.c.b16 %v2340, %v2338
        %v2383 = vpack.c.b16 %v2343, %v2341
        %v2384 = vpack.c.b16 %v2344, %v2342
        %v2385 = vpack.c.b16 %v2347, %v2345
        %v2386 = vpack.c.b16 %v2348, %v2346
        %v2387 = vpack.c.b16 %v2351, %v2349
        %v2388 = vpack.c.b16 %v2352, %v2350
        %v2389 = vpack.c.b16 %v2355, %v2353
        %v2390 = vpack.c.b16 %v2356, %v2354
        %v2391 = vpack.c.b16 %v2359, %v2357
        %v2392 = vpack.c.b16 %v2360, %v2358
        %2425 = vmatprep.subr.bf16.mxu0 %v2362
        %2426 = vmatpush1.bf16.msra.mxu0 %v2361
        %2427 = vmatprep.subr.bf16.mxu0 %v2364
        %2428 = vmatpush1.bf16.msra.mxu0 %v2363
        %2429 = vmatprep.subr.bf16.mxu0 %v2366
        %2430 = vmatpush1.bf16.msra.mxu0 %v2365
        %2431 = vmatprep.subr.bf16.mxu0 %v2368
        %2432 = vmatpush1.bf16.msra.mxu0 %v2367
        %2433 = vmatprep.subr.bf16.mxu0 %v2370
        %2434 = vmatpush1.bf16.msra.mxu0 %v2369
        %2435 = vmatprep.subr.bf16.mxu0 %v2372
        %2436 = vmatpush1.bf16.msra.mxu0 %v2371
        %2437 = vmatprep.subr.bf16.mxu0 %v2374
        %2438 = vmatpush1.bf16.msra.mxu0 %v2373
        %2439 = vmatprep.subr.bf16.mxu0 %v2376
        %2440 = vmatpush1.bf16.msra.mxu0 %v2375
        %2441 = vmatprep.subr.bf16.mxu0 %v2378
        %2442 = vmatpush1.bf16.msra.mxu0 %v2377
        %2443 = vmatprep.subr.bf16.mxu0 %v2380
        %2444 = vmatpush1.bf16.msra.mxu0 %v2379
        %2445 = vmatprep.subr.bf16.mxu0 %v2382
        %2446 = vmatpush1.bf16.msra.mxu0 %v2381
        %2447 = vmatprep.subr.bf16.mxu0 %v2384
        %2448 = vmatpush1.bf16.msra.mxu0 %v2383
        %2449 = vmatprep.subr.bf16.mxu0 %v2386
        %2450 = vmatpush1.bf16.msra.mxu0 %v2385
        %2451 = vmatprep.subr.bf16.mxu0 %v2388
        %2452 = vmatpush1.bf16.msra.mxu0 %v2387
        %2453 = vmatprep.subr.bf16.mxu0 %v2390
        %2454 = vmatpush1.bf16.msra.mxu0 %v2389
        %2455 = vmatprep.subr.bf16.mxu0 %v2392
        %2456 = vmatpush1.bf16.msra.mxu0 %v2391
        %2457 = vmatprep.mubr.bf16.mxu0 %v2138
        %2458 = vmatmul.mubr.bf16.gmra.mrb[0].mxu0 %v2137
        %v2459 = vpop.f32.mrb[0].mxu0
        %v2460 = vadd.f32 %v2201, %v2459
        %v2461 = vpop.f32.mrb[0].mxu0
        %v2462 = vadd.f32 %v2202, %v2461
        %v2463 = vpop.f32.mrb[0].mxu0
        %v2464 = vadd.f32 %v2203, %v2463
        %v2465 = vpop.f32.mrb[0].mxu0
        %v2466 = vadd.f32 %v2204, %v2465
        %2467 = vmatprep.mubr.bf16.mxu0 %v2140
        %2468 = vmatmul.mubr.bf16.gmra.mrb[0].mxu0 %v2139
        %v2469 = vpop.f32.mrb[0].mxu0
        %v2470 = vadd.f32 %v2205, %v2469
        %v2471 = vpop.f32.mrb[0].mxu0
        %v2472 = vadd.f32 %v2206, %v2471
        %v2473 = vpop.f32.mrb[0].mxu0
        %v2474 = vadd.f32 %v2207, %v2473
        %v2475 = vpop.f32.mrb[0].mxu0
        %v2476 = vadd.f32 %v2208, %v2475
        %2477 = vmatprep.mubr.bf16.mxu0 %v2142
        %2478 = vmatmul.mubr.bf16.gmra.mrb[0].mxu0 %v2141
        %v2479 = vpop.f32.mrb[0].mxu0
        %v2480 = vadd.f32 %v2209, %v2479
        %v2481 = vpop.f32.mrb[0].mxu0
        %v2482 = vadd.f32 %v2210, %v2481
        %v2483 = vpop.f32.mrb[0].mxu0
        %v2484 = vadd.f32 %v2211, %v2483
        %v2485 = vpop.f32.mrb[0].mxu0
        %v2486 = vadd.f32 %v2212, %v2485
        %2487 = vmatprep.mubr.bf16.mxu0 %v2144
        %2488 = vmatmul.mubr.bf16.gmra.mrb[0].mxu0 %v2143
        %v2489 = vpop.f32.mrb[0].mxu0
        %v2490 = vadd.f32 %v2213, %v2489
        %v2491 = vpop.f32.mrb[0].mxu0
        %v2492 = vadd.f32 %v2214, %v2491
        %v2493 = vpop.f32.mrb[0].mxu0
        %v2494 = vadd.f32 %v2215, %v2493
        %v2495 = vpop.f32.mrb[0].mxu0
        %v2496 = vadd.f32 %v2216, %v2495
        %2497 = vmatprep.mubr.bf16.mxu0 %v2146
        %2498 = vmatmul.mubr.bf16.gmra.mrb[0].mxu0 %v2145
        %v2499 = vpop.f32.mrb[0].mxu0
        %v2500 = vadd.f32 %v2217, %v2499
        %v2501 = vpop.f32.mrb[0].mxu0
        %v2502 = vadd.f32 %v2218, %v2501
        %v2503 = vpop.f32.mrb[0].mxu0
        %v2504 = vadd.f32 %v2219, %v2503
        %v2505 = vpop.f32.mrb[0].mxu0
        %v2506 = vadd.f32 %v2220, %v2505
        %2507 = vmatprep.mubr.bf16.mxu0 %v2148
        %2508 = vmatmul.mubr.bf16.gmra.mrb[0].mxu0 %v2147
        %v2509 = vpop.f32.mrb[0].mxu0
        %v2510 = vadd.f32 %v2221, %v2509
        %v2511 = vpop.f32.mrb[0].mxu0
        %v2512 = vadd.f32 %v2222, %v2511
        %v2513 = vpop.f32.mrb[0].mxu0
        %v2514 = vadd.f32 %v2223, %v2513
        %v2515 = vpop.f32.mrb[0].mxu0
        %v2516 = vadd.f32 %v2224, %v2515
        %2517 = vmatprep.mubr.bf16.mxu0 %v2150
        %2518 = vmatmul.mubr.bf16.gmra.mrb[0].mxu0 %v2149
        %v2519 = vpop.f32.mrb[0].mxu0
        %v2520 = vadd.f32 %v2225, %v2519
        %v2521 = vpop.f32.mrb[0].mxu0
        %v2522 = vadd.f32 %v2226, %v2521
        %v2523 = vpop.f32.mrb[0].mxu0
        %v2524 = vadd.f32 %v2227, %v2523
        %v2525 = vpop.f32.mrb[0].mxu0
        %v2526 = vadd.f32 %v2228, %v2525
        %2527 = vmatprep.mubr.bf16.mxu0 %v2152
        %2528 = vmatmul.mubr.bf16.gmra.mrb[0].mxu0 %v2151
        %v2529 = vpop.f32.mrb[0].mxu0
        %v2530 = vadd.f32 %v2229, %v2529
        %v2531 = vpop.f32.mrb[0].mxu0
        %v2532 = vadd.f32 %v2230, %v2531
        %v2533 = vpop.f32.mrb[0].mxu0
        %v2534 = vadd.f32 %v2231, %v2533
        %v2535 = vpop.f32.mrb[0].mxu0
        %v2536 = vadd.f32 %v2232, %v2535
        %2537 = vmatprep.mubr.bf16.mxu0 %v2154
        %2538 = vmatmul.mubr.bf16.gmra.mrb[0].mxu0 %v2153
        %v2539 = vpop.f32.mrb[0].mxu0
        %v2540 = vadd.f32 %v2233, %v2539
        %v2541 = vpop.f32.mrb[0].mxu0
        %v2542 = vadd.f32 %v2234, %v2541
        %v2543 = vpop.f32.mrb[0].mxu0
        %v2544 = vadd.f32 %v2235, %v2543
        %v2545 = vpop.f32.mrb[0].mxu0
        %v2546 = vadd.f32 %v2236, %v2545
        %2547 = vmatprep.mubr.bf16.mxu0 %v2156
        %2548 = vmatmul.mubr.bf16.gmra.mrb[0].mxu0 %v2155
        %v2549 = vpop.f32.mrb[0].mxu0
        %v2550 = vadd.f32 %v2237, %v2549
        %v2551 = vpop.f32.mrb[0].mxu0
        %v2552 = vadd.f32 %v2238, %v2551
        %v2553 = vpop.f32.mrb[0].mxu0
        %v2554 = vadd.f32 %v2239, %v2553
        %v2555 = vpop.f32.mrb[0].mxu0
        %v2556 = vadd.f32 %v2240, %v2555
        %2557 = vmatprep.mubr.bf16.mxu0 %v2158
        %2558 = vmatmul.mubr.bf16.gmra.mrb[0].mxu0 %v2157
        %v2559 = vpop.f32.mrb[0].mxu0
        %v2560 = vadd.f32 %v2241, %v2559
        %v2561 = vpop.f32.mrb[0].mxu0
        %v2562 = vadd.f32 %v2242, %v2561
        %v2563 = vpop.f32.mrb[0].mxu0
        %v2564 = vadd.f32 %v2243, %v2563
        %v2565 = vpop.f32.mrb[0].mxu0
        %v2566 = vadd.f32 %v2244, %v2565
        %2567 = vmatprep.mubr.bf16.mxu0 %v2160
        %2568 = vmatmul.mubr.bf16.gmra.mrb[0].mxu0 %v2159
        %v2569 = vpop.f32.mrb[0].mxu0
        %v2570 = vadd.f32 %v2245, %v2569
        %v2571 = vpop.f32.mrb[0].mxu0
        %v2572 = vadd.f32 %v2246, %v2571
        %v2573 = vpop.f32.mrb[0].mxu0
        %v2574 = vadd.f32 %v2247, %v2573
        %v2575 = vpop.f32.mrb[0].mxu0
        %v2576 = vadd.f32 %v2248, %v2575
        %2577 = vmatprep.mubr.bf16.mxu0 %v2162
        %2578 = vmatmul.mubr.bf16.gmra.mrb[0].mxu0 %v2161
        %v2579 = vpop.f32.mrb[0].mxu0
        %v2580 = vadd.f32 %v2249, %v2579
        %v2581 = vpop.f32.mrb[0].mxu0
        %v2582 = vadd.f32 %v2250, %v2581
        %v2583 = vpop.f32.mrb[0].mxu0
        %v2584 = vadd.f32 %v2251, %v2583
        %v2585 = vpop.f32.mrb[0].mxu0
        %v2586 = vadd.f32 %v2252, %v2585
        %2587 = vmatprep.mubr.bf16.mxu0 %v2164
        %2588 = vmatmul.mubr.bf16.gmra.mrb[0].mxu0 %v2163
        %v2589 = vpop.f32.mrb[0].mxu0
        %v2590 = vadd.f32 %v2253, %v2589
        %v2591 = vpop.f32.mrb[0].mxu0
        %v2592 = vadd.f32 %v2254, %v2591
        %v2593 = vpop.f32.mrb[0].mxu0
        %v2594 = vadd.f32 %v2255, %v2593
        %v2595 = vpop.f32.mrb[0].mxu0
        %v2596 = vadd.f32 %v2256, %v2595
        %2597 = vmatprep.mubr.bf16.mxu0 %v2166
        %2598 = vmatmul.mubr.bf16.gmra.mrb[0].mxu0 %v2165
        %v2599 = vpop.f32.mrb[0].mxu0
        %v2600 = vadd.f32 %v2257, %v2599
        %v2601 = vpop.f32.mrb[0].mxu0
        %v2602 = vadd.f32 %v2258, %v2601
        %v2603 = vpop.f32.mrb[0].mxu0
        %v2604 = vadd.f32 %v2259, %v2603
        %v2605 = vpop.f32.mrb[0].mxu0
        %v2606 = vadd.f32 %v2260, %v2605
        %2607 = vmatprep.mubr.bf16.mxu0 %v2168
        %2608 = vmatmul.mubr.bf16.gmra.mrb[0].mxu0 %v2167
        %v2609 = vpop.f32.mrb[0].mxu0
        %v2610 = vadd.f32 %v2261, %v2609
        %v2611 = vpop.f32.mrb[0].mxu0
        %v2612 = vadd.f32 %v2262, %v2611
        %v2613 = vpop.f32.mrb[0].mxu0
        %v2614 = vadd.f32 %v2263, %v2613
        %v2615 = vpop.f32.mrb[0].mxu0
        %v2616 = vadd.f32 %v2264, %v2615
        %2617 = vdwg.mxu0
        %v2618 = vtanh.pop %v2460
        %v2619 = vtanh.pop %v2462
        %v2620 = vtanh.pop %v2464
        %v2621 = vtanh.pop %v2466
        %v2622 = vtanh.pop %v2470
        %v2623 = vtanh.pop %v2472
        %v2624 = vtanh.pop %v2474
        %v2625 = vtanh.pop %v2476
        %v2626 = vtanh.pop %v2480
        %v2627 = vtanh.pop %v2482
        %v2628 = vtanh.pop %v2484
        %v2629 = vtanh.pop %v2486
        %v2630 = vtanh.pop %v2490
        %v2631 = vtanh.pop %v2492
        %v2632 = vtanh.pop %v2494
        %v2633 = vtanh.pop %v2496
        %v2634 = vtanh.pop %v2500
        %v2635 = vtanh.pop %v2502
        %v2636 = vtanh.pop %v2504
        %v2637 = vtanh.pop %v2506
        %v2638 = vtanh.pop %v2510
        %v2639 = vtanh.pop %v2512
        %v2640 = vtanh.pop %v2514
        %v2641 = vtanh.pop %v2516
        %v2642 = vtanh.pop %v2520
        %v2643 = vtanh.pop %v2522
        %v2644 = vtanh.pop %v2524
        %v2645 = vtanh.pop %v2526
        %v2646 = vtanh.pop %v2530
        %v2647 = vtanh.pop %v2532
        %v2648 = vtanh.pop %v2534
        %v2649 = vtanh.pop %v2536
        %v2650 = vtanh.pop %v2540
        %v2651 = vtanh.pop %v2542
        %v2652 = vtanh.pop %v2544
        %v2653 = vtanh.pop %v2546
        %v2654 = vtanh.pop %v2550
        %v2655 = vtanh.pop %v2552
        %v2656 = vtanh.pop %v2554
        %v2657 = vtanh.pop %v2556
        %v2658 = vtanh.pop %v2560
        %v2659 = vtanh.pop %v2562
        %v2660 = vtanh.pop %v2564
        %v2661 = vtanh.pop %v2566
        %v2662 = vtanh.pop %v2570
        %v2663 = vtanh.pop %v2572
        %v2664 = vtanh.pop %v2574
        %v2665 = vtanh.pop %v2576
        %v2666 = vtanh.pop %v2580
        %v2667 = vtanh.pop %v2582
        %v2668 = vtanh.pop %v2584
        %v2669 = vtanh.pop %v2586
        %v2670 = vtanh.pop %v2590
        %v2671 = vtanh.pop %v2592
        %v2672 = vtanh.pop %v2594
        %v2673 = vtanh.pop %v2596
        %v2674 = vtanh.pop %v2600
        %v2675 = vtanh.pop %v2602
        %v2676 = vtanh.pop %v2604
        %v2677 = vtanh.pop %v2606
        %v2678 = vtanh.pop %v2610
        %v2679 = vtanh.pop %v2612
        %v2680 = vtanh.pop %v2614
        %v2681 = vtanh.pop %v2616
        %v2682 = vpack.c.bf16 %v2620, %v2618
        %v2683 = vpack.c.bf16 %v2621, %v2619
        %v2684 = vpack.c.bf16 %v2624, %v2622
        %v2685 = vpack.c.bf16 %v2625, %v2623
        %v2686 = vpack.c.bf16 %v2628, %v2626
        %v2687 = vpack.c.bf16 %v2629, %v2627
        %v2688 = vpack.c.bf16 %v2632, %v2630
        %v2689 = vpack.c.bf16 %v2633, %v2631
        %v2690 = vpack.c.bf16 %v2636, %v2634
        %v2691 = vpack.c.bf16 %v2637, %v2635
        %v2692 = vpack.c.bf16 %v2640, %v2638
        %v2693 = vpack.c.bf16 %v2641, %v2639
        %v2694 = vpack.c.bf16 %v2644, %v2642
        %v2695 = vpack.c.bf16 %v2645, %v2643
        %v2696 = vpack.c.bf16 %v2648, %v2646
        %v2697 = vpack.c.bf16 %v2649, %v2647
        %v2698 = vpack.c.bf16 %v2652, %v2650
        %v2699 = vpack.c.bf16 %v2653, %v2651
        %v2700 = vpack.c.bf16 %v2656, %v2654
        %v2701 = vpack.c.bf16 %v2657, %v2655
        %v2702 = vpack.c.bf16 %v2660, %v2658
        %v2703 = vpack.c.bf16 %v2661, %v2659
        %v2704 = vpack.c.bf16 %v2664, %v2662
        %v2705 = vpack.c.bf16 %v2665, %v2663
        %v2706 = vpack.c.bf16 %v2668, %v2666
        %v2707 = vpack.c.bf16 %v2669, %v2667
        %v2708 = vpack.c.bf16 %v2672, %v2670
        %v2709 = vpack.c.bf16 %v2673, %v2671
        %v2710 = vpack.c.bf16 %v2676, %v2674
        %v2711 = vpack.c.bf16 %v2677, %v2675
        %v2712 = vpack.c.bf16 %v2680, %v2678
        %v2713 = vpack.c.bf16 %v2681, %v2679
        %v2714 = vld [vmem:[#allocation4] sm:$0xf]
        %v2715 = vld [vmem:[#allocation4 + $0x4] sm:$0xf]
        %v2716 = vld [vmem:[#allocation4 + $0x8] sm:$0xf]
        %v2717 = vld [vmem:[#allocation4 + $0xc] sm:$0xf]
        %v2718 = vld [vmem:[#allocation4 + $0x10] sm:$0xf]
        %v2719 = vld [vmem:[#allocation4 + $0x14] sm:$0xf]
        %v2720 = vld [vmem:[#allocation4 + $0x18] sm:$0xf]
        %v2721 = vld [vmem:[#allocation4 + $0x1c] sm:$0xf]
        %v2722 = vld [vmem:[#allocation4 + $0x20] sm:$0xf]
        %v2723 = vld [vmem:[#allocation4 + $0x24] sm:$0xf]
        %v2724 = vld [vmem:[#allocation4 + $0x28] sm:$0xf]
        %v2725 = vld [vmem:[#allocation4 + $0x2c] sm:$0xf]
        %v2726 = vld [vmem:[#allocation4 + $0x30] sm:$0xf]
        %v2727 = vld [vmem:[#allocation4 + $0x34] sm:$0xf]
        %v2728 = vld [vmem:[#allocation4 + $0x38] sm:$0xf]
        %v2729 = vld [vmem:[#allocation4 + $0x3c] sm:$0xf]
        %v2730 = vld [vmem:[#allocation4 + $0x40] sm:$0xf]
        %v2731 = vld [vmem:[#allocation4 + $0x44] sm:$0xf]
        %v2732 = vld [vmem:[#allocation4 + $0x48] sm:$0xf]
        %v2733 = vld [vmem:[#allocation4 + $0x4c] sm:$0xf]
        %v2734 = vld [vmem:[#allocation4 + $0x50] sm:$0xf]
        %v2735 = vld [vmem:[#allocation4 + $0x54] sm:$0xf]
        %v2736 = vld [vmem:[#allocation4 + $0x58] sm:$0xf]
        %v2737 = vld [vmem:[#allocation4 + $0x5c] sm:$0xf]
        %v2738 = vld [vmem:[#allocation4 + $0x60] sm:$0xf]
        %v2739 = vld [vmem:[#allocation4 + $0x64] sm:$0xf]
        %v2740 = vld [vmem:[#allocation4 + $0x68] sm:$0xf]
        %v2741 = vld [vmem:[#allocation4 + $0x6c] sm:$0xf]
        %v2742 = vld [vmem:[#allocation4 + $0x70] sm:$0xf]
        %v2743 = vld [vmem:[#allocation4 + $0x74] sm:$0xf]
        %v2744 = vld [vmem:[#allocation4 + $0x78] sm:$0xf]
        %v2745 = vld [vmem:[#allocation4 + $0x7c] sm:$0xf]
        %v2746 = vunpack.c.l.bf16 %v1596
        %v2747 = vunpack.c.h.bf16 %v1596
        %v2748 = vunpack.c.l.bf16 %v1604
        %v2749 = vunpack.c.h.bf16 %v1604
        %v2750 = vunpack.c.l.bf16 %v1612
        %v2751 = vunpack.c.h.bf16 %v1612
        %v2752 = vunpack.c.l.bf16 %v1620
        %v2753 = vunpack.c.h.bf16 %v1620
        %v2754 = vunpack.c.l.bf16 %v1628
        %v2755 = vunpack.c.h.bf16 %v1628
        %v2756 = vunpack.c.l.bf16 %v1636
        %v2757 = vunpack.c.h.bf16 %v1636
        %v2758 = vunpack.c.l.bf16 %v1644
        %v2759 = vunpack.c.h.bf16 %v1644
        %v2760 = vunpack.c.l.bf16 %v1652
        %v2761 = vunpack.c.h.bf16 %v1652
        %v2762 = vunpack.c.l.bf16 %v1660
        %v2763 = vunpack.c.h.bf16 %v1660
        %v2764 = vunpack.c.l.bf16 %v1668
        %v2765 = vunpack.c.h.bf16 %v1668
        %v2766 = vunpack.c.l.bf16 %v1676
        %v2767 = vunpack.c.h.bf16 %v1676
        %v2768 = vunpack.c.l.bf16 %v1684
        %v2769 = vunpack.c.h.bf16 %v1684
        %v2770 = vunpack.c.l.bf16 %v1692
        %v2771 = vunpack.c.h.bf16 %v1692
        %v2772 = vunpack.c.l.bf16 %v1700
        %v2773 = vunpack.c.h.bf16 %v1700
        %v2774 = vunpack.c.l.bf16 %v1708
        %v2775 = vunpack.c.h.bf16 %v1708
        %v2776 = vunpack.c.l.bf16 %v1716
        %v2777 = vunpack.c.h.bf16 %v1716
        %v2810 = vunpack.c.l.b16 %v2714
        %v2811 = vunpack.c.l.b16 %v2715
        %v2812 = vunpack.c.l.b16 %v2716
        %v2813 = vunpack.c.l.b16 %v2717
        %v2814 = vunpack.c.l.b16 %v2718
        %v2815 = vunpack.c.l.b16 %v2719
        %v2816 = vunpack.c.l.b16 %v2720
        %v2817 = vunpack.c.l.b16 %v2721
        %v2818 = vunpack.c.l.b16 %v2722
        %v2819 = vunpack.c.l.b16 %v2723
        %v2820 = vunpack.c.l.b16 %v2724
        %v2821 = vunpack.c.l.b16 %v2725
        %v2822 = vunpack.c.l.b16 %v2726
        %v2823 = vunpack.c.l.b16 %v2727
        %v2824 = vunpack.c.l.b16 %v2728
        %v2825 = vunpack.c.l.b16 %v2729
        %v2826 = vunpack.c.l.b16 %v2730
        %v2827 = vunpack.c.l.b16 %v2731
        %v2828 = vunpack.c.l.b16 %v2732
        %v2829 = vunpack.c.l.b16 %v2733
        %v2830 = vunpack.c.l.b16 %v2734
        %v2831 = vunpack.c.l.b16 %v2735
        %v2832 = vunpack.c.l.b16 %v2736
        %v2833 = vunpack.c.l.b16 %v2737
        %v2834 = vunpack.c.l.b16 %v2738
        %v2835 = vunpack.c.l.b16 %v2739
        %v2836 = vunpack.c.l.b16 %v2740
        %v2837 = vunpack.c.l.b16 %v2741
        %v2838 = vunpack.c.l.b16 %v2742
        %v2839 = vunpack.c.l.b16 %v2743
        %v2840 = vunpack.c.l.b16 %v2744
        %v2841 = vunpack.c.l.b16 %v2745
        %v2842 = vpack.c.b16 %v2811, %v2810
        %v2843 = vpack.c.b16 %v2813, %v2812
        %v2844 = vpack.c.b16 %v2815, %v2814
        %v2845 = vpack.c.b16 %v2817, %v2816
        %v2846 = vpack.c.b16 %v2819, %v2818
        %v2847 = vpack.c.b16 %v2821, %v2820
        %v2848 = vpack.c.b16 %v2823, %v2822
        %v2849 = vpack.c.b16 %v2825, %v2824
        %v2850 = vpack.c.b16 %v2827, %v2826
        %v2851 = vpack.c.b16 %v2829, %v2828
        %v2852 = vpack.c.b16 %v2831, %v2830
        %v2853 = vpack.c.b16 %v2833, %v2832
        %v2854 = vpack.c.b16 %v2835, %v2834
        %v2855 = vpack.c.b16 %v2837, %v2836
        %v2856 = vpack.c.b16 %v2839, %v2838
        %v2857 = vpack.c.b16 %v2841, %v2840
        %2874 = vmatprep.subr.bf16.mxu0 0
        %2875 = vmatpush1.bf16.msra.mxu0 %v2842
        %2876 = vmatprep.subr.bf16.mxu0 0
        %2877 = vmatpush1.bf16.msra.mxu0 %v2843
        %2878 = vmatprep.subr.bf16.mxu0 0
        %2879 = vmatpush1.bf16.msra.mxu0 %v2844
        %2880 = vmatprep.subr.bf16.mxu0 0
        %2881 = vmatpush1.bf16.msra.mxu0 %v2845
        %2882 = vmatprep.subr.bf16.mxu0 0
        %2883 = vmatpush1.bf16.msra.mxu0 %v2846
        %2884 = vmatprep.subr.bf16.mxu0 0
        %2885 = vmatpush1.bf16.msra.mxu0 %v2847
        %2886 = vmatprep.subr.bf16.mxu0 0
        %2887 = vmatpush1.bf16.msra.mxu0 %v2848
        %2888 = vmatprep.subr.bf16.mxu0 0
        %2889 = vmatpush1.bf16.msra.mxu0 %v2849
        %2890 = vmatprep.subr.bf16.mxu0 0
        %2891 = vmatpush1.bf16.msra.mxu0 %v2850
        %2892 = vmatprep.subr.bf16.mxu0 0
        %2893 = vmatpush1.bf16.msra.mxu0 %v2851
        %2894 = vmatprep.subr.bf16.mxu0 0
        %2895 = vmatpush1.bf16.msra.mxu0 %v2852
        %2896 = vmatprep.subr.bf16.mxu0 0
        %2897 = vmatpush1.bf16.msra.mxu0 %v2853
        %2898 = vmatprep.subr.bf16.mxu0 0
        %2899 = vmatpush1.bf16.msra.mxu0 %v2854
        %2900 = vmatprep.subr.bf16.mxu0 0
        %2901 = vmatpush1.bf16.msra.mxu0 %v2855
        %2902 = vmatprep.subr.bf16.mxu0 0
        %2903 = vmatpush1.bf16.msra.mxu0 %v2856
        %2904 = vmatprep.subr.bf16.mxu0 0
        %2905 = vmatpush1.bf16.msra.mxu0 %v2857
        %2906 = vmatprep.mubr.bf16.mxu0 %v2683
        %2907 = vmatmul.mubr.bf16.gmra.mrb[0].mxu0 %v2682
        %v2908 = vpop.f32.mrb[0].mxu0
        %v2909 = vadd.f32 %v2746, %v2908
        %v2910 = vpop.f32.mrb[0].mxu0
        %v2911 = vpop.f32.mrb[0].mxu0
        %v2912 = vadd.f32 %v2747, %v2911
        %v2913 = vpop.f32.mrb[0].mxu0
        %2914 = vmatprep.mubr.bf16.mxu0 %v2685
        %2915 = vmatmul.mubr.bf16.gmra.mrb[0].mxu0 %v2684
        %v2916 = vpop.f32.mrb[0].mxu0
        %v2917 = vadd.f32 %v2748, %v2916
        %v2918 = vpop.f32.mrb[0].mxu0
        %v2919 = vpop.f32.mrb[0].mxu0
        %v2920 = vadd.f32 %v2749, %v2919
        %v2921 = vpop.f32.mrb[0].mxu0
        %2922 = vmatprep.mubr.bf16.mxu0 %v2687
        %2923 = vmatmul.mubr.bf16.gmra.mrb[0].mxu0 %v2686
        %v2924 = vpop.f32.mrb[0].mxu0
        %v2925 = vadd.f32 %v2750, %v2924
        %v2926 = vpop.f32.mrb[0].mxu0
        %v2927 = vpop.f32.mrb[0].mxu0
        %v2928 = vadd.f32 %v2751, %v2927
        %v2929 = vpop.f32.mrb[0].mxu0
        %2930 = vmatprep.mubr.bf16.mxu0 %v2689
        %2931 = vmatmul.mubr.bf16.gmra.mrb[0].mxu0 %v2688
        %v2932 = vpop.f32.mrb[0].mxu0
        %v2933 = vadd.f32 %v2752, %v2932
        %v2934 = vpop.f32.mrb[0].mxu0
        %v2935 = vpop.f32.mrb[0].mxu0
        %v2936 = vadd.f32 %v2753, %v2935
        %v2937 = vpop.f32.mrb[0].mxu0
        %2938 = vmatprep.mubr.bf16.mxu0 %v2691
        %2939 = vmatmul.mubr.bf16.gmra.mrb[0].mxu0 %v2690
        %v2940 = vpop.f32.mrb[0].mxu0
        %v2941 = vadd.f32 %v2754, %v2940
        %v2942 = vpop.f32.mrb[0].mxu0
        %v2943 = vpop.f32.mrb[0].mxu0
        %v2944 = vadd.f32 %v2755, %v2943
        %v2945 = vpop.f32.mrb[0].mxu0
        %2946 = vmatprep.mubr.bf16.mxu0 %v2693
        %2947 = vmatmul.mubr.bf16.gmra.mrb[0].mxu0 %v2692
        %v2948 = vpop.f32.mrb[0].mxu0
        %v2949 = vadd.f32 %v2756, %v2948
        %v2950 = vpop.f32.mrb[0].mxu0
        %v2951 = vpop.f32.mrb[0].mxu0
        %v2952 = vadd.f32 %v2757, %v2951
        %v2953 = vpop.f32.mrb[0].mxu0
        %2954 = vmatprep.mubr.bf16.mxu0 %v2695
        %2955 = vmatmul.mubr.bf16.gmra.mrb[0].mxu0 %v2694
        %v2956 = vpop.f32.mrb[0].mxu0
        %v2957 = vadd.f32 %v2758, %v2956
        %v2958 = vpop.f32.mrb[0].mxu0
        %v2959 = vpop.f32.mrb[0].mxu0
        %v2960 = vadd.f32 %v2759, %v2959
        %v2961 = vpop.f32.mrb[0].mxu0
        %2962 = vmatprep.mubr.bf16.mxu0 %v2697
        %2963 = vmatmul.mubr.bf16.gmra.mrb[0].mxu0 %v2696
        %v2964 = vpop.f32.mrb[0].mxu0
        %v2965 = vadd.f32 %v2760, %v2964
        %v2966 = vpop.f32.mrb[0].mxu0
        %v2967 = vpop.f32.mrb[0].mxu0
        %v2968 = vadd.f32 %v2761, %v2967
        %v2969 = vpop.f32.mrb[0].mxu0
        %2970 = vmatprep.mubr.bf16.mxu0 %v2699
        %2971 = vmatmul.mubr.bf16.gmra.mrb[0].mxu0 %v2698
        %v2972 = vpop.f32.mrb[0].mxu0
        %v2973 = vadd.f32 %v2762, %v2972
        %v2974 = vpop.f32.mrb[0].mxu0
        %v2975 = vpop.f32.mrb[0].mxu0
        %v2976 = vadd.f32 %v2763, %v2975
        %v2977 = vpop.f32.mrb[0].mxu0
        %2978 = vmatprep.mubr.bf16.mxu0 %v2701
        %2979 = vmatmul.mubr.bf16.gmra.mrb[0].mxu0 %v2700
        %v2980 = vpop.f32.mrb[0].mxu0
        %v2981 = vadd.f32 %v2764, %v2980
        %v2982 = vpop.f32.mrb[0].mxu0
        %v2983 = vpop.f32.mrb[0].mxu0
        %v2984 = vadd.f32 %v2765, %v2983
        %v2985 = vpop.f32.mrb[0].mxu0
        %2986 = vmatprep.mubr.bf16.mxu0 %v2703
        %2987 = vmatmul.mubr.bf16.gmra.mrb[0].mxu0 %v2702
        %v2988 = vpop.f32.mrb[0].mxu0
        %v2989 = vadd.f32 %v2766, %v2988
        %v2990 = vpop.f32.mrb[0].mxu0
        %v2991 = vpop.f32.mrb[0].mxu0
        %v2992 = vadd.f32 %v2767, %v2991
        %v2993 = vpop.f32.mrb[0].mxu0
        %2994 = vmatprep.mubr.bf16.mxu0 %v2705
        %2995 = vmatmul.mubr.bf16.gmra.mrb[0].mxu0 %v2704
        %v2996 = vpop.f32.mrb[0].mxu0
        %v2997 = vadd.f32 %v2768, %v2996
        %v2998 = vpop.f32.mrb[0].mxu0
        %v2999 = vpop.f32.mrb[0].mxu0
        %v3000 = vadd.f32 %v2769, %v2999
        %v3001 = vpop.f32.mrb[0].mxu0
        %3002 = vmatprep.mubr.bf16.mxu0 %v2707
        %3003 = vmatmul.mubr.bf16.gmra.mrb[0].mxu0 %v2706
        %v3004 = vpop.f32.mrb[0].mxu0
        %v3005 = vadd.f32 %v2770, %v3004
        %v3006 = vpop.f32.mrb[0].mxu0
        %v3007 = vpop.f32.mrb[0].mxu0
        %v3008 = vadd.f32 %v2771, %v3007
        %v3009 = vpop.f32.mrb[0].mxu0
        %3010 = vmatprep.mubr.bf16.mxu0 %v2709
        %3011 = vmatmul.mubr.bf16.gmra.mrb[0].mxu0 %v2708
        %v3012 = vpop.f32.mrb[0].mxu0
        %v3013 = vadd.f32 %v2772, %v3012
        %v3014 = vpop.f32.mrb[0].mxu0
        %v3015 = vpop.f32.mrb[0].mxu0
        %v3016 = vadd.f32 %v2773, %v3015
        %v3017 = vpop.f32.mrb[0].mxu0
        %3018 = vmatprep.mubr.bf16.mxu0 %v2711
        %3019 = vmatmul.mubr.bf16.gmra.mrb[0].mxu0 %v2710
        %v3020 = vpop.f32.mrb[0].mxu0
        %v3021 = vadd.f32 %v2774, %v3020
        %v3022 = vpop.f32.mrb[0].mxu0
        %v3023 = vpop.f32.mrb[0].mxu0
        %v3024 = vadd.f32 %v2775, %v3023
        %v3025 = vpop.f32.mrb[0].mxu0
        %3026 = vmatprep.mubr.bf16.mxu0 %v2713
        %3027 = vmatmul.mubr.bf16.gmra.mrb[0].mxu0 %v2712
        %v3028 = vpop.f32.mrb[0].mxu0
        %v3029 = vadd.f32 %v2776, %v3028
        %v3030 = vpop.f32.mrb[0].mxu0
        %v3031 = vpop.f32.mrb[0].mxu0
        %v3032 = vadd.f32 %v2777, %v3031
        %v3033 = vpop.f32.mrb[0].mxu0
        %3034 = vdwg.mxu0
        %v3035 = vtanh.pop %v2909
        %v3036 = vtanh.pop %v2912
        %v3037 = vtanh.pop %v2917
        %v3038 = vtanh.pop %v2920
        %v3039 = vtanh.pop %v2925
        %v3040 = vtanh.pop %v2928
        %v3041 = vtanh.pop %v2933
        %v3042 = vtanh.pop %v2936
        %v3043 = vtanh.pop %v2941
        %v3044 = vtanh.pop %v2944
        %v3045 = vtanh.pop %v2949
        %v3046 = vtanh.pop %v2952
        %v3047 = vtanh.pop %v2957
        %v3048 = vtanh.pop %v2960
        %v3049 = vtanh.pop %v2965
        %v3050 = vtanh.pop %v2968
        %v3051 = vtanh.pop %v2973
        %v3052 = vtanh.pop %v2976
        %v3053 = vtanh.pop %v2981
        %v3054 = vtanh.pop %v2984
        %v3055 = vtanh.pop %v2989
        %v3056 = vtanh.pop %v2992
        %v3057 = vtanh.pop %v2997
        %v3058 = vtanh.pop %v3000
        %v3059 = vtanh.pop %v3005
        %v3060 = vtanh.pop %v3008
        %v3061 = vtanh.pop %v3013
        %v3062 = vtanh.pop %v3016
        %v3063 = vtanh.pop %v3021
        %v3064 = vtanh.pop %v3024
        %v3065 = vtanh.pop %v3029
        %v3066 = vtanh.pop %v3032
        %v3067 = vpack.c.bf16 %v3036, %v3035
        %v3068 = vpack.c.bf16 %v3038, %v3037
        %v3069 = vpack.c.bf16 %v3040, %v3039
        %v3070 = vpack.c.bf16 %v3042, %v3041
        %v3071 = vpack.c.bf16 %v3044, %v3043
        %v3072 = vpack.c.bf16 %v3046, %v3045
        %v3073 = vpack.c.bf16 %v3048, %v3047
        %v3074 = vpack.c.bf16 %v3050, %v3049
        %v3075 = vpack.c.bf16 %v3052, %v3051
        %v3076 = vpack.c.bf16 %v3054, %v3053
        %v3077 = vpack.c.bf16 %v3056, %v3055
        %v3078 = vpack.c.bf16 %v3058, %v3057
        %v3079 = vpack.c.bf16 %v3060, %v3059
        %v3080 = vpack.c.bf16 %v3062, %v3061
        %v3081 = vpack.c.bf16 %v3064, %v3063
        %v3082 = vpack.c.bf16 %v3066, %v3065
        %v3083 = vld [vmem:[#allocation6] sm:$0xf]
        %v3084 = vld [vmem:[#allocation6 + $0x4] sm:$0xf]
        %v3085 = vld [vmem:[#allocation6 + $0x8] sm:$0xf]
        %v3086 = vld [vmem:[#allocation6 + $0xc] sm:$0xf]
        %v3087 = vld [vmem:[#allocation6 + $0x10] sm:$0xf]
        %v3088 = vld [vmem:[#allocation6 + $0x14] sm:$0xf]
        %v3089 = vld [vmem:[#allocation6 + $0x18] sm:$0xf]
        %v3090 = vld [vmem:[#allocation6 + $0x1c] sm:$0xf]
        %v3091 = vld [vmem:[#allocation6 + $0x20] sm:$0xf]
        %v3092 = vld [vmem:[#allocation6 + $0x24] sm:$0xf]
        %v3093 = vld [vmem:[#allocation6 + $0x28] sm:$0xf]
        %v3094 = vld [vmem:[#allocation6 + $0x2c] sm:$0xf]
        %v3095 = vld [vmem:[#allocation6 + $0x30] sm:$0xf]
        %v3096 = vld [vmem:[#allocation6 + $0x34] sm:$0xf]
        %v3097 = vld [vmem:[#allocation6 + $0x38] sm:$0xf]
        %v3098 = vld [vmem:[#allocation6 + $0x3c] sm:$0xf]
        %v3099 = vunpack.c.l.bf16 %v1597
        %v3100 = vunpack.c.h.bf16 %v1597
        %v3101 = vunpack.c.l.bf16 %v1605
        %v3102 = vunpack.c.h.bf16 %v1605
        %v3103 = vunpack.c.l.bf16 %v1613
        %v3104 = vunpack.c.h.bf16 %v1613
        %v3105 = vunpack.c.l.bf16 %v1621
        %v3106 = vunpack.c.h.bf16 %v1621
        %v3107 = vunpack.c.l.bf16 %v1629
        %v3108 = vunpack.c.h.bf16 %v1629
        %v3109 = vunpack.c.l.bf16 %v1637
        %v3110 = vunpack.c.h.bf16 %v1637
        %v3111 = vunpack.c.l.bf16 %v1645
        %v3112 = vunpack.c.h.bf16 %v1645
        %v3113 = vunpack.c.l.bf16 %v1653
        %v3114 = vunpack.c.h.bf16 %v1653
        %v3115 = vunpack.c.l.bf16 %v1661
        %v3116 = vunpack.c.h.bf16 %v1661
        %v3117 = vunpack.c.l.bf16 %v1669
        %v3118 = vunpack.c.h.bf16 %v1669
        %v3119 = vunpack.c.l.bf16 %v1677
        %v3120 = vunpack.c.h.bf16 %v1677
        %v3121 = vunpack.c.l.bf16 %v1685
        %v3122 = vunpack.c.h.bf16 %v1685
        %v3123 = vunpack.c.l.bf16 %v1693
        %v3124 = vunpack.c.h.bf16 %v1693
        %v3125 = vunpack.c.l.bf16 %v1701
        %v3126 = vunpack.c.h.bf16 %v1701
        %v3127 = vunpack.c.l.bf16 %v1709
        %v3128 = vunpack.c.h.bf16 %v1709
        %v3129 = vunpack.c.l.bf16 %v1717
        %v3130 = vunpack.c.h.bf16 %v1717
        %v3147 = vunpack.c.l.b16 %v3083
        %v3148 = vunpack.c.l.b16 %v3084
        %v3149 = vunpack.c.l.b16 %v3085
        %v3150 = vunpack.c.l.b16 %v3086
        %v3151 = vunpack.c.l.b16 %v3087
        %v3152 = vunpack.c.l.b16 %v3088
        %v3153 = vunpack.c.l.b16 %v3089
        %v3154 = vunpack.c.l.b16 %v3090
        %v3155 = vunpack.c.l.b16 %v3091
        %v3156 = vunpack.c.l.b16 %v3092
        %v3157 = vunpack.c.l.b16 %v3093
        %v3158 = vunpack.c.l.b16 %v3094
        %v3159 = vunpack.c.l.b16 %v3095
        %v3160 = vunpack.c.l.b16 %v3096
        %v3161 = vunpack.c.l.b16 %v3097
        %v3162 = vunpack.c.l.b16 %v3098
        %v3163 = vpack.c.b16 %v3148, %v3147
        %v3164 = vpack.c.b16 %v3150, %v3149
        %v3165 = vpack.c.b16 %v3152, %v3151
        %v3166 = vpack.c.b16 %v3154, %v3153
        %v3167 = vpack.c.b16 %v3156, %v3155
        %v3168 = vpack.c.b16 %v3158, %v3157
        %v3169 = vpack.c.b16 %v3160, %v3159
        %v3170 = vpack.c.b16 %v3162, %v3161
        %3179 = vmatprep.subr.bf16.mxu0 0
        %3180 = vmatpush1.bf16.msra.mxu0 %v3163
        %3181 = vmatprep.subr.bf16.mxu0 0
        %3182 = vmatpush1.bf16.msra.mxu0 %v3164
        %3183 = vmatprep.subr.bf16.mxu0 0
        %3184 = vmatpush1.bf16.msra.mxu0 %v3165
        %3185 = vmatprep.subr.bf16.mxu0 0
        %3186 = vmatpush1.bf16.msra.mxu0 %v3166
        %3187 = vmatprep.subr.bf16.mxu0 0
        %3188 = vmatpush1.bf16.msra.mxu0 %v3167
        %3189 = vmatprep.subr.bf16.mxu0 0
        %3190 = vmatpush1.bf16.msra.mxu0 %v3168
        %3191 = vmatprep.subr.bf16.mxu0 0
        %3192 = vmatpush1.bf16.msra.mxu0 %v3169
        %3193 = vmatprep.subr.bf16.mxu0 0
        %3194 = vmatpush1.bf16.msra.mxu0 %v3170
        %3195 = vmatprep.subr.bf16.mxu0 0
        %3196 = vmatpush1.bf16.msra.mxu0 0
        %3197 = vmatprep.subr.bf16.mxu0 0
        %3198 = vmatpush1.bf16.msra.mxu0 0
        %3199 = vmatprep.subr.bf16.mxu0 0
        %3200 = vmatpush1.bf16.msra.mxu0 0
        %3201 = vmatprep.subr.bf16.mxu0 0
        %3202 = vmatpush1.bf16.msra.mxu0 0
        %3203 = vmatprep.subr.bf16.mxu0 0
        %3204 = vmatpush1.bf16.msra.mxu0 0
        %3205 = vmatprep.subr.bf16.mxu0 0
        %3206 = vmatpush1.bf16.msra.mxu0 0
        %3207 = vmatprep.subr.bf16.mxu0 0
        %3208 = vmatpush1.bf16.msra.mxu0 0
        %3209 = vmatprep.subr.bf16.mxu0 0
        %3210 = vmatpush1.bf16.msra.mxu0 0
        %3211 = vmatprep.mubr.bf16.mxu0 0
        %3212 = vmatmul.mubr.bf16.gmra.mrb[0].mxu0 %v3067
        %v3213 = vpop.f32.mrb[0].mxu0
        %v3214 = vadd.f32 %v3099, %v3213
        %v3215 = vpop.f32.mrb[0].mxu0
        %v3216 = vpop.f32.mrb[0].mxu0
        %v3217 = vadd.f32 %v3100, %v3216
        %v3218 = vpop.f32.mrb[0].mxu0
        %3219 = vmatprep.mubr.bf16.mxu0 0
        %3220 = vmatmul.mubr.bf16.gmra.mrb[0].mxu0 %v3068
        %v3221 = vpop.f32.mrb[0].mxu0
        %v3222 = vadd.f32 %v3101, %v3221
        %v3223 = vpop.f32.mrb[0].mxu0
        %v3224 = vpop.f32.mrb[0].mxu0
        %v3225 = vadd.f32 %v3102, %v3224
        %v3226 = vpop.f32.mrb[0].mxu0
        %3227 = vmatprep.mubr.bf16.mxu0 0
        %3228 = vmatmul.mubr.bf16.gmra.mrb[0].mxu0 %v3069
        %v3229 = vpop.f32.mrb[0].mxu0
        %v3230 = vadd.f32 %v3103, %v3229
        %v3231 = vpop.f32.mrb[0].mxu0
        %v3232 = vpop.f32.mrb[0].mxu0
        %v3233 = vadd.f32 %v3104, %v3232
        %v3234 = vpop.f32.mrb[0].mxu0
        %3235 = vmatprep.mubr.bf16.mxu0 0
        %3236 = vmatmul.mubr.bf16.gmra.mrb[0].mxu0 %v3070
        %v3237 = vpop.f32.mrb[0].mxu0
        %v3238 = vadd.f32 %v3105, %v3237
        %v3239 = vpop.f32.mrb[0].mxu0
        %v3240 = vpop.f32.mrb[0].mxu0
        %v3241 = vadd.f32 %v3106, %v3240
        %v3242 = vpop.f32.mrb[0].mxu0
        %3243 = vmatprep.mubr.bf16.mxu0 0
        %3244 = vmatmul.mubr.bf16.gmra.mrb[0].mxu0 %v3071
        %v3245 = vpop.f32.mrb[0].mxu0
        %v3246 = vadd.f32 %v3107, %v3245
        %v3247 = vpop.f32.mrb[0].mxu0
        %v3248 = vpop.f32.mrb[0].mxu0
        %v3249 = vadd.f32 %v3108, %v3248
        %v3250 = vpop.f32.mrb[0].mxu0
        %3251 = vmatprep.mubr.bf16.mxu0 0
        %3252 = vmatmul.mubr.bf16.gmra.mrb[0].mxu0 %v3072
        %v3253 = vpop.f32.mrb[0].mxu0
        %v3254 = vadd.f32 %v3109, %v3253
        %v3255 = vpop.f32.mrb[0].mxu0
        %v3256 = vpop.f32.mrb[0].mxu0
        %v3257 = vadd.f32 %v3110, %v3256
        %v3258 = vpop.f32.mrb[0].mxu0
        %3259 = vmatprep.mubr.bf16.mxu0 0
        %3260 = vmatmul.mubr.bf16.gmra.mrb[0].mxu0 %v3073
        %v3261 = vpop.f32.mrb[0].mxu0
        %v3262 = vadd.f32 %v3111, %v3261
        %v3263 = vpop.f32.mrb[0].mxu0
        %v3264 = vpop.f32.mrb[0].mxu0
        %v3265 = vadd.f32 %v3112, %v3264
        %v3266 = vpop.f32.mrb[0].mxu0
        %3267 = vmatprep.mubr.bf16.mxu0 0
        %3268 = vmatmul.mubr.bf16.gmra.mrb[0].mxu0 %v3074
        %v3269 = vpop.f32.mrb[0].mxu0
        %v3270 = vadd.f32 %v3113, %v3269
        %v3271 = vpop.f32.mrb[0].mxu0
        %v3272 = vpop.f32.mrb[0].mxu0
        %v3273 = vadd.f32 %v3114, %v3272
        %v3274 = vpop.f32.mrb[0].mxu0
        %3275 = vmatprep.mubr.bf16.mxu0 0
        %3276 = vmatmul.mubr.bf16.gmra.mrb[0].mxu0 %v3075
        %v3277 = vpop.f32.mrb[0].mxu0
        %v3278 = vadd.f32 %v3115, %v3277
        %v3279 = vpop.f32.mrb[0].mxu0
        %v3280 = vpop.f32.mrb[0].mxu0
        %v3281 = vadd.f32 %v3116, %v3280
        %v3282 = vpop.f32.mrb[0].mxu0
        %3283 = vmatprep.mubr.bf16.mxu0 0
        %3284 = vmatmul.mubr.bf16.gmra.mrb[0].mxu0 %v3076
        %v3285 = vpop.f32.mrb[0].mxu0
        %v3286 = vadd.f32 %v3117, %v3285
        %v3287 = vpop.f32.mrb[0].mxu0
        %v3288 = vpop.f32.mrb[0].mxu0
        %v3289 = vadd.f32 %v3118, %v3288
        %v3290 = vpop.f32.mrb[0].mxu0
        %3291 = vmatprep.mubr.bf16.mxu0 0
        %3292 = vmatmul.mubr.bf16.gmra.mrb[0].mxu0 %v3077
        %v3293 = vpop.f32.mrb[0].mxu0
        %v3294 = vadd.f32 %v3119, %v3293
        %v3295 = vpop.f32.mrb[0].mxu0
        %v3296 = vpop.f32.mrb[0].mxu0
        %v3297 = vadd.f32 %v3120, %v3296
        %v3298 = vpop.f32.mrb[0].mxu0
        %3299 = vmatprep.mubr.bf16.mxu0 0
        %3300 = vmatmul.mubr.bf16.gmra.mrb[0].mxu0 %v3078
        %v3301 = vpop.f32.mrb[0].mxu0
        %v3302 = vadd.f32 %v3121, %v3301
        %v3303 = vpop.f32.mrb[0].mxu0
        %v3304 = vpop.f32.mrb[0].mxu0
        %v3305 = vadd.f32 %v3122, %v3304
        %v3306 = vpop.f32.mrb[0].mxu0
        %3307 = vmatprep.mubr.bf16.mxu0 0
        %3308 = vmatmul.mubr.bf16.gmra.mrb[0].mxu0 %v3079
        %v3309 = vpop.f32.mrb[0].mxu0
        %v3310 = vadd.f32 %v3123, %v3309
        %v3311 = vpop.f32.mrb[0].mxu0
        %v3312 = vpop.f32.mrb[0].mxu0
        %v3313 = vadd.f32 %v3124, %v3312
        %v3314 = vpop.f32.mrb[0].mxu0
        %3315 = vmatprep.mubr.bf16.mxu0 0
        %3316 = vmatmul.mubr.bf16.gmra.mrb[0].mxu0 %v3080
        %v3317 = vpop.f32.mrb[0].mxu0
        %v3318 = vadd.f32 %v3125, %v3317
        %v3319 = vpop.f32.mrb[0].mxu0
        %v3320 = vpop.f32.mrb[0].mxu0
        %v3321 = vadd.f32 %v3126, %v3320
        %v3322 = vpop.f32.mrb[0].mxu0
        %3323 = vmatprep.mubr.bf16.mxu0 0
        %3324 = vmatmul.mubr.bf16.gmra.mrb[0].mxu0 %v3081
        %v3325 = vpop.f32.mrb[0].mxu0
        %v3326 = vadd.f32 %v3127, %v3325
        %v3327 = vpop.f32.mrb[0].mxu0
        %v3328 = vpop.f32.mrb[0].mxu0
        %v3329 = vadd.f32 %v3128, %v3328
        %v3330 = vpop.f32.mrb[0].mxu0
        %3331 = vmatprep.mubr.bf16.mxu0 0
        %3332 = vmatmul.mubr.bf16.gmra.mrb[0].mxu0 %v3082
        %v3333 = vpop.f32.mrb[0].mxu0
        %v3334 = vadd.f32 %v3129, %v3333
        %v3335 = vpop.f32.mrb[0].mxu0
        %v3336 = vpop.f32.mrb[0].mxu0
        %v3337 = vadd.f32 %v3130, %v3336
        %v3338 = vpop.f32.mrb[0].mxu0
        %3339 = vdwg.mxu0
        %v3340 = vtanh.pop %v3214
        %v3341 = vtanh.pop %v3217
        %v3342 = vtanh.pop %v3222
        %v3343 = vtanh.pop %v3225
        %v3344 = vtanh.pop %v3230
        %v3345 = vtanh.pop %v3233
        %v3346 = vtanh.pop %v3238
        %v3347 = vtanh.pop %v3241
        %v3348 = vtanh.pop %v3246
        %v3349 = vtanh.pop %v3249
        %v3350 = vtanh.pop %v3254
        %v3351 = vtanh.pop %v3257
        %v3352 = vtanh.pop %v3262
        %v3353 = vtanh.pop %v3265
        %v3354 = vtanh.pop %v3270
        %v3355 = vtanh.pop %v3273
        %v3356 = vtanh.pop %v3278
        %v3357 = vtanh.pop %v3281
        %v3358 = vtanh.pop %v3286
        %v3359 = vtanh.pop %v3289
        %v3360 = vtanh.pop %v3294
        %v3361 = vtanh.pop %v3297
        %v3362 = vtanh.pop %v3302
        %v3363 = vtanh.pop %v3305
        %v3364 = vtanh.pop %v3310
        %v3365 = vtanh.pop %v3313
        %v3366 = vtanh.pop %v3318
        %v3367 = vtanh.pop %v3321
        %v3368 = vtanh.pop %v3326
        %v3369 = vtanh.pop %v3329
        %v3370 = vtanh.pop %v3334
        %v3371 = vtanh.pop %v3337
        %v3372 = vpack.c.bf16 %v3341, %v3340
        %v3373 = vpack.c.bf16 %v3343, %v3342
        %v3374 = vpack.c.bf16 %v3345, %v3344
        %v3375 = vpack.c.bf16 %v3347, %v3346
        %v3376 = vpack.c.bf16 %v3349, %v3348
        %v3377 = vpack.c.bf16 %v3351, %v3350
        %v3378 = vpack.c.bf16 %v3353, %v3352
        %v3379 = vpack.c.bf16 %v3355, %v3354
        %v3380 = vpack.c.bf16 %v3357, %v3356
        %v3381 = vpack.c.bf16 %v3359, %v3358
        %v3382 = vpack.c.bf16 %v3361, %v3360
        %v3383 = vpack.c.bf16 %v3363, %v3362
        %v3384 = vpack.c.bf16 %v3365, %v3364
        %v3385 = vpack.c.bf16 %v3367, %v3366
        %v3386 = vpack.c.bf16 %v3369, %v3368
        %v3387 = vpack.c.bf16 %v3371, %v3370
        %v3388 = vld [vmem:[%s6] sm:$0xf]
        %v3389 = vld [vmem:[%s6 + $0x4] sm:$0xf]
        %v3390 = vld [vmem:[%s6 + $0x8] sm:$0xf]
        %v3391 = vld [vmem:[%s6 + $0xc] sm:$0xf]
        %v3392 = vld [vmem:[%s6 + $0x10] sm:$0xf]
        %v3393 = vld [vmem:[%s6 + $0x14] sm:$0xf]
        %v3394 = vld [vmem:[%s6 + $0x18] sm:$0xf]
        %v3395 = vld [vmem:[%s6 + $0x1c] sm:$0xf]
        %v3396 = vld [vmem:[%s6 + $0x20] sm:$0xf]
        %v3397 = vld [vmem:[%s6 + $0x24] sm:$0xf]
        %v3398 = vld [vmem:[%s6 + $0x28] sm:$0xf]
        %v3399 = vld [vmem:[%s6 + $0x2c] sm:$0xf]
        %v3400 = vld [vmem:[%s6 + $0x30] sm:$0xf]
        %v3401 = vld [vmem:[%s6 + $0x34] sm:$0xf]
        %v3402 = vld [vmem:[%s6 + $0x38] sm:$0xf]
        %v3403 = vld [vmem:[%s6 + $0x3c] sm:$0xf]
        %v3404 = vunpack.c.l.bf16 %v1598
        %v3405 = vunpack.c.h.bf16 %v1598
        %v3406 = vunpack.c.l.bf16 %v1606
        %v3407 = vunpack.c.h.bf16 %v1606
        %v3408 = vunpack.c.l.bf16 %v1614
        %v3409 = vunpack.c.h.bf16 %v1614
        %v3410 = vunpack.c.l.bf16 %v1622
        %v3411 = vunpack.c.h.bf16 %v1622
        %v3412 = vunpack.c.l.bf16 %v1630
        %v3413 = vunpack.c.h.bf16 %v1630
        %v3414 = vunpack.c.l.bf16 %v1638
        %v3415 = vunpack.c.h.bf16 %v1638
        %v3416 = vunpack.c.l.bf16 %v1646
        %v3417 = vunpack.c.h.bf16 %v1646
        %v3418 = vunpack.c.l.bf16 %v1654
        %v3419 = vunpack.c.h.bf16 %v1654
        %v3420 = vunpack.c.l.bf16 %v1662
        %v3421 = vunpack.c.h.bf16 %v1662
        %v3422 = vunpack.c.l.bf16 %v1670
        %v3423 = vunpack.c.h.bf16 %v1670
        %v3424 = vunpack.c.l.bf16 %v1678
        %v3425 = vunpack.c.h.bf16 %v1678
        %v3426 = vunpack.c.l.bf16 %v1686
        %v3427 = vunpack.c.h.bf16 %v1686
        %v3428 = vunpack.c.l.bf16 %v1694
        %v3429 = vunpack.c.h.bf16 %v1694
        %v3430 = vunpack.c.l.bf16 %v1702
        %v3431 = vunpack.c.h.bf16 %v1702
        %v3432 = vunpack.c.l.bf16 %v1710
        %v3433 = vunpack.c.h.bf16 %v1710
        %v3434 = vunpack.c.l.bf16 %v1718
        %v3435 = vunpack.c.h.bf16 %v1718
        %v3452 = vunpack.c.l.b16 %v3388
        %v3453 = vunpack.c.l.b16 %v3389
        %v3454 = vunpack.c.l.b16 %v3390
        %v3455 = vunpack.c.l.b16 %v3391
        %v3456 = vunpack.c.l.b16 %v3392
        %v3457 = vunpack.c.l.b16 %v3393
        %v3458 = vunpack.c.l.b16 %v3394
        %v3459 = vunpack.c.l.b16 %v3395
        %v3460 = vunpack.c.l.b16 %v3396
        %v3461 = vunpack.c.l.b16 %v3397
        %v3462 = vunpack.c.l.b16 %v3398
        %v3463 = vunpack.c.l.b16 %v3399
        %v3464 = vunpack.c.l.b16 %v3400
        %v3465 = vunpack.c.l.b16 %v3401
        %v3466 = vunpack.c.l.b16 %v3402
        %v3467 = vunpack.c.l.b16 %v3403
        %v3468 = vpack.c.b16 %v3453, %v3452
        %v3469 = vpack.c.b16 %v3455, %v3454
        %v3470 = vpack.c.b16 %v3457, %v3456
        %v3471 = vpack.c.b16 %v3459, %v3458
        %v3472 = vpack.c.b16 %v3461, %v3460
        %v3473 = vpack.c.b16 %v3463, %v3462
        %v3474 = vpack.c.b16 %v3465, %v3464
        %v3475 = vpack.c.b16 %v3467, %v3466
        %3484 = vmatprep.subr.bf16.mxu0 0
        %3485 = vmatpush1.bf16.msra.mxu0 %v3468
        %3486 = vmatprep.subr.bf16.mxu0 0
        %3487 = vmatpush1.bf16.msra.mxu0 %v3469
        %3488 = vmatprep.subr.bf16.mxu0 0
        %3489 = vmatpush1.bf16.msra.mxu0 %v3470
        %3490 = vmatprep.subr.bf16.mxu0 0
        %3491 = vmatpush1.bf16.msra.mxu0 %v3471
        %3492 = vmatprep.subr.bf16.mxu0 0
        %3493 = vmatpush1.bf16.msra.mxu0 %v3472
        %3494 = vmatprep.subr.bf16.mxu0 0
        %3495 = vmatpush1.bf16.msra.mxu0 %v3473
        %3496 = vmatprep.subr.bf16.mxu0 0
        %3497 = vmatpush1.bf16.msra.mxu0 %v3474
        %3498 = vmatprep.subr.bf16.mxu0 0
        %3499 = vmatpush1.bf16.msra.mxu0 %v3475
        %3500 = vmatprep.subr.bf16.mxu0 0
        %3501 = vmatpush1.bf16.msra.mxu0 0
        %3502 = vmatprep.subr.bf16.mxu0 0
        %3503 = vmatpush1.bf16.msra.mxu0 0
        %3504 = vmatprep.subr.bf16.mxu0 0
        %3505 = vmatpush1.bf16.msra.mxu0 0
        %3506 = vmatprep.subr.bf16.mxu0 0
        %3507 = vmatpush1.bf16.msra.mxu0 0
        %3508 = vmatprep.subr.bf16.mxu0 0
        %3509 = vmatpush1.bf16.msra.mxu0 0
        %3510 = vmatprep.subr.bf16.mxu0 0
        %3511 = vmatpush1.bf16.msra.mxu0 0
        %3512 = vmatprep.subr.bf16.mxu0 0
        %3513 = vmatpush1.bf16.msra.mxu0 0
        %3514 = vmatprep.subr.bf16.mxu0 0
        %3515 = vmatpush1.bf16.msra.mxu0 0
        %3516 = vmatprep.mubr.bf16.mxu0 0
        %3517 = vmatmul.mubr.bf16.gmra.mrb[0].mxu0 %v3372
        %v3518 = vpop.f32.mrb[0].mxu0
        %v3519 = vadd.f32 %v3404, %v3518
        %v3520 = vpop.f32.mrb[0].mxu0
        %v3521 = vpop.f32.mrb[0].mxu0
        %v3522 = vadd.f32 %v3405, %v3521
        %v3523 = vpop.f32.mrb[0].mxu0
        %3524 = vmatprep.mubr.bf16.mxu0 0
        %3525 = vmatmul.mubr.bf16.gmra.mrb[0].mxu0 %v3373
        %v3526 = vpop.f32.mrb[0].mxu0
        %v3527 = vadd.f32 %v3406, %v3526
        %v3528 = vpop.f32.mrb[0].mxu0
        %v3529 = vpop.f32.mrb[0].mxu0
        %v3530 = vadd.f32 %v3407, %v3529
        %v3531 = vpop.f32.mrb[0].mxu0
        %3532 = vmatprep.mubr.bf16.mxu0 0
        %3533 = vmatmul.mubr.bf16.gmra.mrb[0].mxu0 %v3374
        %v3534 = vpop.f32.mrb[0].mxu0
        %v3535 = vadd.f32 %v3408, %v3534
        %v3536 = vpop.f32.mrb[0].mxu0
        %v3537 = vpop.f32.mrb[0].mxu0
        %v3538 = vadd.f32 %v3409, %v3537
        %v3539 = vpop.f32.mrb[0].mxu0
        %3540 = vmatprep.mubr.bf16.mxu0 0
        %3541 = vmatmul.mubr.bf16.gmra.mrb[0].mxu0 %v3375
        %v3542 = vpop.f32.mrb[0].mxu0
        %v3543 = vadd.f32 %v3410, %v3542
        %v3544 = vpop.f32.mrb[0].mxu0
        %v3545 = vpop.f32.mrb[0].mxu0
        %v3546 = vadd.f32 %v3411, %v3545
        %v3547 = vpop.f32.mrb[0].mxu0
        %3548 = vmatprep.mubr.bf16.mxu0 0
        %3549 = vmatmul.mubr.bf16.gmra.mrb[0].mxu0 %v3376
        %v3550 = vpop.f32.mrb[0].mxu0
        %v3551 = vadd.f32 %v3412, %v3550
        %v3552 = vpop.f32.mrb[0].mxu0
        %v3553 = vpop.f32.mrb[0].mxu0
        %v3554 = vadd.f32 %v3413, %v3553
        %v3555 = vpop.f32.mrb[0].mxu0
        %3556 = vmatprep.mubr.bf16.mxu0 0
        %3557 = vmatmul.mubr.bf16.gmra.mrb[0].mxu0 %v3377
        %v3558 = vpop.f32.mrb[0].mxu0
        %v3559 = vadd.f32 %v3414, %v3558
        %v3560 = vpop.f32.mrb[0].mxu0
        %v3561 = vpop.f32.mrb[0].mxu0
        %v3562 = vadd.f32 %v3415, %v3561
        %v3563 = vpop.f32.mrb[0].mxu0
        %3564 = vmatprep.mubr.bf16.mxu0 0
        %3565 = vmatmul.mubr.bf16.gmra.mrb[0].mxu0 %v3378
        %v3566 = vpop.f32.mrb[0].mxu0
        %v3567 = vadd.f32 %v3416, %v3566
        %v3568 = vpop.f32.mrb[0].mxu0
        %v3569 = vpop.f32.mrb[0].mxu0
        %v3570 = vadd.f32 %v3417, %v3569
        %v3571 = vpop.f32.mrb[0].mxu0
        %3572 = vmatprep.mubr.bf16.mxu0 0
        %3573 = vmatmul.mubr.bf16.gmra.mrb[0].mxu0 %v3379
        %v3574 = vpop.f32.mrb[0].mxu0
        %v3575 = vadd.f32 %v3418, %v3574
        %v3576 = vpop.f32.mrb[0].mxu0
        %v3577 = vpop.f32.mrb[0].mxu0
        %v3578 = vadd.f32 %v3419, %v3577
        %v3579 = vpop.f32.mrb[0].mxu0
        %3580 = vmatprep.mubr.bf16.mxu0 0
        %3581 = vmatmul.mubr.bf16.gmra.mrb[0].mxu0 %v3380
        %v3582 = vpop.f32.mrb[0].mxu0
        %v3583 = vadd.f32 %v3420, %v3582
        %v3584 = vpop.f32.mrb[0].mxu0
        %v3585 = vpop.f32.mrb[0].mxu0
        %v3586 = vadd.f32 %v3421, %v3585
        %v3587 = vpop.f32.mrb[0].mxu0
        %3588 = vmatprep.mubr.bf16.mxu0 0
        %3589 = vmatmul.mubr.bf16.gmra.mrb[0].mxu0 %v3381
        %v3590 = vpop.f32.mrb[0].mxu0
        %v3591 = vadd.f32 %v3422, %v3590
        %v3592 = vpop.f32.mrb[0].mxu0
        %v3593 = vpop.f32.mrb[0].mxu0
        %v3594 = vadd.f32 %v3423, %v3593
        %v3595 = vpop.f32.mrb[0].mxu0
        %3596 = vmatprep.mubr.bf16.mxu0 0
        %3597 = vmatmul.mubr.bf16.gmra.mrb[0].mxu0 %v3382
        %v3598 = vpop.f32.mrb[0].mxu0
        %v3599 = vadd.f32 %v3424, %v3598
        %v3600 = vpop.f32.mrb[0].mxu0
        %v3601 = vpop.f32.mrb[0].mxu0
        %v3602 = vadd.f32 %v3425, %v3601
        %v3603 = vpop.f32.mrb[0].mxu0
        %3604 = vmatprep.mubr.bf16.mxu0 0
        %3605 = vmatmul.mubr.bf16.gmra.mrb[0].mxu0 %v3383
        %v3606 = vpop.f32.mrb[0].mxu0
        %v3607 = vadd.f32 %v3426, %v3606
        %v3608 = vpop.f32.mrb[0].mxu0
        %v3609 = vpop.f32.mrb[0].mxu0
        %v3610 = vadd.f32 %v3427, %v3609
        %v3611 = vpop.f32.mrb[0].mxu0
        %3612 = vmatprep.mubr.bf16.mxu0 0
        %3613 = vmatmul.mubr.bf16.gmra.mrb[0].mxu0 %v3384
        %v3614 = vpop.f32.mrb[0].mxu0
        %v3615 = vadd.f32 %v3428, %v3614
        %v3616 = vpop.f32.mrb[0].mxu0
        %v3617 = vpop.f32.mrb[0].mxu0
        %v3618 = vadd.f32 %v3429, %v3617
        %v3619 = vpop.f32.mrb[0].mxu0
        %3620 = vmatprep.mubr.bf16.mxu0 0
        %3621 = vmatmul.mubr.bf16.gmra.mrb[0].mxu0 %v3385
        %v3622 = vpop.f32.mrb[0].mxu0
        %v3623 = vadd.f32 %v3430, %v3622
        %v3624 = vpop.f32.mrb[0].mxu0
        %v3625 = vpop.f32.mrb[0].mxu0
        %v3626 = vadd.f32 %v3431, %v3625
        %v3627 = vpop.f32.mrb[0].mxu0
        %3628 = vmatprep.mubr.bf16.mxu0 0
        %3629 = vmatmul.mubr.bf16.gmra.mrb[0].mxu0 %v3386
        %v3630 = vpop.f32.mrb[0].mxu0
        %v3631 = vadd.f32 %v3432, %v3630
        %v3632 = vpop.f32.mrb[0].mxu0
        %v3633 = vpop.f32.mrb[0].mxu0
        %v3634 = vadd.f32 %v3433, %v3633
        %v3635 = vpop.f32.mrb[0].mxu0
        %3636 = vmatprep.mubr.bf16.mxu0 0
        %3637 = vmatmul.mubr.bf16.gmra.mrb[0].mxu0 %v3387
        %v3638 = vpop.f32.mrb[0].mxu0
        %v3639 = vadd.f32 %v3434, %v3638
        %v3640 = vpop.f32.mrb[0].mxu0
        %v3641 = vpop.f32.mrb[0].mxu0
        %v3642 = vadd.f32 %v3435, %v3641
        %v3643 = vpop.f32.mrb[0].mxu0
        %3644 = vdwg.mxu0
        %v3645 = vtanh.pop %v3519
        %v3646 = vtanh.pop %v3522
        %v3647 = vtanh.pop %v3527
        %v3648 = vtanh.pop %v3530
        %v3649 = vtanh.pop %v3535
        %v3650 = vtanh.pop %v3538
        %v3651 = vtanh.pop %v3543
        %v3652 = vtanh.pop %v3546
        %v3653 = vtanh.pop %v3551
        %v3654 = vtanh.pop %v3554
        %v3655 = vtanh.pop %v3559
        %v3656 = vtanh.pop %v3562
        %v3657 = vtanh.pop %v3567
        %v3658 = vtanh.pop %v3570
        %v3659 = vtanh.pop %v3575
        %v3660 = vtanh.pop %v3578
        %v3661 = vtanh.pop %v3583
        %v3662 = vtanh.pop %v3586
        %v3663 = vtanh.pop %v3591
        %v3664 = vtanh.pop %v3594
        %v3665 = vtanh.pop %v3599
        %v3666 = vtanh.pop %v3602
        %v3667 = vtanh.pop %v3607
        %v3668 = vtanh.pop %v3610
        %v3669 = vtanh.pop %v3615
        %v3670 = vtanh.pop %v3618
        %v3671 = vtanh.pop %v3623
        %v3672 = vtanh.pop %v3626
        %v3673 = vtanh.pop %v3631
        %v3674 = vtanh.pop %v3634
        %v3675 = vtanh.pop %v3639
        %v3676 = vtanh.pop %v3642
        %v3677 = vpack.c.bf16 %v3646, %v3645
        %v3678 = vpack.c.bf16 %v3648, %v3647
        %v3679 = vpack.c.bf16 %v3650, %v3649
        %v3680 = vpack.c.bf16 %v3652, %v3651
        %v3681 = vpack.c.bf16 %v3654, %v3653
        %v3682 = vpack.c.bf16 %v3656, %v3655
        %v3683 = vpack.c.bf16 %v3658, %v3657
        %v3684 = vpack.c.bf16 %v3660, %v3659
        %v3685 = vpack.c.bf16 %v3662, %v3661
        %v3686 = vpack.c.bf16 %v3664, %v3663
        %v3687 = vpack.c.bf16 %v3666, %v3665
        %v3688 = vpack.c.bf16 %v3668, %v3667
        %v3689 = vpack.c.bf16 %v3670, %v3669
        %v3690 = vpack.c.bf16 %v3672, %v3671
        %v3691 = vpack.c.bf16 %v3674, %v3673
        %v3692 = vpack.c.bf16 %v3676, %v3675
        %v3693 = vld [vmem:[%s7] sm:$0xf]
        %v3694 = vld [vmem:[%s7 + $0x4] sm:$0xf]
        %v3695 = vld [vmem:[%s7 + $0x8] sm:$0xf]
        %v3696 = vld [vmem:[%s7 + $0xc] sm:$0xf]
        %v3697 = vld [vmem:[%s7 + $0x10] sm:$0xf]
        %v3698 = vld [vmem:[%s7 + $0x14] sm:$0xf]
        %v3699 = vld [vmem:[%s7 + $0x18] sm:$0xf]
        %v3700 = vld [vmem:[%s7 + $0x1c] sm:$0xf]
        %v3701 = vunpack.c.l.bf16 %v1599
        %v3702 = vunpack.c.h.bf16 %v1599
        %v3703 = vunpack.c.l.bf16 %v1607
        %v3704 = vunpack.c.h.bf16 %v1607
        %v3705 = vunpack.c.l.bf16 %v1615
        %v3706 = vunpack.c.h.bf16 %v1615
        %v3707 = vunpack.c.l.bf16 %v1623
        %v3708 = vunpack.c.h.bf16 %v1623
        %v3709 = vunpack.c.l.bf16 %v1631
        %v3710 = vunpack.c.h.bf16 %v1631
        %v3711 = vunpack.c.l.bf16 %v1639
        %v3712 = vunpack.c.h.bf16 %v1639
        %v3713 = vunpack.c.l.bf16 %v1647
        %v3714 = vunpack.c.h.bf16 %v1647
        %v3715 = vunpack.c.l.bf16 %v1655
        %v3716 = vunpack.c.h.bf16 %v1655
        %v3717 = vunpack.c.l.bf16 %v1663
        %v3718 = vunpack.c.h.bf16 %v1663
        %v3719 = vunpack.c.l.bf16 %v1671
        %v3720 = vunpack.c.h.bf16 %v1671
        %v3721 = vunpack.c.l.bf16 %v1679
        %v3722 = vunpack.c.h.bf16 %v1679
        %v3723 = vunpack.c.l.bf16 %v1687
        %v3724 = vunpack.c.h.bf16 %v1687
        %v3725 = vunpack.c.l.bf16 %v1695
        %v3726 = vunpack.c.h.bf16 %v1695
        %v3727 = vunpack.c.l.bf16 %v1703
        %v3728 = vunpack.c.h.bf16 %v1703
        %v3729 = vunpack.c.l.bf16 %v1711
        %v3730 = vunpack.c.h.bf16 %v1711
        %v3731 = vunpack.c.l.bf16 %v1719
        %v3732 = vunpack.c.h.bf16 %v1719
        %v3741 = vunpack.c.l.b16 %v3693
        %v3742 = vunpack.c.l.b16 %v3694
        %v3743 = vunpack.c.l.b16 %v3695
        %v3744 = vunpack.c.l.b16 %v3696
        %v3745 = vunpack.c.l.b16 %v3697
        %v3746 = vunpack.c.l.b16 %v3698
        %v3747 = vunpack.c.l.b16 %v3699
        %v3748 = vunpack.c.l.b16 %v3700
        %v3749 = vpack.c.b16 %v3742, %v3741
        %v3750 = vpack.c.b16 %v3744, %v3743
        %v3751 = vpack.c.b16 %v3746, %v3745
        %v3752 = vpack.c.b16 %v3748, %v3747
        %vm3757 = vcmask 523264
        %v3759 = vsel %vm3757, %v3677, 0
        %v3762 = vsel %vm3757, %v3678, 0
        %v3765 = vsel %vm3757, %v3679, 0
        %v3768 = vsel %vm3757, %v3680, 0
        %v3771 = vsel %vm3757, %v3681, 0
        %v3774 = vsel %vm3757, %v3682, 0
        %v3777 = vsel %vm3757, %v3683, 0
        %v3780 = vsel %vm3757, %v3684, 0
        %v3783 = vsel %vm3757, %v3685, 0
        %v3786 = vsel %vm3757, %v3686, 0
        %v3789 = vsel %vm3757, %v3687, 0
        %v3792 = vsel %vm3757, %v3688, 0
        %v3795 = vsel %vm3757, %v3689, 0
        %v3798 = vsel %vm3757, %v3690, 0
        %v3801 = vsel %vm3757, %v3691, 0
        %v3804 = vsel %vm3757, %v3692, 0
        %3806 = vmatprep.subr.bf16.mxu0 0
        %3807 = vmatpush1.bf16.msra.mxu0 %v3749
        %3808 = vmatprep.subr.bf16.mxu0 0
        %3809 = vmatpush1.bf16.msra.mxu0 %v3750
        %3810 = vmatprep.subr.bf16.mxu0 0
        %3811 = vmatpush1.bf16.msra.mxu0 %v3751
        %3812 = vmatprep.subr.bf16.mxu0 0
        %3813 = vmatpush1.bf16.msra.mxu0 %v3752
        %3814 = vmatprep.subr.bf16.mxu0 0
        %3815 = vmatpush1.bf16.msra.mxu0 0
        %3816 = vmatprep.subr.bf16.mxu0 0
        %3817 = vmatpush1.bf16.msra.mxu0 0
        %3818 = vmatprep.subr.bf16.mxu0 0
        %3819 = vmatpush1.bf16.msra.mxu0 0
        %3820 = vmatprep.subr.bf16.mxu0 0
        %3821 = vmatpush1.bf16.msra.mxu0 0
        %3822 = vmatprep.subr.bf16.mxu0 0
        %3823 = vmatpush1.bf16.msra.mxu0 0
        %3824 = vmatprep.subr.bf16.mxu0 0
        %3825 = vmatpush1.bf16.msra.mxu0 0
        %3826 = vmatprep.subr.bf16.mxu0 0
        %3827 = vmatpush1.bf16.msra.mxu0 0
        %3828 = vmatprep.subr.bf16.mxu0 0
        %3829 = vmatpush1.bf16.msra.mxu0 0
        %3830 = vmatprep.subr.bf16.mxu0 0
        %3831 = vmatpush1.bf16.msra.mxu0 0
        %3832 = vmatprep.subr.bf16.mxu0 0
        %3833 = vmatpush1.bf16.msra.mxu0 0
        %3834 = vmatprep.subr.bf16.mxu0 0
        %3835 = vmatpush1.bf16.msra.mxu0 0
        %3836 = vmatprep.subr.bf16.mxu0 0
        %3837 = vmatpush1.bf16.msra.mxu0 0
        %3838 = vmatprep.mubr.bf16.mxu0 0
        %3839 = vmatmul.mubr.bf16.gmra.mrb[0].mxu0 %v3759
        %v3840 = vpop.f32.mrb[0].mxu0
        %v3841 = vadd.f32 %v3701, %v3840
        %v3842 = vpop.f32.mrb[0].mxu0
        %v3843 = vpop.f32.mrb[0].mxu0
        %v3844 = vadd.f32 %v3702, %v3843
        %v3845 = vpop.f32.mrb[0].mxu0
        %3846 = vmatprep.mubr.bf16.mxu0 0
        %3847 = vmatmul.mubr.bf16.gmra.mrb[0].mxu0 %v3762
        %v3848 = vpop.f32.mrb[0].mxu0
        %v3849 = vadd.f32 %v3703, %v3848
        %v3850 = vpop.f32.mrb[0].mxu0
        %v3851 = vpop.f32.mrb[0].mxu0
        %v3852 = vadd.f32 %v3704, %v3851
        %v3853 = vpop.f32.mrb[0].mxu0
        %3854 = vmatprep.mubr.bf16.mxu0 0
        %3855 = vmatmul.mubr.bf16.gmra.mrb[0].mxu0 %v3765
        %v3856 = vpop.f32.mrb[0].mxu0
        %v3857 = vadd.f32 %v3705, %v3856
        %v3858 = vpop.f32.mrb[0].mxu0
        %v3859 = vpop.f32.mrb[0].mxu0
        %v3860 = vadd.f32 %v3706, %v3859
        %v3861 = vpop.f32.mrb[0].mxu0
        %3862 = vmatprep.mubr.bf16.mxu0 0
        %3863 = vmatmul.mubr.bf16.gmra.mrb[0].mxu0 %v3768
        %v3864 = vpop.f32.mrb[0].mxu0
        %v3865 = vadd.f32 %v3707, %v3864
        %v3866 = vpop.f32.mrb[0].mxu0
        %v3867 = vpop.f32.mrb[0].mxu0
        %v3868 = vadd.f32 %v3708, %v3867
        %v3869 = vpop.f32.mrb[0].mxu0
        %3870 = vmatprep.mubr.bf16.mxu0 0
        %3871 = vmatmul.mubr.bf16.gmra.mrb[0].mxu0 %v3771
        %v3872 = vpop.f32.mrb[0].mxu0
        %v3873 = vadd.f32 %v3709, %v3872
        %v3874 = vpop.f32.mrb[0].mxu0
        %v3875 = vpop.f32.mrb[0].mxu0
        %v3876 = vadd.f32 %v3710, %v3875
        %v3877 = vpop.f32.mrb[0].mxu0
        %3878 = vmatprep.mubr.bf16.mxu0 0
        %3879 = vmatmul.mubr.bf16.gmra.mrb[0].mxu0 %v3774
        %v3880 = vpop.f32.mrb[0].mxu0
        %v3881 = vadd.f32 %v3711, %v3880
        %v3882 = vpop.f32.mrb[0].mxu0
        %v3883 = vpop.f32.mrb[0].mxu0
        %v3884 = vadd.f32 %v3712, %v3883
        %v3885 = vpop.f32.mrb[0].mxu0
        %3886 = vmatprep.mubr.bf16.mxu0 0
        %3887 = vmatmul.mubr.bf16.gmra.mrb[0].mxu0 %v3777
        %v3888 = vpop.f32.mrb[0].mxu0
        %v3889 = vadd.f32 %v3713, %v3888
        %v3890 = vpop.f32.mrb[0].mxu0
        %v3891 = vpop.f32.mrb[0].mxu0
        %v3892 = vadd.f32 %v3714, %v3891
        %v3893 = vpop.f32.mrb[0].mxu0
        %3894 = vmatprep.mubr.bf16.mxu0 0
        %3895 = vmatmul.mubr.bf16.gmra.mrb[0].mxu0 %v3780
        %v3896 = vpop.f32.mrb[0].mxu0
        %v3897 = vadd.f32 %v3715, %v3896
        %v3898 = vpop.f32.mrb[0].mxu0
        %v3899 = vpop.f32.mrb[0].mxu0
        %v3900 = vadd.f32 %v3716, %v3899
        %v3901 = vpop.f32.mrb[0].mxu0
        %3902 = vmatprep.mubr.bf16.mxu0 0
        %3903 = vmatmul.mubr.bf16.gmra.mrb[0].mxu0 %v3783
        %v3904 = vpop.f32.mrb[0].mxu0
        %v3905 = vadd.f32 %v3717, %v3904
        %v3906 = vpop.f32.mrb[0].mxu0
        %v3907 = vpop.f32.mrb[0].mxu0
        %v3908 = vadd.f32 %v3718, %v3907
        %v3909 = vpop.f32.mrb[0].mxu0
        %3910 = vmatprep.mubr.bf16.mxu0 0
        %3911 = vmatmul.mubr.bf16.gmra.mrb[0].mxu0 %v3786
        %v3912 = vpop.f32.mrb[0].mxu0
        %v3913 = vadd.f32 %v3719, %v3912
        %v3914 = vpop.f32.mrb[0].mxu0
        %v3915 = vpop.f32.mrb[0].mxu0
        %v3916 = vadd.f32 %v3720, %v3915
        %v3917 = vpop.f32.mrb[0].mxu0
        %3918 = vmatprep.mubr.bf16.mxu0 0
        %3919 = vmatmul.mubr.bf16.gmra.mrb[0].mxu0 %v3789
        %v3920 = vpop.f32.mrb[0].mxu0
        %v3921 = vadd.f32 %v3721, %v3920
        %v3922 = vpop.f32.mrb[0].mxu0
        %v3923 = vpop.f32.mrb[0].mxu0
        %v3924 = vadd.f32 %v3722, %v3923
        %v3925 = vpop.f32.mrb[0].mxu0
        %3926 = vmatprep.mubr.bf16.mxu0 0
        %3927 = vmatmul.mubr.bf16.gmra.mrb[0].mxu0 %v3792
        %v3928 = vpop.f32.mrb[0].mxu0
        %v3929 = vadd.f32 %v3723, %v3928
        %v3930 = vpop.f32.mrb[0].mxu0
        %v3931 = vpop.f32.mrb[0].mxu0
        %v3932 = vadd.f32 %v3724, %v3931
        %v3933 = vpop.f32.mrb[0].mxu0
        %3934 = vmatprep.mubr.bf16.mxu0 0
        %3935 = vmatmul.mubr.bf16.gmra.mrb[0].mxu0 %v3795
        %v3936 = vpop.f32.mrb[0].mxu0
        %v3937 = vadd.f32 %v3725, %v3936
        %v3938 = vpop.f32.mrb[0].mxu0
        %v3939 = vpop.f32.mrb[0].mxu0
        %v3940 = vadd.f32 %v3726, %v3939
        %v3941 = vpop.f32.mrb[0].mxu0
        %3942 = vmatprep.mubr.bf16.mxu0 0
        %3943 = vmatmul.mubr.bf16.gmra.mrb[0].mxu0 %v3798
        %v3944 = vpop.f32.mrb[0].mxu0
        %v3945 = vadd.f32 %v3727, %v3944
        %v3946 = vpop.f32.mrb[0].mxu0
        %v3947 = vpop.f32.mrb[0].mxu0
        %v3948 = vadd.f32 %v3728, %v3947
        %v3949 = vpop.f32.mrb[0].mxu0
        %3950 = vmatprep.mubr.bf16.mxu0 0
        %3951 = vmatmul.mubr.bf16.gmra.mrb[0].mxu0 %v3801
        %v3952 = vpop.f32.mrb[0].mxu0
        %v3953 = vadd.f32 %v3729, %v3952
        %v3954 = vpop.f32.mrb[0].mxu0
        %v3955 = vpop.f32.mrb[0].mxu0
        %v3956 = vadd.f32 %v3730, %v3955
        %v3957 = vpop.f32.mrb[0].mxu0
        %3958 = vmatprep.mubr.bf16.mxu0 0
        %3959 = vmatmul.mubr.bf16.gmra.mrb[0].mxu0 %v3804
        %v3960 = vpop.f32.mrb[0].mxu0
        %v3961 = vadd.f32 %v3731, %v3960
        %v3962 = vpop.f32.mrb[0].mxu0
        %v3963 = vpop.f32.mrb[0].mxu0
        %v3964 = vadd.f32 %v3732, %v3963
        %v3965 = vpop.f32.mrb[0].mxu0
        %3966 = vdwg.mxu0
        %v3967 = vtanh.pop %v3841
        %v3968 = vtanh.pop %v3844
        %v3969 = vtanh.pop %v3849
        %v3970 = vtanh.pop %v3852
        %v3971 = vtanh.pop %v3857
        %v3972 = vtanh.pop %v3860
        %v3973 = vtanh.pop %v3865
        %v3974 = vtanh.pop %v3868
        %v3975 = vtanh.pop %v3873
        %v3976 = vtanh.pop %v3876
        %v3977 = vtanh.pop %v3881
        %v3978 = vtanh.pop %v3884
        %v3979 = vtanh.pop %v3889
        %v3980 = vtanh.pop %v3892
        %v3981 = vtanh.pop %v3897
        %v3982 = vtanh.pop %v3900
        %v3983 = vtanh.pop %v3905
        %v3984 = vtanh.pop %v3908
        %v3985 = vtanh.pop %v3913
        %v3986 = vtanh.pop %v3916
        %v3987 = vtanh.pop %v3921
        %v3988 = vtanh.pop %v3924
        %v3989 = vtanh.pop %v3929
        %v3990 = vtanh.pop %v3932
        %v3991 = vtanh.pop %v3937
        %v3992 = vtanh.pop %v3940
        %v3993 = vtanh.pop %v3945
        %v3994 = vtanh.pop %v3948
        %v3995 = vtanh.pop %v3953
        %v3996 = vtanh.pop %v3956
        %v3997 = vtanh.pop %v3961
        %v3998 = vtanh.pop %v3964
        %v3999 = vpack.c.bf16 %v3968, %v3967
        %v4000 = vpack.c.bf16 %v3970, %v3969
        %v4001 = vpack.c.bf16 %v3972, %v3971
        %v4002 = vpack.c.bf16 %v3974, %v3973
        %v4003 = vpack.c.bf16 %v3976, %v3975
        %v4004 = vpack.c.bf16 %v3978, %v3977
        %v4005 = vpack.c.bf16 %v3980, %v3979
        %v4006 = vpack.c.bf16 %v3982, %v3981
        %v4007 = vpack.c.bf16 %v3984, %v3983
        %v4008 = vpack.c.bf16 %v3986, %v3985
        %v4009 = vpack.c.bf16 %v3988, %v3987
        %v4010 = vpack.c.bf16 %v3990, %v3989
        %v4011 = vpack.c.bf16 %v3992, %v3991
        %v4012 = vpack.c.bf16 %v3994, %v3993
        %v4013 = vpack.c.bf16 %v3996, %v3995
        %v4014 = vpack.c.bf16 %v3998, %v3997
        %v4015 = vld [vmem:[%s10] sm:$0xf]
        %v4016 = vld [vmem:[%s10 + $0x4] sm:$0xf]
        %v4017 = vld [vmem:[%s10 + $0x8] sm:$0xf]
        %v4018 = vld [vmem:[%s10 + $0xc] sm:$0xf]
        %v4019 = vld [vmem:[%s11] sm:$0x1]
        %v4021 = vlaneseq
        %v4022 = vshrl.u32 %v4021, 7
        %v4023 = vsub.s32 0, %v4022
        %v4024 = vrot.slane %v4019, %v4023
        %v4030 = vunpack.c.l.b16 %v4015
        %v4031 = vunpack.c.l.b16 %v4016
        %v4032 = vunpack.c.l.b16 %v4017
        %v4033 = vunpack.c.l.b16 %v4018
        %v4034 = vpack.c.b16 %v4031, %v4030
        %v4035 = vpack.c.b16 %v4033, %v4032
        %v4039 = vsel %vm771, %v3999, 0
        %v4042 = vsel %vm771, %v4000, 0
        %v4045 = vsel %vm771, %v4001, 0
        %v4048 = vsel %vm771, %v4002, 0
        %v4051 = vsel %vm771, %v4003, 0
        %v4054 = vsel %vm771, %v4004, 0
        %v4057 = vsel %vm771, %v4005, 0
        %v4060 = vsel %vm771, %v4006, 0
        %v4063 = vsel %vm771, %v4007, 0
        %v4066 = vsel %vm771, %v4008, 0
        %v4069 = vsel %vm771, %v4009, 0
        %v4072 = vsel %vm771, %v4010, 0
        %v4075 = vsel %vm771, %v4011, 0
        %v4078 = vsel %vm771, %v4012, 0
        %v4081 = vsel %vm771, %v4013, 0
        %v4084 = vsel %vm771, %v4014, 0
        %4086 = vmatprep.subr.bf16.mxu0 0
        %4087 = vmatpush1.bf16.msra.mxu0 %v4034
        %4088 = vmatprep.subr.bf16.mxu0 0
        %4089 = vmatpush1.bf16.msra.mxu0 %v4035
        %4090 = vmatprep.subr.bf16.mxu0 0
        %4091 = vmatpush1.bf16.msra.mxu0 0
        %4092 = vmatprep.subr.bf16.mxu0 0
        %4093 = vmatpush1.bf16.msra.mxu0 0
        %4094 = vmatprep.subr.bf16.mxu0 0
        %4095 = vmatpush1.bf16.msra.mxu0 0
        %4096 = vmatprep.subr.bf16.mxu0 0
        %4097 = vmatpush1.bf16.msra.mxu0 0
        %4098 = vmatprep.subr.bf16.mxu0 0
        %4099 = vmatpush1.bf16.msra.mxu0 0
        %4100 = vmatprep.subr.bf16.mxu0 0
        %4101 = vmatpush1.bf16.msra.mxu0 0
        %4102 = vmatprep.subr.bf16.mxu0 0
        %4103 = vmatpush1.bf16.msra.mxu0 0
        %4104 = vmatprep.subr.bf16.mxu0 0
        %4105 = vmatpush1.bf16.msra.mxu0 0
        %4106 = vmatprep.subr.bf16.mxu0 0
        %4107 = vmatpush1.bf16.msra.mxu0 0
        %4108 = vmatprep.subr.bf16.mxu0 0
        %4109 = vmatpush1.bf16.msra.mxu0 0
        %4110 = vmatprep.subr.bf16.mxu0 0
        %4111 = vmatpush1.bf16.msra.mxu0 0
        %4112 = vmatprep.subr.bf16.mxu0 0
        %4113 = vmatpush1.bf16.msra.mxu0 0
        %4114 = vmatprep.subr.bf16.mxu0 0
        %4115 = vmatpush1.bf16.msra.mxu0 0
        %4116 = vmatprep.subr.bf16.mxu0 0
        %4117 = vmatpush1.bf16.msra.mxu0 0
        %4118 = vmatprep.mubr.bf16.mxu0 0
        %4119 = vmatmul.mubr.bf16.gmra.mrb[0].mxu0 %v4039
        %v4120 = vpop.f32.mrb[0].mxu0
        %v4121 = vadd.f32 %v4024, %v4120
        %v4122 = vpop.f32.mrb[0].mxu0
        %v4123 = vpop.f32.mrb[0].mxu0
        %v4124 = vadd.f32 %v4024, %v4123
        %v4125 = vpop.f32.mrb[0].mxu0
        %4126 = vmatprep.mubr.bf16.mxu0 0
        %4127 = vmatmul.mubr.bf16.gmra.mrb[0].mxu0 %v4042
        %v4128 = vpop.f32.mrb[0].mxu0
        %v4129 = vadd.f32 %v4024, %v4128
        %v4130 = vpop.f32.mrb[0].mxu0
        %v4131 = vpop.f32.mrb[0].mxu0
        %v4132 = vadd.f32 %v4024, %v4131
        %v4133 = vpop.f32.mrb[0].mxu0
        %4134 = vmatprep.mubr.bf16.mxu0 0
        %4135 = vmatmul.mubr.bf16.gmra.mrb[0].mxu0 %v4045
        %v4136 = vpop.f32.mrb[0].mxu0
        %v4137 = vadd.f32 %v4024, %v4136
        %v4138 = vpop.f32.mrb[0].mxu0
        %v4139 = vpop.f32.mrb[0].mxu0
        %v4140 = vadd.f32 %v4024, %v4139
        %v4141 = vpop.f32.mrb[0].mxu0
        %4142 = vmatprep.mubr.bf16.mxu0 0
        %4143 = vmatmul.mubr.bf16.gmra.mrb[0].mxu0 %v4048
        %v4144 = vpop.f32.mrb[0].mxu0
        %v4145 = vadd.f32 %v4024, %v4144
        %v4146 = vpop.f32.mrb[0].mxu0
        %v4147 = vpop.f32.mrb[0].mxu0
        %v4148 = vadd.f32 %v4024, %v4147
        %v4149 = vpop.f32.mrb[0].mxu0
        %4150 = vmatprep.mubr.bf16.mxu0 0
        %4151 = vmatmul.mubr.bf16.gmra.mrb[0].mxu0 %v4051
        %v4152 = vpop.f32.mrb[0].mxu0
        %v4153 = vadd.f32 %v4024, %v4152
        %v4154 = vpop.f32.mrb[0].mxu0
        %v4155 = vpop.f32.mrb[0].mxu0
        %v4156 = vadd.f32 %v4024, %v4155
        %v4157 = vpop.f32.mrb[0].mxu0
        %4158 = vmatprep.mubr.bf16.mxu0 0
        %4159 = vmatmul.mubr.bf16.gmra.mrb[0].mxu0 %v4054
        %v4160 = vpop.f32.mrb[0].mxu0
        %v4161 = vadd.f32 %v4024, %v4160
        %v4162 = vpop.f32.mrb[0].mxu0
        %v4163 = vpop.f32.mrb[0].mxu0
        %v4164 = vadd.f32 %v4024, %v4163
        %v4165 = vpop.f32.mrb[0].mxu0
        %4166 = vmatprep.mubr.bf16.mxu0 0
        %4167 = vmatmul.mubr.bf16.gmra.mrb[0].mxu0 %v4057
        %v4168 = vpop.f32.mrb[0].mxu0
        %v4169 = vadd.f32 %v4024, %v4168
        %v4170 = vpop.f32.mrb[0].mxu0
        %v4171 = vpop.f32.mrb[0].mxu0
        %v4172 = vadd.f32 %v4024, %v4171
        %v4173 = vpop.f32.mrb[0].mxu0
        %4174 = vmatprep.mubr.bf16.mxu0 0
        %4175 = vmatmul.mubr.bf16.gmra.mrb[0].mxu0 %v4060
        %v4176 = vpop.f32.mrb[0].mxu0
        %v4177 = vadd.f32 %v4024, %v4176
        %v4178 = vpop.f32.mrb[0].mxu0
        %v4179 = vpop.f32.mrb[0].mxu0
        %v4180 = vadd.f32 %v4024, %v4179
        %v4181 = vpop.f32.mrb[0].mxu0
        %4182 = vmatprep.mubr.bf16.mxu0 0
        %4183 = vmatmul.mubr.bf16.gmra.mrb[0].mxu0 %v4063
        %v4184 = vpop.f32.mrb[0].mxu0
        %v4185 = vadd.f32 %v4024, %v4184
        %v4186 = vpop.f32.mrb[0].mxu0
        %v4187 = vpop.f32.mrb[0].mxu0
        %v4188 = vadd.f32 %v4024, %v4187
        %v4189 = vpop.f32.mrb[0].mxu0
        %4190 = vmatprep.mubr.bf16.mxu0 0
        %4191 = vmatmul.mubr.bf16.gmra.mrb[0].mxu0 %v4066
        %v4192 = vpop.f32.mrb[0].mxu0
        %v4193 = vadd.f32 %v4024, %v4192
        %v4194 = vpop.f32.mrb[0].mxu0
        %v4195 = vpop.f32.mrb[0].mxu0
        %v4196 = vadd.f32 %v4024, %v4195
        %v4197 = vpop.f32.mrb[0].mxu0
        %4198 = vmatprep.mubr.bf16.mxu0 0
        %4199 = vmatmul.mubr.bf16.gmra.mrb[0].mxu0 %v4069
        %v4200 = vpop.f32.mrb[0].mxu0
        %v4201 = vadd.f32 %v4024, %v4200
        %v4202 = vpop.f32.mrb[0].mxu0
        %v4203 = vpop.f32.mrb[0].mxu0
        %v4204 = vadd.f32 %v4024, %v4203
        %v4205 = vpop.f32.mrb[0].mxu0
        %4206 = vmatprep.mubr.bf16.mxu0 0
        %4207 = vmatmul.mubr.bf16.gmra.mrb[0].mxu0 %v4072
        %v4208 = vpop.f32.mrb[0].mxu0
        %v4209 = vadd.f32 %v4024, %v4208
        %v4210 = vpop.f32.mrb[0].mxu0
        %v4211 = vpop.f32.mrb[0].mxu0
        %v4212 = vadd.f32 %v4024, %v4211
        %v4213 = vpop.f32.mrb[0].mxu0
        %4214 = vmatprep.mubr.bf16.mxu0 0
        %4215 = vmatmul.mubr.bf16.gmra.mrb[0].mxu0 %v4075
        %v4216 = vpop.f32.mrb[0].mxu0
        %v4217 = vadd.f32 %v4024, %v4216
        %v4218 = vpop.f32.mrb[0].mxu0
        %v4219 = vpop.f32.mrb[0].mxu0
        %v4220 = vadd.f32 %v4024, %v4219
        %v4221 = vpop.f32.mrb[0].mxu0
        %4222 = vmatprep.mubr.bf16.mxu0 0
        %4223 = vmatmul.mubr.bf16.gmra.mrb[0].mxu0 %v4078
        %v4224 = vpop.f32.mrb[0].mxu0
        %v4225 = vadd.f32 %v4024, %v4224
        %v4226 = vpop.f32.mrb[0].mxu0
        %v4227 = vpop.f32.mrb[0].mxu0
        %v4228 = vadd.f32 %v4024, %v4227
        %v4229 = vpop.f32.mrb[0].mxu0
        %4230 = vmatprep.mubr.bf16.mxu0 0
        %4231 = vmatmul.mubr.bf16.gmra.mrb[0].mxu0 %v4081
        %v4232 = vpop.f32.mrb[0].mxu0
        %v4233 = vadd.f32 %v4024, %v4232
        %v4234 = vpop.f32.mrb[0].mxu0
        %v4235 = vpop.f32.mrb[0].mxu0
        %v4236 = vadd.f32 %v4024, %v4235
        %v4237 = vpop.f32.mrb[0].mxu0
        %4238 = vmatprep.mubr.bf16.mxu0 0
        %4239 = vmatmul.mubr.bf16.gmra.mrb[0].mxu0 %v4084
        %v4240 = vpop.f32.mrb[0].mxu0
        %v4241 = vadd.f32 %v4024, %v4240
        %v4242 = vpop.f32.mrb[0].mxu0
        %v4243 = vpop.f32.mrb[0].mxu0
        %v4244 = vadd.f32 %v4024, %v4243
        %v4245 = vpop.f32.mrb[0].mxu0
        %4246 = vdwg.mxu0
        %v4247 = vpack.c.bf16 %v4124, %v4121
        %v4248 = vpack.c.bf16 %v4132, %v4129
        %v4249 = vpack.c.bf16 %v4140, %v4137
        %v4250 = vpack.c.bf16 %v4148, %v4145
        %v4251 = vpack.c.bf16 %v4156, %v4153
        %v4252 = vpack.c.bf16 %v4164, %v4161
        %v4253 = vpack.c.bf16 %v4172, %v4169
        %v4254 = vpack.c.bf16 %v4180, %v4177
        %v4255 = vpack.c.bf16 %v4188, %v4185
        %v4256 = vpack.c.bf16 %v4196, %v4193
        %v4257 = vpack.c.bf16 %v4204, %v4201
        %v4258 = vpack.c.bf16 %v4212, %v4209
        %v4259 = vpack.c.bf16 %v4220, %v4217
        %v4260 = vpack.c.bf16 %v4228, %v4225
        %v4261 = vpack.c.bf16 %v4236, %v4233
        %v4262 = vpack.c.bf16 %v4244, %v4241
        %v4279 = vunpack.c.l.b16 %v4247
        %v4280 = vunpack.c.h.b16 %v4247
        %v4281 = vunpack.c.l.b16 %v4248
        %v4282 = vunpack.c.h.b16 %v4248
        %v4283 = vunpack.c.l.b16 %v4249
        %v4284 = vunpack.c.h.b16 %v4249
        %v4285 = vunpack.c.l.b16 %v4250
        %v4286 = vunpack.c.h.b16 %v4250
        %v4287 = vunpack.c.l.b16 %v4251
        %v4288 = vunpack.c.h.b16 %v4251
        %v4289 = vunpack.c.l.b16 %v4252
        %v4290 = vunpack.c.h.b16 %v4252
        %v4291 = vunpack.c.l.b16 %v4253
        %v4292 = vunpack.c.h.b16 %v4253
        %v4293 = vunpack.c.l.b16 %v4254
        %v4294 = vunpack.c.h.b16 %v4254
        %v4295 = vunpack.c.l.b16 %v4255
        %v4296 = vunpack.c.h.b16 %v4255
        %v4297 = vunpack.c.l.b16 %v4256
        %v4298 = vunpack.c.h.b16 %v4256
        %v4299 = vunpack.c.l.b16 %v4257
        %v4300 = vunpack.c.h.b16 %v4257
        %v4301 = vunpack.c.l.b16 %v4258
        %v4302 = vunpack.c.h.b16 %v4258
        %v4303 = vunpack.c.l.b16 %v4259
        %v4304 = vunpack.c.h.b16 %v4259
        %v4305 = vunpack.c.l.b16 %v4260
        %v4306 = vunpack.c.h.b16 %v4260
        %v4307 = vunpack.c.l.b16 %v4261
        %v4308 = vunpack.c.h.b16 %v4261
        %v4309 = vunpack.c.l.b16 %v4262
        %v4310 = vunpack.c.h.b16 %v4262
        %v4311 = vpack.c.b16 %v4279, %v4279
        %v4312 = vpack.c.b16 %v4280, %v4280
        %v4313 = vpack.c.b16 %v4281, %v4281
        %v4314 = vpack.c.b16 %v4282, %v4282
        %v4315 = vpack.c.b16 %v4283, %v4283
        %v4316 = vpack.c.b16 %v4284, %v4284
        %v4317 = vpack.c.b16 %v4285, %v4285
        %v4318 = vpack.c.b16 %v4286, %v4286
        %v4319 = vpack.c.b16 %v4287, %v4287
        %v4320 = vpack.c.b16 %v4288, %v4288
        %v4321 = vpack.c.b16 %v4289, %v4289
        %v4322 = vpack.c.b16 %v4290, %v4290
        %v4323 = vpack.c.b16 %v4291, %v4291
        %v4324 = vpack.c.b16 %v4292, %v4292
        %v4325 = vpack.c.b16 %v4293, %v4293
        %v4326 = vpack.c.b16 %v4294, %v4294
        %v4327 = vpack.c.b16 %v4295, %v4295
        %v4328 = vpack.c.b16 %v4296, %v4296
        %v4329 = vpack.c.b16 %v4297, %v4297
        %v4330 = vpack.c.b16 %v4298, %v4298
        %v4331 = vpack.c.b16 %v4299, %v4299
        %v4332 = vpack.c.b16 %v4300, %v4300
        %v4333 = vpack.c.b16 %v4301, %v4301
        %v4334 = vpack.c.b16 %v4302, %v4302
        %v4335 = vpack.c.b16 %v4303, %v4303
        %v4336 = vpack.c.b16 %v4304, %v4304
        %v4337 = vpack.c.b16 %v4305, %v4305
        %v4338 = vpack.c.b16 %v4306, %v4306
        %v4339 = vpack.c.b16 %v4307, %v4307
        %v4340 = vpack.c.b16 %v4308, %v4308
        %v4341 = vpack.c.b16 %v4309, %v4309
        %v4342 = vpack.c.b16 %v4310, %v4310
        %4375 = vst [vmem:[%s502] sm:$0xf] %v4311
        %4376 = vst [vmem:[%s502 + $0x4] sm:$0xf] %v4312
        %4377 = vst [vmem:[%s502 + $0x8] sm:$0xf] %v4313
        %4378 = vst [vmem:[%s502 + $0xc] sm:$0xf] %v4314
        %4379 = vst [vmem:[%s502 + $0x10] sm:$0xf] %v4315
        %4380 = vst [vmem:[%s502 + $0x14] sm:$0xf] %v4316
        %4381 = vst [vmem:[%s502 + $0x18] sm:$0xf] %v4317
        %4382 = vst [vmem:[%s502 + $0x1c] sm:$0xf] %v4318
        %4383 = vst [vmem:[%s502 + $0x20] sm:$0xf] %v4319
        %4384 = vst [vmem:[%s502 + $0x24] sm:$0xf] %v4320
        %4385 = vst [vmem:[%s502 + $0x28] sm:$0xf] %v4321
        %4386 = vst [vmem:[%s502 + $0x2c] sm:$0xf] %v4322
        %4387 = vst [vmem:[%s502 + $0x30] sm:$0xf] %v4323
        %4388 = vst [vmem:[%s502 + $0x34] sm:$0xf] %v4324
        %4389 = vst [vmem:[%s502 + $0x38] sm:$0xf] %v4325
        %4390 = vst [vmem:[%s502 + $0x3c] sm:$0xf] %v4326
        %4391 = vst [vmem:[%s502 + $0x40] sm:$0xf] %v4327
        %4392 = vst [vmem:[%s502 + $0x44] sm:$0xf] %v4328
        %4393 = vst [vmem:[%s502 + $0x48] sm:$0xf] %v4329
        %4394 = vst [vmem:[%s502 + $0x4c] sm:$0xf] %v4330
        %4395 = vst [vmem:[%s502 + $0x50] sm:$0xf] %v4331
        %4396 = vst [vmem:[%s502 + $0x54] sm:$0xf] %v4332
        %4397 = vst [vmem:[%s502 + $0x58] sm:$0xf] %v4333
        %4398 = vst [vmem:[%s502 + $0x5c] sm:$0xf] %v4334
        %4399 = vst [vmem:[%s502 + $0x60] sm:$0xf] %v4335
        %4400 = vst [vmem:[%s502 + $0x64] sm:$0xf] %v4336
        %4401 = vst [vmem:[%s502 + $0x68] sm:$0xf] %v4337
        %4402 = vst [vmem:[%s502 + $0x6c] sm:$0xf] %v4338
        %4403 = vst [vmem:[%s502 + $0x70] sm:$0xf] %v4339
        %4404 = vst [vmem:[%s502 + $0x74] sm:$0xf] %v4340
        %4405 = vst [vmem:[%s502 + $0x78] sm:$0xf] %v4341
        %4406 = vst [vmem:[%s502 + $0x7c] sm:$0xf] %v4342
        %s4407 = sand.u32 %s296, 1
        %s4408 = sand.u32 %s296, 1
        %s4409 = smul.addr %s4408, 128
        %s4410 = scalar_lea.vmem [#allocation9], %s4409
        // Predicated region
        $region85: #{deepsdf_like_forward.1} parent=67 // pred_check
          %p4411 = pneg %p306
        $region86: #{deepsdf_like_forward.1} parent=67 // pred_check_branch
          %4413 = sbr.rel (%p4411) target = $region88
        $region87: #{deepsdf_like_forward.1} parent=67 // pred_region
          %s4414 = smul.u32 32, %s26
          %s4415 = ssub.s32 50, %s4414
          %p4416 = scmp.lt.s32.totalorder %s4415, 32
          %s4417 = scalar_select %p4416, %s4415, 32
          %s4418 = smul.u32 64, %s4417
          %p4419 = scmp.ne.s32.totalorder 0, %s4418
          %s4420 = smul.addr %s4414, 4
          %s4421 = scalar_lea.vmem %s12, %s4420
          // Predicated region
          $region89: #{deepsdf_like_forward.1} parent=87 // pred_check
            %p4422 = pneg %p4419
          $region90: #{deepsdf_like_forward.1} parent=87 // pred_check_branch
            %4424 = sbr.rel (%p4422) target = $region92
          $region91: #{deepsdf_like_forward.1} parent=87 // pred_region
            // Predicated region
            $region93: #{deepsdf_like_forward.1} parent=91 // pred_check
              _
            $region94: #{deepsdf_like_forward.1} parent=91 // pred_check_branch
              %4426 = sbr.rel target = $region96
            $region95: #{deepsdf_like_forward.1} parent=91 // pred_region
              // Predicated region
              $region115: #{deepsdf_like_forward.1} parent=95 // pred_check
                _
              $region116: #{deepsdf_like_forward.1} parent=95 // pred_check_branch
                %4537 = sbr.rel (0) target = $region118
              $region117: #{deepsdf_like_forward.1} parent=95 // pred_region
                %s4539 = sshrl.u32 %s4417, 5
                // While loop
                $region119: #{deepsdf_like_forward.1} parent=117 // loop_pre_header
                  _
                $region120: #{deepsdf_like_forward.1} parent=117 // loop_header
                  %s4541 = sphi 0, %s4543
                  %p4542 = scmp.ge.s32.totalorder %s4541, %s4539
                  %s4546 = sphi 0, %s4615
                  %s4547 = sphi %s4410, %s4618
                  %s4548 = sphi %s4421, %s4619
                $region121: #{deepsdf_like_forward.1} parent=117 // loop_header_branch
                  %4545 = sbr.rel (%p4542) target = $region125
                $region122: #{deepsdf_like_forward.1} parent=117 // loop_body
                  %v4549 = vld [vmem:[%s4547] sm:$0xf]
                  %4550 = vst [vmem:[%s4548] sm:$0xf] %v4549
                  %v4551 = vld [vmem:[%s4547 + $0x4] sm:$0xf]
                  %4552 = vst [vmem:[%s4548 + $0x4] sm:$0xf] %v4551
                  %v4553 = vld [vmem:[%s4547 + $0x8] sm:$0xf]
                  %4554 = vst [vmem:[%s4548 + $0x8] sm:$0xf] %v4553
                  %v4555 = vld [vmem:[%s4547 + $0xc] sm:$0xf]
                  %4556 = vst [vmem:[%s4548 + $0xc] sm:$0xf] %v4555
                  %v4557 = vld [vmem:[%s4547 + $0x10] sm:$0xf]
                  %4558 = vst [vmem:[%s4548 + $0x10] sm:$0xf] %v4557
                  %v4559 = vld [vmem:[%s4547 + $0x14] sm:$0xf]
                  %4560 = vst [vmem:[%s4548 + $0x14] sm:$0xf] %v4559
                  %v4561 = vld [vmem:[%s4547 + $0x18] sm:$0xf]
                  %4562 = vst [vmem:[%s4548 + $0x18] sm:$0xf] %v4561
                  %v4563 = vld [vmem:[%s4547 + $0x1c] sm:$0xf]
                  %4564 = vst [vmem:[%s4548 + $0x1c] sm:$0xf] %v4563
                  %v4565 = vld [vmem:[%s4547 + $0x20] sm:$0xf]
                  %4566 = vst [vmem:[%s4548 + $0x20] sm:$0xf] %v4565
                  %v4567 = vld [vmem:[%s4547 + $0x24] sm:$0xf]
                  %4568 = vst [vmem:[%s4548 + $0x24] sm:$0xf] %v4567
                  %v4569 = vld [vmem:[%s4547 + $0x28] sm:$0xf]
                  %4570 = vst [vmem:[%s4548 + $0x28] sm:$0xf] %v4569
                  %v4571 = vld [vmem:[%s4547 + $0x2c] sm:$0xf]
                  %4572 = vst [vmem:[%s4548 + $0x2c] sm:$0xf] %v4571
                  %v4573 = vld [vmem:[%s4547 + $0x30] sm:$0xf]
                  %4574 = vst [vmem:[%s4548 + $0x30] sm:$0xf] %v4573
                  %v4575 = vld [vmem:[%s4547 + $0x34] sm:$0xf]
                  %4576 = vst [vmem:[%s4548 + $0x34] sm:$0xf] %v4575
                  %v4577 = vld [vmem:[%s4547 + $0x38] sm:$0xf]
                  %4578 = vst [vmem:[%s4548 + $0x38] sm:$0xf] %v4577
                  %v4579 = vld [vmem:[%s4547 + $0x3c] sm:$0xf]
                  %4580 = vst [vmem:[%s4548 + $0x3c] sm:$0xf] %v4579
                  %v4581 = vld [vmem:[%s4547 + $0x40] sm:$0xf]
                  %4582 = vst [vmem:[%s4548 + $0x40] sm:$0xf] %v4581
                  %v4583 = vld [vmem:[%s4547 + $0x44] sm:$0xf]
                  %4584 = vst [vmem:[%s4548 + $0x44] sm:$0xf] %v4583
                  %v4585 = vld [vmem:[%s4547 + $0x48] sm:$0xf]
                  %4586 = vst [vmem:[%s4548 + $0x48] sm:$0xf] %v4585
                  %v4587 = vld [vmem:[%s4547 + $0x4c] sm:$0xf]
                  %4588 = vst [vmem:[%s4548 + $0x4c] sm:$0xf] %v4587
                  %v4589 = vld [vmem:[%s4547 + $0x50] sm:$0xf]
                  %4590 = vst [vmem:[%s4548 + $0x50] sm:$0xf] %v4589
                  %v4591 = vld [vmem:[%s4547 + $0x54] sm:$0xf]
                  %4592 = vst [vmem:[%s4548 + $0x54] sm:$0xf] %v4591
                  %v4593 = vld [vmem:[%s4547 + $0x58] sm:$0xf]
                  %4594 = vst [vmem:[%s4548 + $0x58] sm:$0xf] %v4593
                  %v4595 = vld [vmem:[%s4547 + $0x5c] sm:$0xf]
                  %4596 = vst [vmem:[%s4548 + $0x5c] sm:$0xf] %v4595
                  %v4597 = vld [vmem:[%s4547 + $0x60] sm:$0xf]
                  %4598 = vst [vmem:[%s4548 + $0x60] sm:$0xf] %v4597
                  %v4599 = vld [vmem:[%s4547 + $0x64] sm:$0xf]
                  %4600 = vst [vmem:[%s4548 + $0x64] sm:$0xf] %v4599
                  %v4601 = vld [vmem:[%s4547 + $0x68] sm:$0xf]
                  %4602 = vst [vmem:[%s4548 + $0x68] sm:$0xf] %v4601
                  %v4603 = vld [vmem:[%s4547 + $0x6c] sm:$0xf]
                  %4604 = vst [vmem:[%s4548 + $0x6c] sm:$0xf] %v4603
                  %v4605 = vld [vmem:[%s4547 + $0x70] sm:$0xf]
                  %4606 = vst [vmem:[%s4548 + $0x70] sm:$0xf] %v4605
                  %v4607 = vld [vmem:[%s4547 + $0x74] sm:$0xf]
                  %4608 = vst [vmem:[%s4548 + $0x74] sm:$0xf] %v4607
                  %v4609 = vld [vmem:[%s4547 + $0x78] sm:$0xf]
                  %4610 = vst [vmem:[%s4548 + $0x78] sm:$0xf] %v4609
                  %v4611 = vld [vmem:[%s4547 + $0x7c] sm:$0xf]
                  %4612 = vst [vmem:[%s4548 + $0x7c] sm:$0xf] %v4611
                  %s4613 = sadd.s32 1, %s4546
                  %p4614 = scmp.ge.s32.totalorder %s4613, %s4539
                  %s4615 = scalar_select %p4614, 0, %s4613
                  %s4616 = smul.u32 %s4615, 128
                  %s4617 = smul.u32 %s4615, 128
                  %s4618 = scalar_lea.vmem %s4410, %s4616 [#allocation9]
                  %s4619 = scalar_lea.vmem %s4421, %s4617
                $region123: #{deepsdf_like_forward.1} parent=117 // loop_footer
                  %s4543 = sadd.s32 %s4541, 1
                $region124: #{deepsdf_like_forward.1} parent=117 // loop_footer_branch
                  %4540 = sbr.rel target = $region120
                $region125: #{deepsdf_like_forward.1} parent=117 // loop_exit
                  _
                %s4620 = sshrl.u32 %s4417, 5
                %s4621 = sand.u32 %s4417, 31
                %s4622 = smul.u32 %s4620, 32
                %s4623 = smul.u32 4, %s4622
                %s4624 = scalar_lea.vmem %s4410, %s4623 [#allocation9]
                %s4625 = smul.u32 4, %s4622
                %s4626 = scalar_lea.vmem %s4421, %s4625
                // While loop
                $region126: #{deepsdf_like_forward.1} parent=117 // loop_pre_header
                  _
                $region127: #{deepsdf_like_forward.1} parent=117 // loop_header
                  %s4628 = sphi 0, %s4630
                  %p4629 = scmp.ge.s32.totalorder %s4628, %s4621
                  %s4633 = sphi 0, %s4640
                  %s4634 = sphi %s4624, %s4643
                  %s4635 = sphi %s4626, %s4644
                $region128: #{deepsdf_like_forward.1} parent=117 // loop_header_branch
                  %4632 = sbr.rel (%p4629) target = $region132
                $region129: #{deepsdf_like_forward.1} parent=117 // loop_body
                  %v4636 = vld [vmem:[%s4634] sm:$0xf]
                  %4637 = vst [vmem:[%s4635] sm:$0xf] %v4636
                  %s4638 = sadd.s32 1, %s4633
                  %p4639 = scmp.ge.s32.totalorder %s4638, %s4621
                  %s4640 = scalar_select %p4639, 0, %s4638
                  %s4641 = smul.u32 %s4640, 4
                  %s4642 = smul.u32 %s4640, 4
                  %s4643 = scalar_lea.vmem %s4624, %s4641 [#allocation9]
                  %s4644 = scalar_lea.vmem %s4626, %s4642
                $region130: #{deepsdf_like_forward.1} parent=117 // loop_footer
                  %s4630 = sadd.s32 %s4628, 1
                $region131: #{deepsdf_like_forward.1} parent=117 // loop_footer_branch
                  %4627 = sbr.rel target = $region127
                $region132: #{deepsdf_like_forward.1} parent=117 // loop_exit
                  _
              $region118: #{deepsdf_like_forward.1} parent=95 // pred_fallthru
                _
            $region96: #{deepsdf_like_forward.1} parent=91 // pred_fallthru
              _
            // Predicated region
            $region97: #{deepsdf_like_forward.1} parent=91 // pred_check
              _
            $region98: #{deepsdf_like_forward.1} parent=91 // pred_check_branch
              %4428 = sbr.rel (0) target = $region100
            $region99: #{deepsdf_like_forward.1} parent=91 // pred_region
              %s4430 = sshrl.u32 %s4417, 5
              // While loop
              $region101: #{deepsdf_like_forward.1} parent=99 // loop_pre_header
                _
              $region102: #{deepsdf_like_forward.1} parent=99 // loop_header
                %s4432 = sphi 0, %s4434
                %p4433 = scmp.ge.s32.totalorder %s4432, %s4430
                %s4437 = sphi 0, %s4506
                %s4438 = sphi %s4410, %s4509
                %s4439 = sphi %s4421, %s4510
              $region103: #{deepsdf_like_forward.1} parent=99 // loop_header_branch
                %4436 = sbr.rel (%p4433) target = $region107
              $region104: #{deepsdf_like_forward.1} parent=99 // loop_body
                %v4440 = vld [vmem:[%s4438] sm:$0xf]
                %4441 = vst [vmem:[%s4439] sm:$0xf] %v4440
                %v4442 = vld [vmem:[%s4438 + $0x4] sm:$0xf]
                %4443 = vst [vmem:[%s4439 + $0x4] sm:$0xf] %v4442
                %v4444 = vld [vmem:[%s4438 + $0x8] sm:$0xf]
                %4445 = vst [vmem:[%s4439 + $0x8] sm:$0xf] %v4444
                %v4446 = vld [vmem:[%s4438 + $0xc] sm:$0xf]
                %4447 = vst [vmem:[%s4439 + $0xc] sm:$0xf] %v4446
                %v4448 = vld [vmem:[%s4438 + $0x10] sm:$0xf]
                %4449 = vst [vmem:[%s4439 + $0x10] sm:$0xf] %v4448
                %v4450 = vld [vmem:[%s4438 + $0x14] sm:$0xf]
                %4451 = vst [vmem:[%s4439 + $0x14] sm:$0xf] %v4450
                %v4452 = vld [vmem:[%s4438 + $0x18] sm:$0xf]
                %4453 = vst [vmem:[%s4439 + $0x18] sm:$0xf] %v4452
                %v4454 = vld [vmem:[%s4438 + $0x1c] sm:$0xf]
                %4455 = vst [vmem:[%s4439 + $0x1c] sm:$0xf] %v4454
                %v4456 = vld [vmem:[%s4438 + $0x20] sm:$0xf]
                %4457 = vst [vmem:[%s4439 + $0x20] sm:$0xf] %v4456
                %v4458 = vld [vmem:[%s4438 + $0x24] sm:$0xf]
                %4459 = vst [vmem:[%s4439 + $0x24] sm:$0xf] %v4458
                %v4460 = vld [vmem:[%s4438 + $0x28] sm:$0xf]
                %4461 = vst [vmem:[%s4439 + $0x28] sm:$0xf] %v4460
                %v4462 = vld [vmem:[%s4438 + $0x2c] sm:$0xf]
                %4463 = vst [vmem:[%s4439 + $0x2c] sm:$0xf] %v4462
                %v4464 = vld [vmem:[%s4438 + $0x30] sm:$0xf]
                %4465 = vst [vmem:[%s4439 + $0x30] sm:$0xf] %v4464
                %v4466 = vld [vmem:[%s4438 + $0x34] sm:$0xf]
                %4467 = vst [vmem:[%s4439 + $0x34] sm:$0xf] %v4466
                %v4468 = vld [vmem:[%s4438 + $0x38] sm:$0xf]
                %4469 = vst [vmem:[%s4439 + $0x38] sm:$0xf] %v4468
                %v4470 = vld [vmem:[%s4438 + $0x3c] sm:$0xf]
                %4471 = vst [vmem:[%s4439 + $0x3c] sm:$0xf] %v4470
                %v4472 = vld [vmem:[%s4438 + $0x40] sm:$0xf]
                %4473 = vst [vmem:[%s4439 + $0x40] sm:$0xf] %v4472
                %v4474 = vld [vmem:[%s4438 + $0x44] sm:$0xf]
                %4475 = vst [vmem:[%s4439 + $0x44] sm:$0xf] %v4474
                %v4476 = vld [vmem:[%s4438 + $0x48] sm:$0xf]
                %4477 = vst [vmem:[%s4439 + $0x48] sm:$0xf] %v4476
                %v4478 = vld [vmem:[%s4438 + $0x4c] sm:$0xf]
                %4479 = vst [vmem:[%s4439 + $0x4c] sm:$0xf] %v4478
                %v4480 = vld [vmem:[%s4438 + $0x50] sm:$0xf]
                %4481 = vst [vmem:[%s4439 + $0x50] sm:$0xf] %v4480
                %v4482 = vld [vmem:[%s4438 + $0x54] sm:$0xf]
                %4483 = vst [vmem:[%s4439 + $0x54] sm:$0xf] %v4482
                %v4484 = vld [vmem:[%s4438 + $0x58] sm:$0xf]
                %4485 = vst [vmem:[%s4439 + $0x58] sm:$0xf] %v4484
                %v4486 = vld [vmem:[%s4438 + $0x5c] sm:$0xf]
                %4487 = vst [vmem:[%s4439 + $0x5c] sm:$0xf] %v4486
                %v4488 = vld [vmem:[%s4438 + $0x60] sm:$0xf]
                %4489 = vst [vmem:[%s4439 + $0x60] sm:$0xf] %v4488
                %v4490 = vld [vmem:[%s4438 + $0x64] sm:$0xf]
                %4491 = vst [vmem:[%s4439 + $0x64] sm:$0xf] %v4490
                %v4492 = vld [vmem:[%s4438 + $0x68] sm:$0xf]
                %4493 = vst [vmem:[%s4439 + $0x68] sm:$0xf] %v4492
                %v4494 = vld [vmem:[%s4438 + $0x6c] sm:$0xf]
                %4495 = vst [vmem:[%s4439 + $0x6c] sm:$0xf] %v4494
                %v4496 = vld [vmem:[%s4438 + $0x70] sm:$0xf]
                %4497 = vst [vmem:[%s4439 + $0x70] sm:$0xf] %v4496
                %v4498 = vld [vmem:[%s4438 + $0x74] sm:$0xf]
                %4499 = vst [vmem:[%s4439 + $0x74] sm:$0xf] %v4498
                %v4500 = vld [vmem:[%s4438 + $0x78] sm:$0xf]
                %4501 = vst [vmem:[%s4439 + $0x78] sm:$0xf] %v4500
                %v4502 = vld [vmem:[%s4438 + $0x7c] sm:$0xf]
                %4503 = vst [vmem:[%s4439 + $0x7c] sm:$0xf] %v4502
                %s4504 = sadd.s32 1, %s4437
                %p4505 = scmp.ge.s32.totalorder %s4504, %s4430
                %s4506 = scalar_select %p4505, 0, %s4504
                %s4507 = smul.u32 %s4506, 128
                %s4508 = smul.u32 %s4506, 128
                %s4509 = scalar_lea.vmem %s4410, %s4507 [#allocation9]
                %s4510 = scalar_lea.vmem %s4421, %s4508
              $region105: #{deepsdf_like_forward.1} parent=99 // loop_footer
                %s4434 = sadd.s32 %s4432, 1
              $region106: #{deepsdf_like_forward.1} parent=99 // loop_footer_branch
                %4431 = sbr.rel target = $region102
              $region107: #{deepsdf_like_forward.1} parent=99 // loop_exit
                _
              %s4511 = sshrl.u32 %s4417, 5
              %s4512 = sand.u32 %s4417, 31
              %s4513 = smul.u32 %s4511, 32
              %s4514 = smul.u32 4, %s4513
              %s4515 = scalar_lea.vmem %s4410, %s4514 [#allocation9]
              %s4516 = smul.u32 4, %s4513
              %s4517 = scalar_lea.vmem %s4421, %s4516
              // While loop
              $region108: #{deepsdf_like_forward.1} parent=99 // loop_pre_header
                _
              $region109: #{deepsdf_like_forward.1} parent=99 // loop_header
                %s4519 = sphi 0, %s4521
                %p4520 = scmp.ge.s32.totalorder %s4519, %s4512
                %s4524 = sphi 0, %s4531
                %s4525 = sphi %s4515, %s4534
                %s4526 = sphi %s4517, %s4535
              $region110: #{deepsdf_like_forward.1} parent=99 // loop_header_branch
                %4523 = sbr.rel (%p4520) target = $region114
              $region111: #{deepsdf_like_forward.1} parent=99 // loop_body
                %v4527 = vld [vmem:[%s4525] sm:$0xf]
                %4528 = vst [vmem:[%s4526] sm:$0xf] %v4527
                %s4529 = sadd.s32 1, %s4524
                %p4530 = scmp.ge.s32.totalorder %s4529, %s4512
                %s4531 = scalar_select %p4530, 0, %s4529
                %s4532 = smul.u32 %s4531, 4
                %s4533 = smul.u32 %s4531, 4
                %s4534 = scalar_lea.vmem %s4515, %s4532 [#allocation9]
                %s4535 = scalar_lea.vmem %s4517, %s4533
              $region112: #{deepsdf_like_forward.1} parent=99 // loop_footer
                %s4521 = sadd.s32 %s4519, 1
              $region113: #{deepsdf_like_forward.1} parent=99 // loop_footer_branch
                %4518 = sbr.rel target = $region109
              $region114: #{deepsdf_like_forward.1} parent=99 // loop_exit
                _
            $region100: #{deepsdf_like_forward.1} parent=91 // pred_fallthru
              _
          $region92: #{deepsdf_like_forward.1} parent=87 // pred_fallthru
            _
          %4645 = vnop
        $region88: #{deepsdf_like_forward.1} parent=67 // pred_fallthru
          _
      $region68: #{deepsdf_like_forward.1} parent=5 // pred_fallthru
        _
      %p4646 = scmp.le.s32.totalorder 2, %s21
      // Predicated region
      $region133: #{deepsdf_like_forward.1} parent=5 // pred_check
        %p4647 = pneg %p4646
      $region134: #{deepsdf_like_forward.1} parent=5 // pred_check_branch
        %4649 = sbr.rel (%p4647) target = $region136
      $region135: #{deepsdf_like_forward.1} parent=5 // pred_region
        %s4650 = ssub.s32 %s21, 2
        // Predicated region
        $region137: #{deepsdf_like_forward.1} parent=135 // pred_check
          %p4651 = pneg %p312
        $region138: #{deepsdf_like_forward.1} parent=135 // pred_check_branch
          %4653 = sbr.rel (%p4651) target = $region140
        $region139: #{deepsdf_like_forward.1} parent=135 // pred_region
          %s4654 = sand.u32 %s297, 1
          %s4655 = sand.u32 %s297, 1
          %s4656 = smul.addr %s4655, 128
          %s4657 = scalar_lea.vmem [#allocation9], %s4656
        $region140: #{deepsdf_like_forward.1} parent=135 // pred_fallthru
          _
      $region136: #{deepsdf_like_forward.1} parent=5 // pred_fallthru
        _
    $region6: #{deepsdf_like_forward.1} parent=1 // loop_footer
      %s25 = sadd.s32 1, %s21
    $region7: #{deepsdf_like_forward.1} parent=1 // loop_footer_branch
      %20 = sbr.rel target = $region3
    $region8: #{deepsdf_like_forward.1} parent=1 // loop_exit
      _
    %4658 = vsyncpa [#allocation3], 1
    %s4659 = scalar_lea.sflag [#allocation3], 1
    %4660 = vsyncpa %s4659, 1
    %4661 = vsyncpa [#allocation5], 1
    %4662 = vsyncpa [#allocation8], 1

</llo_original>
